<compile_context>
chip_gen: v6e
topology: v6e:2x2x1
jax: 0.10.0
libtpu: 0.0.40
codegen_flags: <defaults>
</compile_context>

<pallas_src>
import math

import jax
import jax.numpy as jnp
import numpy as np
from jax import lax
from jax.experimental import pallas as pl
from jax.experimental.pallas import tpu as pltpu

TWO_PI = 2.0 * math.pi


# ---------------------------------------------------------------------------
# Kernel
# ---------------------------------------------------------------------------
def _make_kernel(*, alphabet, hidden, d_chunk, n_chunks, lanes):
    """Build the kernel for one (batch-tile, D-tile) grid step.

    Ref shapes (NB = tile_b // rc, rc = sublane row-chunk, normally 8):
      seqs_ref : (NB, rc, n_chunks*d_chunk) int32  tokens
      tpb_ref  : (NB, rc, H)                f32    temb + bias per batch row
      hidx_ref : (1, lanes)                 int32  lane l -> l % H
      tab_ref  : (A, lanes)                 f32    lane-tiled W_lin.T rows
      exp_ref  : (d_chunk, lanes)           bf16   0/1 token->lane expansion
      out_ref  : (NB, rc, n_chunks*lanes)          flattened lane-dense output
      base_scr : (NB, rc, lanes)            f32    temb+bias tiled across lanes
      tok_scr  : (NB, rc, lanes)            f32    token broadcast per d-chunk
    """

    def kernel(seqs_ref, tpb_ref, hidx_ref, tab_ref, exp_ref,
               out_ref, base_scr, tok_scr):
        nb, rc, _ = seqs_ref.shape
        tile_b = nb * rc

        # ---- once per batch tile (first D step): lane-tile temb + bias -----
        # base[b, d*H + h] = temb[b, h] + b_lin[h].  Reused across the whole
        # (sequential / "arbitrary") D grid axis of this batch tile.
        @pl.when(pl.program_id(1) == 0)
        def _init():
            hidx = hidx_ref[...]                               # (1, lanes)
            base = jnp.zeros(base_scr.shape, jnp.float32)
            for h in range(hidden):                            # H tiny selects
                base = base + jnp.where(hidx == h, tpb_ref[:, :, h:h + 1], 0.0)
            base_scr[...] = base

        exp_mat = exp_ref[...]                                 # (d_chunk, lanes) bf16

        for c in range(n_chunks):            # static loop over 128-token chunks
            # Broadcast each token across its H output lanes with one MXU
            # matmul for the whole batch tile (RHS pushed once per chunk).
            # bf16 inputs are exact for 0/1 and integer tokens < 256.
            seq_c = seqs_ref[:, :, pl.ds(c * d_chunk, d_chunk)]
            seq2d = seq_c.reshape(tile_b, d_chunk).astype(jnp.bfloat16)
            tok = jnp.dot(seq2d, exp_mat, preferred_element_type=jnp.float32)
            tok_scr[...] = tok.reshape(nb, rc, lanes)

            # Vreg-resident select-accumulate over the alphabet, 8 rows at a
            # time; each output vreg is stored exactly once.
            # TODO(synk): for large alphabets (A >= ~16) switch to building a
            # one-hot via a lane-iota compare and a second MXU matmul instead.
            def row_body(r, c=c):
                acc = base_scr[r]                              # (rc, lanes)
                tk = tok_scr[r]
                for a in range(alphabet):
                    acc = acc + jnp.where(tk == float(a),
                                          tab_ref[pl.ds(a, 1), :], 0.0)
                out_ref[r, :, pl.ds(c * lanes, lanes)] = acc.astype(out_ref.dtype)

            if nb <= 2:                       # tiny tiles: fully unrolled
                for r in range(nb):
                    row_body(r)
            else:                             # big batch tiles: fori over rows
                lax.fori_loop(0, nb, lambda r, carry: (row_body(r), carry)[1], 0)

    return kernel


# ---------------------------------------------------------------------------
# Tiling / budgeting helpers
# ---------------------------------------------------------------------------
def _tpu_generation():
    """Best-effort TPU generation (5/6/7) for tile and VMEM defaults."""
    try:
        kind = jax.devices()[0].device_kind.lower().replace(" ", "")
    except Exception:
        return 6
    for g in (7, 6, 5, 4):
        if f"v{g}" in kind or f"tpu{g}" in kind:
            return g
    return 6


def _vmem_estimate(tile_b, tile_d, d_chunk, H, A, const_buffers=2):
    """Rough VMEM footprint (bytes) of one pipelined grid step."""
    lanes = d_chunk * H
    return (2 * 4 * tile_b * tile_d               # seqs blocks (int32, 2 buffers)
            + 2 * 4 * tile_b * H                  # temb+bias blocks
            + 2 * 4 * tile_b * tile_d * H         # output blocks (2 buffers)
            + const_buffers * (4 * lanes          # hidx
                               + 4 * A * lanes    # table
                               + 2 * d_chunk * lanes)   # expand (bf16)
            + 2 * 4 * tile_b * lanes)             # base_scr + tok_scr


def _auto_tiles(B, D, H, A, gen):
    """Generation-aware tiles: big lane-dense blocks within the VMEM budget."""
    d_chunk = 128 if (D % 128 == 0 and D > 128) else D
    n_dc = D // d_chunk
    vmem_cap = (44 << 20) if gen >= 7 else (100 << 20)   # v7x has only 64 MiB
    budget = vmem_cap // 2

    if B % 8 == 0:
        cap_b = min(B, 512 if gen >= 6 else 256)         # v5e: 128-row MXU passes
        if gen >= 7 and B >= 16:
            cap_b = min(cap_b, B // 2)                   # keep both v7x TCs busy
        tbs = sorted((tb for tb in range(8, cap_b + 1, 8) if B % tb == 0),
                     reverse=True) or [B]
    else:
        tbs = [B]
    ncs = sorted((c for c in range(1, n_dc + 1) if n_dc % c == 0), reverse=True)

    for tb in tbs:
        for nc in ncs:
            if tb * nc * d_chunk * H * 4 > (4 << 20):    # output block <= 4 MiB
                continue
            if _vmem_estimate(tb, nc * d_chunk, d_chunk, H, A) > budget:
                continue
            return tb, nc * d_chunk, vmem_cap
    return tbs[-1], d_chunk, vmem_cap


def _build_call(*, kernel, B, D, H, A, tile_b, tile_d, d_chunk, rc,
                out_dtype, vmem_limit, single_buffer_consts):
    lanes = d_chunk * H
    nb_blk = tile_b // rc
    nb_arr = B // rc
    grid = (B // tile_b, D // tile_d)

    def const_spec(shape):
        idx_map = lambda bi, di: (0, 0)
        if single_buffer_consts:
            try:        # constants never change -> a single VMEM copy suffices
                return pl.BlockSpec(shape, idx_map,
                                    pipeline_mode=pl.Buffered(buffer_count=1))
            except Exception:
                pass
        return pl.BlockSpec(shape, idx_map)

    return pl.pallas_call(
        kernel,
        out_shape=jax.ShapeDtypeStruct((nb_arr, rc, D * H), out_dtype),
        grid_spec=pltpu.PrefetchScalarGridSpec(
            num_scalar_prefetch=0,
            grid=grid,
            in_specs=[
                pl.BlockSpec((nb_blk, rc, tile_d), lambda bi, di: (bi, 0, di)),
                pl.BlockSpec((nb_blk, rc, H), lambda bi, di: (bi, 0, 0)),
                const_spec((1, lanes)),          # hidx
                const_spec((A, lanes)),          # table (W_lin.T rows)
                const_spec((d_chunk, lanes)),    # expansion matrix (bf16)
            ],
            out_specs=pl.BlockSpec((nb_blk, rc, tile_d * H),
                                   lambda bi, di: (bi, 0, di)),
            scratch_shapes=[pltpu.VMEM((nb_blk, rc, lanes), jnp.float32),
                            pltpu.VMEM((nb_blk, rc, lanes), jnp.float32)],
        ),
        compiler_params=pltpu.CompilerParams(
            dimension_semantics=("parallel", "arbitrary"),
            vmem_limit_bytes=int(vmem_limit),
        ),
    )


# ---------------------------------------------------------------------------
# Public wrapper
# ---------------------------------------------------------------------------
def embedder_forward(seqs, t, w_fourier, w_lin, b_lin, residues=None,
                     tile_b=None, tile_d=None, out_dtype=jnp.float32):
    """Forward pass of `Embedder`.

    seqs:      (B, D_full) integer tokens
    t:         (B,)        float time
    w_fourier: (H//2,)     Gaussian Fourier frequencies (non-trainable)
    w_lin:     (H, A)      nn.Linear weight (out_features, in_features)
    b_lin:     (H,)        nn.Linear bias
    residues:  optional integer index array (selects seqs[:, residues])
    Returns:   (B, D*H)    out_dtype (float32 by default, matching the module)
    """
    if residues is not None:
        # TODO(synk): fold this gather into the kernel (scalar-prefetch the
        # residue indices into SMEM and drive the seqs index_map with them).
        seqs = seqs[:, jnp.asarray(residues)]

    B, D = seqs.shape
    H, A = int(w_lin.shape[0]), int(w_lin.shape[1])
    Hh = int(w_fourier.shape[0])
    assert H == 2 * Hh, "hidden_dim (= alphabet_size + 1) must be even"
    assert A <= 256, "bf16 token-expansion matmul is exact only for tokens < 256"

    gen = _tpu_generation()
    auto_tb, auto_td, vmem_cap = _auto_tiles(B, D, H, A, gen)
    tile_b = auto_tb if tile_b is None else int(tile_b)
    tile_d = auto_td if tile_d is None else int(tile_d)

    assert B % tile_b == 0 and D % tile_d == 0
    assert tile_b == B or tile_b % 8 == 0, "tile_b must be full B or 8-aligned"
    assert tile_d == D or tile_d % 128 == 0, \
        "seqs block last dim must be full D or 128-aligned"

    rc = 8 if (B % 8 == 0 and tile_b % 8 == 0) else tile_b
    d_chunk = 128 if (tile_d % 128 == 0 and tile_d > 128) else tile_d
    n_chunks = tile_d // d_chunk
    lanes = d_chunk * H

    # ---- tiny host-side prep (O(B*H) and O(A*d_chunk*H)) -------------------
    f32 = jnp.float32
    seqs3 = seqs.astype(jnp.int32).reshape(B // rc, rc, D)

    # Gaussian-Fourier time features + bias: (B, H).  O(B*H) work (~1/D of the
    # kernel's HBM traffic), bit-identical to the reference sin/cos; the kernel
    # lane-tiles it once per batch tile into VMEM scratch.
    # TODO(synk): could be moved fully in-kernel (jnp.sin once per batch tile).
    x_proj = t.astype(f32)[:, None] * w_fourier.astype(f32)[None, :] * TWO_PI
    temb = jnp.concatenate([jnp.sin(x_proj), jnp.cos(x_proj)], axis=-1)   # (B, H)
    tpb3 = (temb + b_lin.astype(f32)[None, :]).reshape(B // rc, rc, H)

    # lane l = d*H + h  ->  hidx[l] = h
    hidx = jnp.tile(jnp.arange(H, dtype=jnp.int32), (d_chunk,)).reshape(1, lanes)
    # Pure weight rows (bias lives in tpb), lane-tiled: table[a, d*H+h] = W.T[a, h].
    table_tiled = jnp.tile(w_lin.T.astype(f32), (1, d_chunk))            # (A, lanes)
    # Token -> lane expansion: exp[d, l] = 1 iff l // H == d (bf16, exact 0/1).
    expand = (jnp.arange(lanes, dtype=jnp.int32) // H
              == jnp.arange(d_chunk, dtype=jnp.int32)[:, None]).astype(jnp.bfloat16)

    est = _vmem_estimate(tile_b, tile_d, d_chunk, H, A)
    vmem_limit = min(vmem_cap, max(32 << 20, int(1.8 * est)))

    kernel = _make_kernel(alphabet=A, hidden=H, d_chunk=d_chunk,
                          n_chunks=n_chunks, lanes=lanes)

    out3, err = None, None
    for single_buf in (True, False):       # Buffered(1) consts; plain fallback
        try:
            call = _build_call(kernel=kernel, B=B, D=D, H=H, A=A,
                               tile_b=tile_b, tile_d=tile_d, d_chunk=d_chunk,
                               rc=rc, out_dtype=out_dtype,
                               vmem_limit=vmem_limit,
                               single_buffer_consts=single_buf)
            out3 = call(seqs3, tpb3, hidx, table_tiled, expand)
            out3 = jax.block_until_ready(out3)
            break
        except Exception as e:             # pragma: no cover
            err = e
            out3 = None
    if out3 is None:
        raise err
    return out3.reshape(B, D * H)


# ---------------------------------------------------------------------------
# Pure-JAX reference (matches the PyTorch forward)
# ---------------------------------------------------------------------------
def embedder_reference(seqs, t, w_fourier, w_lin, b_lin, residues=None):
    if residues is not None:
        seqs = seqs[:, jnp.asarray(residues)]
    A = w_lin.shape[1]
    x = jax.nn.one_hot(seqs, A, dtype=jnp.float32)
    feat = jnp.dot(x, w_lin.T.astype(jnp.float32),
                   precision=jax.lax.Precision.HIGHEST) + b_lin
    x_proj = t[:, None] * w_fourier[None, :] * TWO_PI
    temb = jnp.concatenate([jnp.sin(x_proj), jnp.cos(x_proj)], axis=-1)
    out = feat + temb[:, None, :]
    return out.reshape(out.shape[0], -1)


if __name__ == "__main__":
    # Protein-like small shapes: alphabet A=7 -> hidden H = A+1 = 8 (even),
    # batch B=32, sequence length D=512.
    B, D, A = 32, 512, 7
    H = A + 1
    Hh = H // 2

    key = jax.random.PRNGKey(0)
    k_seq, k_t, k_wf, k_w, k_b = jax.random.split(key, 5)
    seqs = jax.random.randint(k_seq, (B, D), minval=0, maxval=A, dtype=jnp.int32)
    t = jax.random.uniform(k_t, (B,), dtype=jnp.float32)
    w_fourier = jax.random.normal(k_wf, (Hh,), dtype=jnp.float32) * 30.0  # scale=30
    w_lin = jax.random.normal(k_w, (H, A), dtype=jnp.float32) * 0.1
    b_lin = jax.random.normal(k_b, (H,), dtype=jnp.float32) * 0.1

    ref = embedder_reference(seqs, t, w_fourier, w_lin, b_lin)

    configs = [
        dict(tile_b=8, tile_d=128),    # (4,4) grid: unrolled rows, scratch reuse
        dict(tile_b=32, tile_d=256),   # (1,2) grid: fori row path, 2 d-chunks/block
        dict(),                        # auto, generation-aware tiles
    ]
    for cfg in configs:
        out = embedder_forward(seqs, t, w_fourier, w_lin, b_lin, **cfg)
        out = jax.block_until_ready(out)
        assert out.shape == (B, D * H), out.shape
        np.testing.assert_allclose(np.asarray(out), np.asarray(ref),
                                   rtol=1e-5, atol=1e-5)

    # residues sub-selection path (wrapper gather), D_res = 256.
    residues = np.arange(0, D, 2)
    ref_r = embedder_reference(seqs, t, w_fourier, w_lin, b_lin, residues=residues)
    out_r = embedder_forward(seqs, t, w_fourier, w_lin, b_lin, residues=residues,
                             tile_b=8, tile_d=128)
    out_r = jax.block_until_ready(out_r)
    np.testing.assert_allclose(np.asarray(out_r), np.asarray(ref_r),
                               rtol=1e-5, atol=1e-5)

    print("KERNEL_OK")
</pallas_src>

<mosaic_0001>
module attributes {stable_mosaic.version = 11 : i64} {
  func.func @kernel(%arg0: i32, %arg1: i32, %arg2: memref<1x8x128xi32, #tpu.memory_space<vmem>>, %arg3: memref<1x8x8xf32, #tpu.memory_space<vmem>>, %arg4: memref<1x1024xi32, #tpu.memory_space<vmem>>, %arg5: memref<7x1024xf32, #tpu.memory_space<vmem>>, %arg6: memref<128x1024xbf16, #tpu.memory_space<vmem>>, %arg7: memref<1x8x1024xf32, #tpu.memory_space<vmem>>, %arg8: memref<1x8x1024xf32, #tpu.memory_space<vmem>>, %arg9: memref<1x8x1024xf32, #tpu.memory_space<vmem>>) attributes {dimension_semantics = [#tpu.dimension_semantics<parallel>, #tpu.dimension_semantics<arbitrary>], iteration_bounds = array<i64: 4, 4>, scalar_prefetch = 0 : i64, scratch_operands = 2 : i64, tpu.core_type = #tpu.core_type<tc>, window_params = [{transform_indices = @transform_0, window_bounds = array<i64: 1, 8, 128>}, {transform_indices = @transform_1, window_bounds = array<i64: 1, 8, 8>}, {pipeline_mode = #tpu.pipeline_mode<synchronous>, transform_indices = @transform_2, window_bounds = array<i64: 1, 1024>}, {pipeline_mode = #tpu.pipeline_mode<synchronous>, transform_indices = @transform_3, window_bounds = array<i64: 7, 1024>}, {pipeline_mode = #tpu.pipeline_mode<synchronous>, transform_indices = @transform_4, window_bounds = array<i64: 128, 1024>}, {transform_indices = @transform_5, window_bounds = array<i64: 1, 8, 1024>}]} {
    %c0_i32 = arith.constant 0 : i32
    %0 = arith.cmpi eq, %arg1, %c0_i32 : i32
    %1 = arith.extui %0 : i1 to i32
    %c0_i32_0 = arith.constant 0 : i32
    %2 = arith.cmpi ne, %1, %c0_i32_0 : i32
    scf.if %2 {
      %c0_39 = arith.constant 0 : index
      %c0_40 = arith.constant 0 : index
      %73 = vector.load %arg4[%c0_39, %c0_40] : memref<1x1024xi32, #tpu.memory_space<vmem>>, vector<1x1024xi32>
      %cst_41 = arith.constant 0.000000e+00 : f32
      %74 = vector.broadcast %cst_41 : f32 to vector<1x8x1024xf32>
      %c0_i32_42 = arith.constant 0 : i32
      %75 = vector.broadcast %c0_i32_42 : i32 to vector<1x1024xi32>
      %76 = arith.cmpi eq, %73, %75 : vector<1x1024xi32>
      %c0_43 = arith.constant 0 : index
      %c0_44 = arith.constant 0 : index
      %c0_45 = arith.constant 0 : index
      %77 = vector.load %arg3[%c0_43, %c0_44, %c0_45] : memref<1x8x8xf32, #tpu.memory_space<vmem>>, vector<1x8x1xf32>
      %cst_46 = arith.constant 0.000000e+00 : f32
      %78 = vector.shape_cast %76 : vector<1x1024xi1> to vector<1x1x1024xi1>
      %79 = vector.broadcast %78 : vector<1x1x1024xi1> to vector<1x8x1024xi1>
      %80 = vector.shape_cast %77 : vector<1x8x1xf32> to vector<1x8x1xf32>
      %81 = vector.broadcast %80 : vector<1x8x1xf32> to vector<1x8x1024xf32>
      %82 = vector.broadcast %cst_46 : f32 to vector<1x8x1024xf32>
      %83 = arith.select %79, %81, %82 : vector<1x8x1024xi1>, vector<1x8x1024xf32>
      %84 = arith.addf %74, %83 : vector<1x8x1024xf32>
      %c1_i32 = arith.constant 1 : i32
      %85 = vector.broadcast %c1_i32 : i32 to vector<1x1024xi32>
      %86 = arith.cmpi eq, %73, %85 : vector<1x1024xi32>
      %c0_47 = arith.constant 0 : index
      %c0_48 = arith.constant 0 : index
      %c1_49 = arith.constant 1 : index
      %87 = vector.load %arg3[%c0_47, %c0_48, %c1_49] : memref<1x8x8xf32, #tpu.memory_space<vmem>>, vector<1x8x1xf32>
      %cst_50 = arith.constant 0.000000e+00 : f32
      %88 = vector.shape_cast %86 : vector<1x1024xi1> to vector<1x1x1024xi1>
      %89 = vector.broadcast %88 : vector<1x1x1024xi1> to vector<1x8x1024xi1>
      %90 = vector.shape_cast %87 : vector<1x8x1xf32> to vector<1x8x1xf32>
      %91 = vector.broadcast %90 : vector<1x8x1xf32> to vector<1x8x1024xf32>
      %92 = vector.broadcast %cst_50 : f32 to vector<1x8x1024xf32>
      %93 = arith.select %89, %91, %92 : vector<1x8x1024xi1>, vector<1x8x1024xf32>
      %94 = arith.addf %84, %93 : vector<1x8x1024xf32>
      %c2_i32 = arith.constant 2 : i32
      %95 = vector.broadcast %c2_i32 : i32 to vector<1x1024xi32>
      %96 = arith.cmpi eq, %73, %95 : vector<1x1024xi32>
      %c0_51 = arith.constant 0 : index
      %c0_52 = arith.constant 0 : index
      %c2_53 = arith.constant 2 : index
      %97 = vector.load %arg3[%c0_51, %c0_52, %c2_53] : memref<1x8x8xf32, #tpu.memory_space<vmem>>, vector<1x8x1xf32>
      %cst_54 = arith.constant 0.000000e+00 : f32
      %98 = vector.shape_cast %96 : vector<1x1024xi1> to vector<1x1x1024xi1>
      %99 = vector.broadcast %98 : vector<1x1x1024xi1> to vector<1x8x1024xi1>
      %100 = vector.shape_cast %97 : vector<1x8x1xf32> to vector<1x8x1xf32>
      %101 = vector.broadcast %100 : vector<1x8x1xf32> to vector<1x8x1024xf32>
      %102 = vector.broadcast %cst_54 : f32 to vector<1x8x1024xf32>
      %103 = arith.select %99, %101, %102 : vector<1x8x1024xi1>, vector<1x8x1024xf32>
      %104 = arith.addf %94, %103 : vector<1x8x1024xf32>
      %c3_i32 = arith.constant 3 : i32
      %105 = vector.broadcast %c3_i32 : i32 to vector<1x1024xi32>
      %106 = arith.cmpi eq, %73, %105 : vector<1x1024xi32>
      %c0_55 = arith.constant 0 : index
      %c0_56 = arith.constant 0 : index
      %c3_57 = arith.constant 3 : index
      %107 = vector.load %arg3[%c0_55, %c0_56, %c3_57] : memref<1x8x8xf32, #tpu.memory_space<vmem>>, vector<1x8x1xf32>
      %cst_58 = arith.constant 0.000000e+00 : f32
      %108 = vector.shape_cast %106 : vector<1x1024xi1> to vector<1x1x1024xi1>
      %109 = vector.broadcast %108 : vector<1x1x1024xi1> to vector<1x8x1024xi1>
      %110 = vector.shape_cast %107 : vector<1x8x1xf32> to vector<1x8x1xf32>
      %111 = vector.broadcast %110 : vector<1x8x1xf32> to vector<1x8x1024xf32>
      %112 = vector.broadcast %cst_58 : f32 to vector<1x8x1024xf32>
      %113 = arith.select %109, %111, %112 : vector<1x8x1024xi1>, vector<1x8x1024xf32>
      %114 = arith.addf %104, %113 : vector<1x8x1024xf32>
      %c4_i32 = arith.constant 4 : i32
      %115 = vector.broadcast %c4_i32 : i32 to vector<1x1024xi32>
      %116 = arith.cmpi eq, %73, %115 : vector<1x1024xi32>
      %c0_59 = arith.constant 0 : index
      %c0_60 = arith.constant 0 : index
      %c4_61 = arith.constant 4 : index
      %117 = vector.load %arg3[%c0_59, %c0_60, %c4_61] : memref<1x8x8xf32, #tpu.memory_space<vmem>>, vector<1x8x1xf32>
      %cst_62 = arith.constant 0.000000e+00 : f32
      %118 = vector.shape_cast %116 : vector<1x1024xi1> to vector<1x1x1024xi1>
      %119 = vector.broadcast %118 : vector<1x1x1024xi1> to vector<1x8x1024xi1>
      %120 = vector.shape_cast %117 : vector<1x8x1xf32> to vector<1x8x1xf32>
      %121 = vector.broadcast %120 : vector<1x8x1xf32> to vector<1x8x1024xf32>
      %122 = vector.broadcast %cst_62 : f32 to vector<1x8x1024xf32>
      %123 = arith.select %119, %121, %122 : vector<1x8x1024xi1>, vector<1x8x1024xf32>
      %124 = arith.addf %114, %123 : vector<1x8x1024xf32>
      %c5_i32 = arith.constant 5 : i32
      %125 = vector.broadcast %c5_i32 : i32 to vector<1x1024xi32>
      %126 = arith.cmpi eq, %73, %125 : vector<1x1024xi32>
      %c0_63 = arith.constant 0 : index
      %c0_64 = arith.constant 0 : index
      %c5_65 = arith.constant 5 : index
      %127 = vector.load %arg3[%c0_63, %c0_64, %c5_65] : memref<1x8x8xf32, #tpu.memory_space<vmem>>, vector<1x8x1xf32>
      %cst_66 = arith.constant 0.000000e+00 : f32
      %128 = vector.shape_cast %126 : vector<1x1024xi1> to vector<1x1x1024xi1>
      %129 = vector.broadcast %128 : vector<1x1x1024xi1> to vector<1x8x1024xi1>
      %130 = vector.shape_cast %127 : vector<1x8x1xf32> to vector<1x8x1xf32>
      %131 = vector.broadcast %130 : vector<1x8x1xf32> to vector<1x8x1024xf32>
      %132 = vector.broadcast %cst_66 : f32 to vector<1x8x1024xf32>
      %133 = arith.select %129, %131, %132 : vector<1x8x1024xi1>, vector<1x8x1024xf32>
      %134 = arith.addf %124, %133 : vector<1x8x1024xf32>
      %c6_i32 = arith.constant 6 : i32
      %135 = vector.broadcast %c6_i32 : i32 to vector<1x1024xi32>
      %136 = arith.cmpi eq, %73, %135 : vector<1x1024xi32>
      %c0_67 = arith.constant 0 : index
      %c0_68 = arith.constant 0 : index
      %c6_69 = arith.constant 6 : index
      %137 = vector.load %arg3[%c0_67, %c0_68, %c6_69] : memref<1x8x8xf32, #tpu.memory_space<vmem>>, vector<1x8x1xf32>
      %cst_70 = arith.constant 0.000000e+00 : f32
      %138 = vector.shape_cast %136 : vector<1x1024xi1> to vector<1x1x1024xi1>
      %139 = vector.broadcast %138 : vector<1x1x1024xi1> to vector<1x8x1024xi1>
      %140 = vector.shape_cast %137 : vector<1x8x1xf32> to vector<1x8x1xf32>
      %141 = vector.broadcast %140 : vector<1x8x1xf32> to vector<1x8x1024xf32>
      %142 = vector.broadcast %cst_70 : f32 to vector<1x8x1024xf32>
      %143 = arith.select %139, %141, %142 : vector<1x8x1024xi1>, vector<1x8x1024xf32>
      %144 = arith.addf %134, %143 : vector<1x8x1024xf32>
      %c7_i32 = arith.constant 7 : i32
      %145 = vector.broadcast %c7_i32 : i32 to vector<1x1024xi32>
      %146 = arith.cmpi eq, %73, %145 : vector<1x1024xi32>
      %c0_71 = arith.constant 0 : index
      %c0_72 = arith.constant 0 : index
      %c7 = arith.constant 7 : index
      %147 = vector.load %arg3[%c0_71, %c0_72, %c7] : memref<1x8x8xf32, #tpu.memory_space<vmem>>, vector<1x8x1xf32>
      %cst_73 = arith.constant 0.000000e+00 : f32
      %148 = vector.shape_cast %146 : vector<1x1024xi1> to vector<1x1x1024xi1>
      %149 = vector.broadcast %148 : vector<1x1x1024xi1> to vector<1x8x1024xi1>
      %150 = vector.shape_cast %147 : vector<1x8x1xf32> to vector<1x8x1xf32>
      %151 = vector.broadcast %150 : vector<1x8x1xf32> to vector<1x8x1024xf32>
      %152 = vector.broadcast %cst_73 : f32 to vector<1x8x1024xf32>
      %153 = arith.select %149, %151, %152 : vector<1x8x1024xi1>, vector<1x8x1024xf32>
      %154 = arith.addf %144, %153 : vector<1x8x1024xf32>
      %c0_74 = arith.constant 0 : index
      %c0_75 = arith.constant 0 : index
      %c0_76 = arith.constant 0 : index
      %155 = vector.load %arg8[%c0_74, %c0_75, %c0_76] : memref<1x8x1024xf32, #tpu.memory_space<vmem>>, vector<1x8x1024xf32>
      tpu.vector_store %arg8[%c0_74, %c0_75, %c0_76], %154 {strides = array<i32>} : memref<1x8x1024xf32, #tpu.memory_space<vmem>>, vector<1x8x1024xf32>,
    } else {
    }
    %c0 = arith.constant 0 : index
    %c0_1 = arith.constant 0 : index
    %3 = vector.load %arg6[%c0, %c0_1] : memref<128x1024xbf16, #tpu.memory_space<vmem>>, vector<128x1024xbf16>
    %c0_2 = arith.constant 0 : index
    %c0_3 = arith.constant 0 : index
    %c0_4 = arith.constant 0 : index
    %4 = vector.load %arg2[%c0_2, %c0_3, %c0_4] : memref<1x8x128xi32, #tpu.memory_space<vmem>>, vector<1x8x128xi32>
    %5 = vector.shape_cast %4 : vector<1x8x128xi32> to vector<8x128xi32>
    %6 = arith.sitofp %5 : vector<8x128xi32> to vector<8x128xbf16>
    %cst = arith.constant dense<0.000000e+00> : vector<8x1024xf32>
    %7 = tpu.matmul %6, %3, %cst {dimension_numbers = #tpu.dot_dimension_numbers<[1], [0], [0], [1], [0, 0, 1, 1], [], []>} : vector<8x128xbf16>, vector<128x1024xbf16>, vector<8x1024xf32> -> vector<8x1024xf32>
    %8 = vector.shape_cast %7 : vector<8x1024xf32> to vector<1x8x1024xf32>
    %c0_5 = arith.constant 0 : index
    %c0_6 = arith.constant 0 : index
    %c0_7 = arith.constant 0 : index
    %9 = vector.load %arg9[%c0_5, %c0_6, %c0_7] : memref<1x8x1024xf32, #tpu.memory_space<vmem>>, vector<1x8x1024xf32>
    tpu.vector_store %arg9[%c0_5, %c0_6, %c0_7], %8 {strides = array<i32>} : memref<1x8x1024xf32, #tpu.memory_space<vmem>>, vector<1x8x1024xf32>,
    %c0_8 = arith.constant 0 : index
    %c0_9 = arith.constant 0 : index
    %c0_10 = arith.constant 0 : index
    %10 = vector.load %arg8[%c0_8, %c0_9, %c0_10] : memref<1x8x1024xf32, #tpu.memory_space<vmem>>, vector<1x8x1024xf32>
    %11 = vector.shape_cast %10 : vector<1x8x1024xf32> to vector<8x1024xf32>
    %c0_11 = arith.constant 0 : index
    %c0_12 = arith.constant 0 : index
    %c0_13 = arith.constant 0 : index
    %12 = vector.load %arg9[%c0_11, %c0_12, %c0_13] : memref<1x8x1024xf32, #tpu.memory_space<vmem>>, vector<1x8x1024xf32>
    %13 = vector.shape_cast %12 : vector<1x8x1024xf32> to vector<8x1024xf32>
    %cst_14 = arith.constant 0.000000e+00 : f32
    %14 = vector.broadcast %cst_14 : f32 to vector<8x1024xf32>
    %15 = arith.cmpf oeq, %13, %14 : vector<8x1024xf32>
    %c0_15 = arith.constant 0 : index
    %c0_16 = arith.constant 0 : index
    %16 = vector.load %arg5[%c0_15, %c0_16] : memref<7x1024xf32, #tpu.memory_space<vmem>>, vector<1x1024xf32>
    %cst_17 = arith.constant 0.000000e+00 : f32
    %17 = vector.shape_cast %16 : vector<1x1024xf32> to vector<1x1024xf32>
    %18 = vector.broadcast %17 : vector<1x1024xf32> to vector<8x1024xf32>
    %19 = vector.broadcast %cst_17 : f32 to vector<8x1024xf32>
    %20 = arith.select %15, %18, %19 : vector<8x1024xi1>, vector<8x1024xf32>
    %21 = arith.addf %11, %20 : vector<8x1024xf32>
    %cst_18 = arith.constant 1.000000e+00 : f32
    %22 = vector.broadcast %cst_18 : f32 to vector<8x1024xf32>
    %23 = arith.cmpf oeq, %13, %22 : vector<8x1024xf32>
    %c1 = arith.constant 1 : index
    %c0_19 = arith.constant 0 : index
    %24 = vector.load %arg5[%c1, %c0_19] : memref<7x1024xf32, #tpu.memory_space<vmem>>, vector<1x1024xf32>
    %cst_20 = arith.constant 0.000000e+00 : f32
    %25 = vector.shape_cast %24 : vector<1x1024xf32> to vector<1x1024xf32>
    %26 = vector.broadcast %25 : vector<1x1024xf32> to vector<8x1024xf32>
    %27 = vector.broadcast %cst_20 : f32 to vector<8x1024xf32>
    %28 = arith.select %23, %26, %27 : vector<8x1024xi1>, vector<8x1024xf32>
    %29 = arith.addf %21, %28 : vector<8x1024xf32>
    %cst_21 = arith.constant 2.000000e+00 : f32
    %30 = vector.broadcast %cst_21 : f32 to vector<8x1024xf32>
    %31 = arith.cmpf oeq, %13, %30 : vector<8x1024xf32>
    %c2 = arith.constant 2 : index
    %c0_22 = arith.constant 0 : index
    %32 = vector.load %arg5[%c2, %c0_22] : memref<7x1024xf32, #tpu.memory_space<vmem>>, vector<1x1024xf32>
    %cst_23 = arith.constant 0.000000e+00 : f32
    %33 = vector.shape_cast %32 : vector<1x1024xf32> to vector<1x1024xf32>
    %34 = vector.broadcast %33 : vector<1x1024xf32> to vector<8x1024xf32>
    %35 = vector.broadcast %cst_23 : f32 to vector<8x1024xf32>
    %36 = arith.select %31, %34, %35 : vector<8x1024xi1>, vector<8x1024xf32>
    %37 = arith.addf %29, %36 : vector<8x1024xf32>
    %cst_24 = arith.constant 3.000000e+00 : f32
    %38 = vector.broadcast %cst_24 : f32 to vector<8x1024xf32>
    %39 = arith.cmpf oeq, %13, %38 : vector<8x1024xf32>
    %c3 = arith.constant 3 : index
    %c0_25 = arith.constant 0 : index
    %40 = vector.load %arg5[%c3, %c0_25] : memref<7x1024xf32, #tpu.memory_space<vmem>>, vector<1x1024xf32>
    %cst_26 = arith.constant 0.000000e+00 : f32
    %41 = vector.shape_cast %40 : vector<1x1024xf32> to vector<1x1024xf32>
    %42 = vector.broadcast %41 : vector<1x1024xf32> to vector<8x1024xf32>
    %43 = vector.broadcast %cst_26 : f32 to vector<8x1024xf32>
    %44 = arith.select %39, %42, %43 : vector<8x1024xi1>, vector<8x1024xf32>
    %45 = arith.addf %37, %44 : vector<8x1024xf32>
    %cst_27 = arith.constant 4.000000e+00 : f32
    %46 = vector.broadcast %cst_27 : f32 to vector<8x1024xf32>
    %47 = arith.cmpf oeq, %13, %46 : vector<8x1024xf32>
    %c4 = arith.constant 4 : index
    %c0_28 = arith.constant 0 : index
    %48 = vector.load %arg5[%c4, %c0_28] : memref<7x1024xf32, #tpu.memory_space<vmem>>, vector<1x1024xf32>
    %cst_29 = arith.constant 0.000000e+00 : f32
    %49 = vector.shape_cast %48 : vector<1x1024xf32> to vector<1x1024xf32>
    %50 = vector.broadcast %49 : vector<1x1024xf32> to vector<8x1024xf32>
    %51 = vector.broadcast %cst_29 : f32 to vector<8x1024xf32>
    %52 = arith.select %47, %50, %51 : vector<8x1024xi1>, vector<8x1024xf32>
    %53 = arith.addf %45, %52 : vector<8x1024xf32>
    %cst_30 = arith.constant 5.000000e+00 : f32
    %54 = vector.broadcast %cst_30 : f32 to vector<8x1024xf32>
    %55 = arith.cmpf oeq, %13, %54 : vector<8x1024xf32>
    %c5 = arith.constant 5 : index
    %c0_31 = arith.constant 0 : index
    %56 = vector.load %arg5[%c5, %c0_31] : memref<7x1024xf32, #tpu.memory_space<vmem>>, vector<1x1024xf32>
    %cst_32 = arith.constant 0.000000e+00 : f32
    %57 = vector.shape_cast %56 : vector<1x1024xf32> to vector<1x1024xf32>
    %58 = vector.broadcast %57 : vector<1x1024xf32> to vector<8x1024xf32>
    %59 = vector.broadcast %cst_32 : f32 to vector<8x1024xf32>
    %60 = arith.select %55, %58, %59 : vector<8x1024xi1>, vector<8x1024xf32>
    %61 = arith.addf %53, %60 : vector<8x1024xf32>
    %cst_33 = arith.constant 6.000000e+00 : f32
    %62 = vector.broadcast %cst_33 : f32 to vector<8x1024xf32>
    %63 = arith.cmpf oeq, %13, %62 : vector<8x1024xf32>
    %c6 = arith.constant 6 : index
    %c0_34 = arith.constant 0 : index
    %64 = vector.load %arg5[%c6, %c0_34] : memref<7x1024xf32, #tpu.memory_space<vmem>>, vector<1x1024xf32>
    %cst_35 = arith.constant 0.000000e+00 : f32
    %65 = vector.shape_cast %64 : vector<1x1024xf32> to vector<1x1024xf32>
    %66 = vector.broadcast %65 : vector<1x1024xf32> to vector<8x1024xf32>
    %67 = vector.broadcast %cst_35 : f32 to vector<8x1024xf32>
    %68 = arith.select %63, %66, %67 : vector<8x1024xi1>, vector<8x1024xf32>
    %69 = arith.addf %61, %68 : vector<8x1024xf32>
    %c0_36 = arith.constant 0 : index
    %c0_37 = arith.constant 0 : index
    %c0_38 = arith.constant 0 : index
    %70 = vector.load %arg7[%c0_36, %c0_37, %c0_38] : memref<1x8x1024xf32, #tpu.memory_space<vmem>>, vector<1x8x1024xf32>
    %71 = vector.shape_cast %70 : vector<1x8x1024xf32> to vector<8x1024xf32>
    %72 = vector.shape_cast %69 : vector<8x1024xf32> to vector<1x8x1024xf32>
    tpu.vector_store %arg7[%c0_36, %c0_37, %c0_38], %72 {strides = array<i32>} : memref<1x8x1024xf32, #tpu.memory_space<vmem>>, vector<1x8x1024xf32>,
    return
  }
  func.func @transform_0(%arg0: i32, %arg1: i32) -> (i32, i32, i32) {
    %c0_i32 = arith.constant 0 : i32
    %c0_i32_0 = arith.constant 0 : i32
    return %arg0, %c0_i32, %arg1 : i32, i32, i32
  }
  func.func @transform_1(%arg0: i32, %arg1: i32) -> (i32, i32, i32) {
    %c0_i32 = arith.constant 0 : i32
    %c0_i32_0 = arith.constant 0 : i32
    %c0_i32_1 = arith.constant 0 : i32
    return %arg0, %c0_i32, %c0_i32_0 : i32, i32, i32
  }
  func.func @transform_2(%arg0: i32, %arg1: i32) -> (i32, i32) {
    %c0_i32 = arith.constant 0 : i32
    %c0_i32_0 = arith.constant 0 : i32
    %c0_i32_1 = arith.constant 0 : i32
    return %c0_i32, %c0_i32_0 : i32, i32
  }
  func.func @transform_3(%arg0: i32, %arg1: i32) -> (i32, i32) {
    %c0_i32 = arith.constant 0 : i32
    %c0_i32_0 = arith.constant 0 : i32
    %c0_i32_1 = arith.constant 0 : i32
    return %c0_i32, %c0_i32_0 : i32, i32
  }
  func.func @transform_4(%arg0: i32, %arg1: i32) -> (i32, i32) {
    %c0_i32 = arith.constant 0 : i32
    %c0_i32_0 = arith.constant 0 : i32
    %c0_i32_1 = arith.constant 0 : i32
    return %c0_i32, %c0_i32_0 : i32, i32
  }
  func.func @transform_5(%arg0: i32, %arg1: i32) -> (i32, i32, i32) {
    %c0_i32 = arith.constant 0 : i32
    %c0_i32_0 = arith.constant 0 : i32
    return %arg0, %c0_i32, %arg1 : i32, i32, i32
  }
}

module attributes {stable_mosaic.version = 11 : i64} {
  func.func @kernel(%arg0: i32, %arg1: i32, %arg2: memref<1x8x128xi32, #tpu.memory_space<vmem>>, %arg3: memref<1x8x8xf32, #tpu.memory_space<vmem>>, %arg4: memref<1x1024xi32, #tpu.memory_space<vmem>>, %arg5: memref<7x1024xf32, #tpu.memory_space<vmem>>, %arg6: memref<128x1024xbf16, #tpu.memory_space<vmem>>, %arg7: memref<1x8x1024xf32, #tpu.memory_space<vmem>>, %arg8: memref<1x8x1024xf32, #tpu.memory_space<vmem>>, %arg9: memref<1x8x1024xf32, #tpu.memory_space<vmem>>) attributes {dimension_semantics = [#tpu.dimension_semantics<parallel>, #tpu.dimension_semantics<arbitrary>], iteration_bounds = array<i64: 4, 4>, scalar_prefetch = 0 : i64, scratch_operands = 2 : i64, tpu.core_type = #tpu.core_type<tc>, window_params = [{transform_indices = @transform_0, window_bounds = array<i64: 1, 8, 128>}, {transform_indices = @transform_1, window_bounds = array<i64: 1, 8, 8>}, {pipeline_mode = #tpu.pipeline_mode<synchronous>, transform_indices = @transform_2, window_bounds = array<i64: 1, 1024>}, {pipeline_mode = #tpu.pipeline_mode<synchronous>, transform_indices = @transform_3, window_bounds = array<i64: 7, 1024>}, {pipeline_mode = #tpu.pipeline_mode<synchronous>, transform_indices = @transform_4, window_bounds = array<i64: 128, 1024>}, {transform_indices = @transform_5, window_bounds = array<i64: 1, 8, 1024>}]} {
    %c0_i32 = arith.constant 0 : i32
    %0 = arith.cmpi eq, %arg1, %c0_i32 : i32
    %1 = arith.extui %0 : i1 to i32
    %c0_i32_0 = arith.constant 0 : i32
    %2 = arith.cmpi ne, %1, %c0_i32_0 : i32
    scf.if %2 {
      %c0_39 = arith.constant 0 : index
      %c0_40 = arith.constant 0 : index
      %73 = vector.load %arg4[%c0_39, %c0_40] : memref<1x1024xi32, #tpu.memory_space<vmem>>, vector<1x1024xi32>
      %cst_41 = arith.constant 0.000000e+00 : f32
      %74 = vector.broadcast %cst_41 : f32 to vector<1x8x1024xf32>
      %c0_i32_42 = arith.constant 0 : i32
      %75 = vector.broadcast %c0_i32_42 : i32 to vector<1x1024xi32>
      %76 = arith.cmpi eq, %73, %75 : vector<1x1024xi32>
      %c0_43 = arith.constant 0 : index
      %c0_44 = arith.constant 0 : index
      %c0_45 = arith.constant 0 : index
      %77 = vector.load %arg3[%c0_43, %c0_44, %c0_45] : memref<1x8x8xf32, #tpu.memory_space<vmem>>, vector<1x8x1xf32>
      %cst_46 = arith.constant 0.000000e+00 : f32
      %78 = vector.shape_cast %76 : vector<1x1024xi1> to vector<1x1x1024xi1>
      %79 = vector.broadcast %78 : vector<1x1x1024xi1> to vector<1x8x1024xi1>
      %80 = vector.shape_cast %77 : vector<1x8x1xf32> to vector<1x8x1xf32>
      %81 = vector.broadcast %80 : vector<1x8x1xf32> to vector<1x8x1024xf32>
      %82 = vector.broadcast %cst_46 : f32 to vector<1x8x1024xf32>
      %83 = arith.select %79, %81, %82 : vector<1x8x1024xi1>, vector<1x8x1024xf32>
      %84 = arith.addf %74, %83 : vector<1x8x1024xf32>
      %c1_i32 = arith.constant 1 : i32
      %85 = vector.broadcast %c1_i32 : i32 to vector<1x1024xi32>
      %86 = arith.cmpi eq, %73, %85 : vector<1x1024xi32>
      %c0_47 = arith.constant 0 : index
      %c0_48 = arith.constant 0 : index
      %c1_49 = arith.constant 1 : index
      %87 = vector.load %arg3[%c0_47, %c0_48, %c1_49] : memref<1x8x8xf32, #tpu.memory_space<vmem>>, vector<1x8x1xf32>
      %cst_50 = arith.constant 0.000000e+00 : f32
      %88 = vector.shape_cast %86 : vector<1x1024xi1> to vector<1x1x1024xi1>
      %89 = vector.broadcast %88 : vector<1x1x1024xi1> to vector<1x8x1024xi1>
      %90 = vector.shape_cast %87 : vector<1x8x1xf32> to vector<1x8x1xf32>
      %91 = vector.broadcast %90 : vector<1x8x1xf32> to vector<1x8x1024xf32>
      %92 = vector.broadcast %cst_50 : f32 to vector<1x8x1024xf32>
      %93 = arith.select %89, %91, %92 : vector<1x8x1024xi1>, vector<1x8x1024xf32>
      %94 = arith.addf %84, %93 : vector<1x8x1024xf32>
      %c2_i32 = arith.constant 2 : i32
      %95 = vector.broadcast %c2_i32 : i32 to vector<1x1024xi32>
      %96 = arith.cmpi eq, %73, %95 : vector<1x1024xi32>
      %c0_51 = arith.constant 0 : index
      %c0_52 = arith.constant 0 : index
      %c2_53 = arith.constant 2 : index
      %97 = vector.load %arg3[%c0_51, %c0_52, %c2_53] : memref<1x8x8xf32, #tpu.memory_space<vmem>>, vector<1x8x1xf32>
      %cst_54 = arith.constant 0.000000e+00 : f32
      %98 = vector.shape_cast %96 : vector<1x1024xi1> to vector<1x1x1024xi1>
      %99 = vector.broadcast %98 : vector<1x1x1024xi1> to vector<1x8x1024xi1>
      %100 = vector.shape_cast %97 : vector<1x8x1xf32> to vector<1x8x1xf32>
      %101 = vector.broadcast %100 : vector<1x8x1xf32> to vector<1x8x1024xf32>
      %102 = vector.broadcast %cst_54 : f32 to vector<1x8x1024xf32>
      %103 = arith.select %99, %101, %102 : vector<1x8x1024xi1>, vector<1x8x1024xf32>
      %104 = arith.addf %94, %103 : vector<1x8x1024xf32>
      %c3_i32 = arith.constant 3 : i32
      %105 = vector.broadcast %c3_i32 : i32 to vector<1x1024xi32>
      %106 = arith.cmpi eq, %73, %105 : vector<1x1024xi32>
      %c0_55 = arith.constant 0 : index
      %c0_56 = arith.constant 0 : index
      %c3_57 = arith.constant 3 : index
      %107 = vector.load %arg3[%c0_55, %c0_56, %c3_57] : memref<1x8x8xf32, #tpu.memory_space<vmem>>, vector<1x8x1xf32>
      %cst_58 = arith.constant 0.000000e+00 : f32
      %108 = vector.shape_cast %106 : vector<1x1024xi1> to vector<1x1x1024xi1>
      %109 = vector.broadcast %108 : vector<1x1x1024xi1> to vector<1x8x1024xi1>
      %110 = vector.shape_cast %107 : vector<1x8x1xf32> to vector<1x8x1xf32>
      %111 = vector.broadcast %110 : vector<1x8x1xf32> to vector<1x8x1024xf32>
      %112 = vector.broadcast %cst_58 : f32 to vector<1x8x1024xf32>
      %113 = arith.select %109, %111, %112 : vector<1x8x1024xi1>, vector<1x8x1024xf32>
      %114 = arith.addf %104, %113 : vector<1x8x1024xf32>
      %c4_i32 = arith.constant 4 : i32
      %115 = vector.broadcast %c4_i32 : i32 to vector<1x1024xi32>
      %116 = arith.cmpi eq, %73, %115 : vector<1x1024xi32>
      %c0_59 = arith.constant 0 : index
      %c0_60 = arith.constant 0 : index
      %c4_61 = arith.constant 4 : index
      %117 = vector.load %arg3[%c0_59, %c0_60, %c4_61] : memref<1x8x8xf32, #tpu.memory_space<vmem>>, vector<1x8x1xf32>
      %cst_62 = arith.constant 0.000000e+00 : f32
      %118 = vector.shape_cast %116 : vector<1x1024xi1> to vector<1x1x1024xi1>
      %119 = vector.broadcast %118 : vector<1x1x1024xi1> to vector<1x8x1024xi1>
      %120 = vector.shape_cast %117 : vector<1x8x1xf32> to vector<1x8x1xf32>
      %121 = vector.broadcast %120 : vector<1x8x1xf32> to vector<1x8x1024xf32>
      %122 = vector.broadcast %cst_62 : f32 to vector<1x8x1024xf32>
      %123 = arith.select %119, %121, %122 : vector<1x8x1024xi1>, vector<1x8x1024xf32>
      %124 = arith.addf %114, %123 : vector<1x8x1024xf32>
      %c5_i32 = arith.constant 5 : i32
      %125 = vector.broadcast %c5_i32 : i32 to vector<1x1024xi32>
      %126 = arith.cmpi eq, %73, %125 : vector<1x1024xi32>
      %c0_63 = arith.constant 0 : index
      %c0_64 = arith.constant 0 : index
      %c5_65 = arith.constant 5 : index
      %127 = vector.load %arg3[%c0_63, %c0_64, %c5_65] : memref<1x8x8xf32, #tpu.memory_space<vmem>>, vector<1x8x1xf32>
      %cst_66 = arith.constant 0.000000e+00 : f32
      %128 = vector.shape_cast %126 : vector<1x1024xi1> to vector<1x1x1024xi1>
      %129 = vector.broadcast %128 : vector<1x1x1024xi1> to vector<1x8x1024xi1>
      %130 = vector.shape_cast %127 : vector<1x8x1xf32> to vector<1x8x1xf32>
      %131 = vector.broadcast %130 : vector<1x8x1xf32> to vector<1x8x1024xf32>
      %132 = vector.broadcast %cst_66 : f32 to vector<1x8x1024xf32>
      %133 = arith.select %129, %131, %132 : vector<1x8x1024xi1>, vector<1x8x1024xf32>
      %134 = arith.addf %124, %133 : vector<1x8x1024xf32>
      %c6_i32 = arith.constant 6 : i32
      %135 = vector.broadcast %c6_i32 : i32 to vector<1x1024xi32>
      %136 = arith.cmpi eq, %73, %135 : vector<1x1024xi32>
      %c0_67 = arith.constant 0 : index
      %c0_68 = arith.constant 0 : index
      %c6_69 = arith.constant 6 : index
      %137 = vector.load %arg3[%c0_67, %c0_68, %c6_69] : memref<1x8x8xf32, #tpu.memory_space<vmem>>, vector<1x8x1xf32>
      %cst_70 = arith.constant 0.000000e+00 : f32
      %138 = vector.shape_cast %136 : vector<1x1024xi1> to vector<1x1x1024xi1>
      %139 = vector.broadcast %138 : vector<1x1x1024xi1> to vector<1x8x1024xi1>
      %140 = vector.shape_cast %137 : vector<1x8x1xf32> to vector<1x8x1xf32>
      %141 = vector.broadcast %140 : vector<1x8x1xf32> to vector<1x8x1024xf32>
      %142 = vector.broadcast %cst_70 : f32 to vector<1x8x1024xf32>
      %143 = arith.select %139, %141, %142 : vector<1x8x1024xi1>, vector<1x8x1024xf32>
      %144 = arith.addf %134, %143 : vector<1x8x1024xf32>
      %c7_i32 = arith.constant 7 : i32
      %145 = vector.broadcast %c7_i32 : i32 to vector<1x1024xi32>
      %146 = arith.cmpi eq, %73, %145 : vector<1x1024xi32>
      %c0_71 = arith.constant 0 : index
      %c0_72 = arith.constant 0 : index
      %c7 = arith.constant 7 : index
      %147 = vector.load %arg3[%c0_71, %c0_72, %c7] : memref<1x8x8xf32, #tpu.memory_space<vmem>>, vector<1x8x1xf32>
      %cst_73 = arith.constant 0.000000e+00 : f32
      %148 = vector.shape_cast %146 : vector<1x1024xi1> to vector<1x1x1024xi1>
      %149 = vector.broadcast %148 : vector<1x1x1024xi1> to vector<1x8x1024xi1>
      %150 = vector.shape_cast %147 : vector<1x8x1xf32> to vector<1x8x1xf32>
      %151 = vector.broadcast %150 : vector<1x8x1xf32> to vector<1x8x1024xf32>
      %152 = vector.broadcast %cst_73 : f32 to vector<1x8x1024xf32>
      %153 = arith.select %149, %151, %152 : vector<1x8x1024xi1>, vector<1x8x1024xf32>
      %154 = arith.addf %144, %153 : vector<1x8x1024xf32>
      %c0_74 = arith.constant 0 : index
      %c0_75 = arith.constant 0 : index
      %c0_76 = arith.constant 0 : index
      %155 = vector.load %arg8[%c0_74, %c0_75, %c0_76] : memref<1x8x1024xf32, #tpu.memory_space<vmem>>, vector<1x8x1024xf32>
      tpu.vector_store %arg8[%c0_74, %c0_75, %c0_76], %154 {strides = array<i32>} : memref<1x8x1024xf32, #tpu.memory_space<vmem>>, vector<1x8x1024xf32>,
    } else {
    }
    %c0 = arith.constant 0 : index
    %c0_1 = arith.constant 0 : index
    %3 = vector.load %arg6[%c0, %c0_1] : memref<128x1024xbf16, #tpu.memory_space<vmem>>, vector<128x1024xbf16>
    %c0_2 = arith.constant 0 : index
    %c0_3 = arith.constant 0 : index
    %c0_4 = arith.constant 0 : index
    %4 = vector.load %arg2[%c0_2, %c0_3, %c0_4] : memref<1x8x128xi32, #tpu.memory_space<vmem>>, vector<1x8x128xi32>
    %5 = vector.shape_cast %4 : vector<1x8x128xi32> to vector<8x128xi32>
    %6 = arith.sitofp %5 : vector<8x128xi32> to vector<8x128xbf16>
    %cst = arith.constant dense<0.000000e+00> : vector<8x1024xf32>
    %7 = tpu.matmul %6, %3, %cst {dimension_numbers = #tpu.dot_dimension_numbers<[1], [0], [0], [1], [0, 0, 1, 1], [], []>} : vector<8x128xbf16>, vector<128x1024xbf16>, vector<8x1024xf32> -> vector<8x1024xf32>
    %8 = vector.shape_cast %7 : vector<8x1024xf32> to vector<1x8x1024xf32>
    %c0_5 = arith.constant 0 : index
    %c0_6 = arith.constant 0 : index
    %c0_7 = arith.constant 0 : index
    %9 = vector.load %arg9[%c0_5, %c0_6, %c0_7] : memref<1x8x1024xf32, #tpu.memory_space<vmem>>, vector<1x8x1024xf32>
    tpu.vector_store %arg9[%c0_5, %c0_6, %c0_7], %8 {strides = array<i32>} : memref<1x8x1024xf32, #tpu.memory_space<vmem>>, vector<1x8x1024xf32>,
    %c0_8 = arith.constant 0 : index
    %c0_9 = arith.constant 0 : index
    %c0_10 = arith.constant 0 : index
    %10 = vector.load %arg8[%c0_8, %c0_9, %c0_10] : memref<1x8x1024xf32, #tpu.memory_space<vmem>>, vector<1x8x1024xf32>
    %11 = vector.shape_cast %10 : vector<1x8x1024xf32> to vector<8x1024xf32>
    %c0_11 = arith.constant 0 : index
    %c0_12 = arith.constant 0 : index
    %c0_13 = arith.constant 0 : index
    %12 = vector.load %arg9[%c0_11, %c0_12, %c0_13] : memref<1x8x1024xf32, #tpu.memory_space<vmem>>, vector<1x8x1024xf32>
    %13 = vector.shape_cast %12 : vector<1x8x1024xf32> to vector<8x1024xf32>
    %cst_14 = arith.constant 0.000000e+00 : f32
    %14 = vector.broadcast %cst_14 : f32 to vector<8x1024xf32>
    %15 = arith.cmpf oeq, %13, %14 : vector<8x1024xf32>
    %c0_15 = arith.constant 0 : index
    %c0_16 = arith.constant 0 : index
    %16 = vector.load %arg5[%c0_15, %c0_16] : memref<7x1024xf32, #tpu.memory_space<vmem>>, vector<1x1024xf32>
    %cst_17 = arith.constant 0.000000e+00 : f32
    %17 = vector.shape_cast %16 : vector<1x1024xf32> to vector<1x1024xf32>
    %18 = vector.broadcast %17 : vector<1x1024xf32> to vector<8x1024xf32>
    %19 = vector.broadcast %cst_17 : f32 to vector<8x1024xf32>
    %20 = arith.select %15, %18, %19 : vector<8x1024xi1>, vector<8x1024xf32>
    %21 = arith.addf %11, %20 : vector<8x1024xf32>
    %cst_18 = arith.constant 1.000000e+00 : f32
    %22 = vector.broadcast %cst_18 : f32 to vector<8x1024xf32>
    %23 = arith.cmpf oeq, %13, %22 : vector<8x1024xf32>
    %c1 = arith.constant 1 : index
    %c0_19 = arith.constant 0 : index
    %24 = vector.load %arg5[%c1, %c0_19] : memref<7x1024xf32, #tpu.memory_space<vmem>>, vector<1x1024xf32>
    %cst_20 = arith.constant 0.000000e+00 : f32
    %25 = vector.shape_cast %24 : vector<1x1024xf32> to vector<1x1024xf32>
    %26 = vector.broadcast %25 : vector<1x1024xf32> to vector<8x1024xf32>
    %27 = vector.broadcast %cst_20 : f32 to vector<8x1024xf32>
    %28 = arith.select %23, %26, %27 : vector<8x1024xi1>, vector<8x1024xf32>
    %29 = arith.addf %21, %28 : vector<8x1024xf32>
    %cst_21 = arith.constant 2.000000e+00 : f32
    %30 = vector.broadcast %cst_21 : f32 to vector<8x1024xf32>
    %31 = arith.cmpf oeq, %13, %30 : vector<8x1024xf32>
    %c2 = arith.constant 2 : index
    %c0_22 = arith.constant 0 : index
    %32 = vector.load %arg5[%c2, %c0_22] : memref<7x1024xf32, #tpu.memory_space<vmem>>, vector<1x1024xf32>
    %cst_23 = arith.constant 0.000000e+00 : f32
    %33 = vector.shape_cast %32 : vector<1x1024xf32> to vector<1x1024xf32>
    %34 = vector.broadcast %33 : vector<1x1024xf32> to vector<8x1024xf32>
    %35 = vector.broadcast %cst_23 : f32 to vector<8x1024xf32>
    %36 = arith.select %31, %34, %35 : vector<8x1024xi1>, vector<8x1024xf32>
    %37 = arith.addf %29, %36 : vector<8x1024xf32>
    %cst_24 = arith.constant 3.000000e+00 : f32
    %38 = vector.broadcast %cst_24 : f32 to vector<8x1024xf32>
    %39 = arith.cmpf oeq, %13, %38 : vector<8x1024xf32>
    %c3 = arith.constant 3 : index
    %c0_25 = arith.constant 0 : index
    %40 = vector.load %arg5[%c3, %c0_25] : memref<7x1024xf32, #tpu.memory_space<vmem>>, vector<1x1024xf32>
    %cst_26 = arith.constant 0.000000e+00 : f32
    %41 = vector.shape_cast %40 : vector<1x1024xf32> to vector<1x1024xf32>
    %42 = vector.broadcast %41 : vector<1x1024xf32> to vector<8x1024xf32>
    %43 = vector.broadcast %cst_26 : f32 to vector<8x1024xf32>
    %44 = arith.select %39, %42, %43 : vector<8x1024xi1>, vector<8x1024xf32>
    %45 = arith.addf %37, %44 : vector<8x1024xf32>
    %cst_27 = arith.constant 4.000000e+00 : f32
    %46 = vector.broadcast %cst_27 : f32 to vector<8x1024xf32>
    %47 = arith.cmpf oeq, %13, %46 : vector<8x1024xf32>
    %c4 = arith.constant 4 : index
    %c0_28 = arith.constant 0 : index
    %48 = vector.load %arg5[%c4, %c0_28] : memref<7x1024xf32, #tpu.memory_space<vmem>>, vector<1x1024xf32>
    %cst_29 = arith.constant 0.000000e+00 : f32
    %49 = vector.shape_cast %48 : vector<1x1024xf32> to vector<1x1024xf32>
    %50 = vector.broadcast %49 : vector<1x1024xf32> to vector<8x1024xf32>
    %51 = vector.broadcast %cst_29 : f32 to vector<8x1024xf32>
    %52 = arith.select %47, %50, %51 : vector<8x1024xi1>, vector<8x1024xf32>
    %53 = arith.addf %45, %52 : vector<8x1024xf32>
    %cst_30 = arith.constant 5.000000e+00 : f32
    %54 = vector.broadcast %cst_30 : f32 to vector<8x1024xf32>
    %55 = arith.cmpf oeq, %13, %54 : vector<8x1024xf32>
    %c5 = arith.constant 5 : index
    %c0_31 = arith.constant 0 : index
    %56 = vector.load %arg5[%c5, %c0_31] : memref<7x1024xf32, #tpu.memory_space<vmem>>, vector<1x1024xf32>
    %cst_32 = arith.constant 0.000000e+00 : f32
    %57 = vector.shape_cast %56 : vector<1x1024xf32> to vector<1x1024xf32>
    %58 = vector.broadcast %57 : vector<1x1024xf32> to vector<8x1024xf32>
    %59 = vector.broadcast %cst_32 : f32 to vector<8x1024xf32>
    %60 = arith.select %55, %58, %59 : vector<8x1024xi1>, vector<8x1024xf32>
    %61 = arith.addf %53, %60 : vector<8x1024xf32>
    %cst_33 = arith.constant 6.000000e+00 : f32
    %62 = vector.broadcast %cst_33 : f32 to vector<8x1024xf32>
    %63 = arith.cmpf oeq, %13, %62 : vector<8x1024xf32>
    %c6 = arith.constant 6 : index
    %c0_34 = arith.constant 0 : index
    %64 = vector.load %arg5[%c6, %c0_34] : memref<7x1024xf32, #tpu.memory_space<vmem>>, vector<1x1024xf32>
    %cst_35 = arith.constant 0.000000e+00 : f32
    %65 = vector.shape_cast %64 : vector<1x1024xf32> to vector<1x1024xf32>
    %66 = vector.broadcast %65 : vector<1x1024xf32> to vector<8x1024xf32>
    %67 = vector.broadcast %cst_35 : f32 to vector<8x1024xf32>
    %68 = arith.select %63, %66, %67 : vector<8x1024xi1>, vector<8x1024xf32>
    %69 = arith.addf %61, %68 : vector<8x1024xf32>
    %c0_36 = arith.constant 0 : index
    %c0_37 = arith.constant 0 : index
    %c0_38 = arith.constant 0 : index
    %70 = vector.load %arg7[%c0_36, %c0_37, %c0_38] : memref<1x8x1024xf32, #tpu.memory_space<vmem>>, vector<1x8x1024xf32>
    %71 = vector.shape_cast %70 : vector<1x8x1024xf32> to vector<8x1024xf32>
    %72 = vector.shape_cast %69 : vector<8x1024xf32> to vector<1x8x1024xf32>
    tpu.vector_store %arg7[%c0_36, %c0_37, %c0_38], %72 {strides = array<i32>} : memref<1x8x1024xf32, #tpu.memory_space<vmem>>, vector<1x8x1024xf32>,
    return
  }
  func.func @transform_0(%arg0: i32, %arg1: i32) -> (i32, i32, i32) {
    %c0_i32 = arith.constant 0 : i32
    %c0_i32_0 = arith.constant 0 : i32
    return %arg0, %c0_i32, %arg1 : i32, i32, i32
  }
  func.func @transform_1(%arg0: i32, %arg1: i32) -> (i32, i32, i32) {
    %c0_i32 = arith.constant 0 : i32
    %c0_i32_0 = arith.constant 0 : i32
    %c0_i32_1 = arith.constant 0 : i32
    return %arg0, %c0_i32, %c0_i32_0 : i32, i32, i32
  }
  func.func @transform_2(%arg0: i32, %arg1: i32) -> (i32, i32) {
    %c0_i32 = arith.constant 0 : i32
    %c0_i32_0 = arith.constant 0 : i32
    %c0_i32_1 = arith.constant 0 : i32
    return %c0_i32, %c0_i32_0 : i32, i32
  }
  func.func @transform_3(%arg0: i32, %arg1: i32) -> (i32, i32) {
    %c0_i32 = arith.constant 0 : i32
    %c0_i32_0 = arith.constant 0 : i32
    %c0_i32_1 = arith.constant 0 : i32
    return %c0_i32, %c0_i32_0 : i32, i32
  }
  func.func @transform_4(%arg0: i32, %arg1: i32) -> (i32, i32) {
    %c0_i32 = arith.constant 0 : i32
    %c0_i32_0 = arith.constant 0 : i32
    %c0_i32_1 = arith.constant 0 : i32
    return %c0_i32, %c0_i32_0 : i32, i32
  }
  func.func @transform_5(%arg0: i32, %arg1: i32) -> (i32, i32, i32) {
    %c0_i32 = arith.constant 0 : i32
    %c0_i32_0 = arith.constant 0 : i32
    return %arg0, %c0_i32, %arg1 : i32, i32, i32
  }
}

</mosaic_0001>

<llo_original>
// kernel: tpu_custom_call.1
$region0: #{tpu_custom_call.1}
  #allocation0 [shape = 'u32[]', space=smem, size = 0x4, offset = 0x4, fixed_abs, tag = 'smem constant byte address 0x4 - core index']
  #allocation1 [shape = 'u32[144,128]{1,0:T(1,128)}', space=vmem, size = 0x12000, scoped, tag = 'internal scratch']
  #allocation2 [shape = 'f32[1,8,1024]{2,1,0:T(8,128)}', space=vmem, size = 0x8000, scoped, tag = 'scratch operand']
  #allocation3 [shape = 'f32[1,8,1024]{2,1,0:T(8,128)}', space=vmem, size = 0x8000, scoped, tag = 'scratch operand']
  %s0 = inlined_call_operand.hbm [shape: s32[4,8,512], index: 0, kind: input, shape index: {}]
  %s1 = inlined_call_operand.hbm [shape: f32[4,8,8], index: 1, kind: input, shape index: {}]
  %s2 = inlined_call_operand.hbm [shape: s32[1,1024], index: 2, kind: input, shape index: {}]
  %s3 = inlined_call_operand.hbm [shape: f32[7,1024], index: 3, kind: input, shape index: {}]
  %s4 = inlined_call_operand.hbm [shape: bf16[128,1024], index: 4, kind: input, shape index: {}]
  %s5 = inlined_call_operand.hbm [shape: f32[4,8,4096], index: 5, kind: output, shape index: {}]
  %s6 = sld [smem:[#allocation0]]
  $region77: #{tpu_custom_call.1} parent=0
    _
  %s8 = ssub.s32 1, %s6
  %s9 = scalar_select 0, %s8, %s6
  $region1: #{tpu_custom_call.1} parent=0
    #allocation4 [shape = 'u8[8192]{0}', space=vmem, size = 0x2000, scoped, tag = 'input window, operand 0']
    #allocation5 [shape = 's32[2]{0}', space=sflag, size = 0x8, scoped, tag = 'scoped memory for tpu_custom_call.1']
    #allocation6 [shape = 's32[2]{0}', space=sflag, size = 0x8, scoped, tag = 'scoped memory for tpu_custom_call.1']
    #allocation7 [shape = 'u8[8192]{0}', space=vmem, size = 0x2000, scoped, tag = 'input window, operand 1']
    #allocation8 [shape = 's32[2]{0}', space=sflag, size = 0x8, scoped, tag = 'scoped memory for tpu_custom_call.1']
    #allocation9 [shape = 'u8[4096]{0}', space=vmem, size = 0x1000, scoped, tag = 'input window, operand 2, single buffered']
    #allocation10 [shape = 'u8[32768]{0}', space=vmem, size = 0x8000, scoped, tag = 'input window, operand 3, single buffered']
    #allocation11 [shape = 's32[1]{0}', space=sflag, size = 0x4, scoped, tag = 'scoped memory for tpu_custom_call.1']
    #allocation12 [shape = 'u8[262144]{0}', space=vmem, size = 0x40000, scoped, tag = 'input window, operand 4, single buffered']
    #allocation13 [shape = 'u8[65536]{0}', space=vmem, size = 0x10000, scoped, tag = 'output window, operand 0']
    %10 = vsyncpa [#allocation5], 0
    %s11 = scalar_lea.sflag [#allocation5], 1
    %12 = vsyncpa %s11, 0
    %13 = vsyncpa [#allocation8], 0
    %s14 = scalar_lea.sflag [#allocation8], 1
    %15 = vsyncpa %s14, 0
    %16 = vsyncpa [#allocation11], 0
    %17 = vsyncpa [#allocation6], 0
    %s18 = scalar_lea.sflag [#allocation6], 1
    %19 = vsyncpa %s18, 0
    loop: start=0, step=1, limit=18
    $region2: #{tpu_custom_call.1} parent=1 // loop_pre_header
      _
    $region3: #{tpu_custom_call.1} parent=1 // loop_header
      %s21 = sphi 0, %s25
      %p22 = scmp.ge.s32.totalorder %s21, 18
      %s28 = sphi 0, %s40
      %s29 = sphi 0, %s36
      %s30 = sphi 0, %s28
      %s31 = sphi 0, %s29
      %s32 = sphi 0, %s30
      %s33 = sphi 0, %s31
      %s45 = sphi 0, %s47
      %s48 = sphi 0, %s45
      %s49 = sphi 0, %s48
      %s65 = sphi 0, %s49
      %s71 = sphi 0, %s73
      %s74 = sphi 0, %s71
      %s75 = sphi 0, %s74
      %s91 = sphi 0, %s75
      %s95 = sphi 0, %s95
      %s97 = sphi 0, %s95
      %s98 = sphi 0, %s97
      %s112 = sphi 0, %s98
      %s116 = sphi 0, %s116
      %s118 = sphi 0, %s116
      %s119 = sphi 0, %s118
      %s133 = sphi 0, %s119
      %s137 = sphi 0, %s137
      %s139 = sphi 0, %s137
      %s140 = sphi 0, %s139
      %s154 = sphi 0, %s140
      %s162 = sphi 0, %s164
      %s165 = sphi 0, %s162
      %s166 = sphi 0, %s165
      %s182 = sphi 0, %s166
    $region4: #{tpu_custom_call.1} parent=1 // loop_header_branch
      %24 = sbr.rel (%p22) target = $region8
    $region5: #{tpu_custom_call.1} parent=1 // loop_body
      %s26 = ssub.s32 %s21, 1
      %s27 = ssub.s32 %s21, 2
      %s34 = sadd.s32 1, %s29
      %p35 = scmp.ge.s32.totalorder %s34, 4
      %s36 = scalar_select %p35, 0, %s34
      %s37 = sadd.s32 1, %s28
      %s38 = scalar_select %p35, %s37, %s28
      %p39 = scmp.ge.s32.totalorder %s38, 4
      %s40 = scalar_select %p39, 0, %s38
      %s41 = ssub.s32 %s28, %s40
      %s42 = ssub.s32 %s29, %s36
      %s43 = sor.u32 %s41, %s42
      %p44 = scmp.eq.s32.totalorder %s43, 0
      %s46 = sadd.s32 %s45, 1
      %s47 = scalar_select %p44, %s45, %s46
      %p50 = pneg %p44
      %p51 = scmp.eq.s32.totalorder %s21, 15
      %p52 = por %p50, %p51
      %p53 = scmp.ne.s32.totalorder %s45, %s48
      %p54 = scmp.eq.s32.totalorder %s21, 0
      %p55 = por %p53, %p54
      %p56 = scmp.ne.s32.totalorder %s45, %s48
      %p57 = scmp.eq.s32.totalorder %s26, 15
      %p58 = por %p56, %p57
      %p59 = scmp.ne.s32.totalorder %s48, %s49
      %p60 = scmp.eq.s32.totalorder %s26, 0
      %p61 = por %p59, %p60
      %p62 = scmp.ne.s32.totalorder %s48, %s49
      %p63 = scmp.eq.s32.totalorder %s27, 15
      %p64 = por %p62, %p63
      %p66 = scmp.ne.s32.totalorder %s49, %s65
      %p67 = scmp.eq.s32.totalorder %s27, 0
      %p68 = por %p66, %p67
      %s69 = ssub.s32 %s28, %s40
      %p70 = scmp.eq.s32.totalorder %s69, 0
      %s72 = sadd.s32 %s71, 1
      %s73 = scalar_select %p70, %s71, %s72
      %p76 = pneg %p70
      %p77 = scmp.eq.s32.totalorder %s21, 15
      %p78 = por %p76, %p77
      %p79 = scmp.ne.s32.totalorder %s71, %s74
      %p80 = scmp.eq.s32.totalorder %s21, 0
      %p81 = por %p79, %p80
      %p82 = scmp.ne.s32.totalorder %s71, %s74
      %p83 = scmp.eq.s32.totalorder %s26, 15
      %p84 = por %p82, %p83
      %p85 = scmp.ne.s32.totalorder %s74, %s75
      %p86 = scmp.eq.s32.totalorder %s26, 0
      %p87 = por %p85, %p86
      %p88 = scmp.ne.s32.totalorder %s74, %s75
      %p89 = scmp.eq.s32.totalorder %s27, 15
      %p90 = por %p88, %p89
      %p92 = scmp.ne.s32.totalorder %s75, %s91
      %p93 = scmp.eq.s32.totalorder %s27, 0
      %p94 = por %p92, %p93
      %s96 = sadd.s32 %s95, 1
      %p99 = scmp.eq.s32.totalorder %s21, 15
      %p100 = scmp.ne.s32.totalorder %s95, %s97
      %p101 = scmp.eq.s32.totalorder %s21, 0
      %p102 = por %p100, %p101
      %p103 = scmp.ne.s32.totalorder %s95, %s97
      %p104 = scmp.eq.s32.totalorder %s26, 15
      %p105 = por %p103, %p104
      %p106 = scmp.ne.s32.totalorder %s97, %s98
      %p107 = scmp.eq.s32.totalorder %s26, 0
      %p108 = por %p106, %p107
      %p109 = scmp.ne.s32.totalorder %s97, %s98
      %p110 = scmp.eq.s32.totalorder %s27, 15
      %p111 = por %p109, %p110
      %p113 = scmp.ne.s32.totalorder %s98, %s112
      %p114 = scmp.eq.s32.totalorder %s27, 0
      %p115 = por %p113, %p114
      %s117 = sadd.s32 %s116, 1
      %p120 = scmp.eq.s32.totalorder %s21, 15
      %p121 = scmp.ne.s32.totalorder %s116, %s118
      %p122 = scmp.eq.s32.totalorder %s21, 0
      %p123 = por %p121, %p122
      %p124 = scmp.ne.s32.totalorder %s116, %s118
      %p125 = scmp.eq.s32.totalorder %s26, 15
      %p126 = por %p124, %p125
      %p127 = scmp.ne.s32.totalorder %s118, %s119
      %p128 = scmp.eq.s32.totalorder %s26, 0
      %p129 = por %p127, %p128
      %p130 = scmp.ne.s32.totalorder %s118, %s119
      %p131 = scmp.eq.s32.totalorder %s27, 15
      %p132 = por %p130, %p131
      %p134 = scmp.ne.s32.totalorder %s119, %s133
      %p135 = scmp.eq.s32.totalorder %s27, 0
      %p136 = por %p134, %p135
      %s138 = sadd.s32 %s137, 1
      %p141 = scmp.eq.s32.totalorder %s21, 15
      %p142 = scmp.ne.s32.totalorder %s137, %s139
      %p143 = scmp.eq.s32.totalorder %s21, 0
      %p144 = por %p142, %p143
      %p145 = scmp.ne.s32.totalorder %s137, %s139
      %p146 = scmp.eq.s32.totalorder %s26, 15
      %p147 = por %p145, %p146
      %p148 = scmp.ne.s32.totalorder %s139, %s140
      %p149 = scmp.eq.s32.totalorder %s26, 0
      %p150 = por %p148, %p149
      %p151 = scmp.ne.s32.totalorder %s139, %s140
      %p152 = scmp.eq.s32.totalorder %s27, 15
      %p153 = por %p151, %p152
      %p155 = scmp.ne.s32.totalorder %s140, %s154
      %p156 = scmp.eq.s32.totalorder %s27, 0
      %p157 = por %p155, %p156
      %s158 = ssub.s32 %s28, %s40
      %s159 = ssub.s32 %s29, %s36
      %s160 = sor.u32 %s158, %s159
      %p161 = scmp.eq.s32.totalorder %s160, 0
      %s163 = sadd.s32 %s162, 1
      %s164 = scalar_select %p161, %s162, %s163
      %p167 = pneg %p161
      %p168 = scmp.eq.s32.totalorder %s21, 15
      %p169 = por %p167, %p168
      %p170 = scmp.ne.s32.totalorder %s162, %s165
      %p171 = scmp.eq.s32.totalorder %s21, 0
      %p172 = por %p170, %p171
      %p173 = scmp.ne.s32.totalorder %s162, %s165
      %p174 = scmp.eq.s32.totalorder %s26, 15
      %p175 = por %p173, %p174
      %p176 = scmp.ne.s32.totalorder %s165, %s166
      %p177 = scmp.eq.s32.totalorder %s26, 0
      %p178 = por %p176, %p177
      %p179 = scmp.ne.s32.totalorder %s165, %s166
      %p180 = scmp.eq.s32.totalorder %s27, 15
      %p181 = por %p179, %p180
      %p183 = scmp.ne.s32.totalorder %s166, %s182
      %p184 = scmp.eq.s32.totalorder %s27, 0
      %p185 = por %p183, %p184
      %p186 = scmp.le.s32.totalorder 1, %s21
      %p187 = scmp.lt.s32.totalorder %s21, 17
      %p188 = pnand %p186, %p187
      %p189 = pneg %p188
      // Predicated region
      $region9: #{tpu_custom_call.1} parent=5 // pred_check
        _
      $region10: #{tpu_custom_call.1} parent=5 // pred_check_branch
        %191 = sbr.rel (%p188) target = $region12
      $region11: #{tpu_custom_call.1} parent=5 // pred_region
        %s192 = ssub.s32 %s21, 1
        // Predicated region
        $region13: #{tpu_custom_call.1} parent=11 // pred_check
          %p193 = pneg %p108
        $region14: #{tpu_custom_call.1} parent=11 // pred_check_branch
          %195 = sbr.rel (%p193) target = $region16
        $region15: #{tpu_custom_call.1} parent=11 // pred_region
          %s197 = ssub.s32 128, 128
          %198 = vsyncadd [#allocation8], %s197
          %s200 = sshll.u32 [#allocation9], 4
          %s201 = int_to_ptr.vmem [resolvable:$true] %s200
          %203 = dma.hbm_to_vmem [thread:$0]  %s2, 128, %s201, [#allocation8]
        $region16: #{tpu_custom_call.1} parent=11 // pred_fallthru
          _
        // Predicated region
        $region17: #{tpu_custom_call.1} parent=11 // pred_check
          %p204 = pneg %p129
        $region18: #{tpu_custom_call.1} parent=11 // pred_check_branch
          %206 = sbr.rel (%p204) target = $region20
        $region19: #{tpu_custom_call.1} parent=11 // pred_region
          %s208 = ssub.s32 1024, 1024
          %209 = vsyncadd [#allocation11], %s208
          %s211 = sshll.u32 [#allocation10], 4
          %s212 = int_to_ptr.vmem [resolvable:$true] %s211
          %214 = dma.hbm_to_vmem [thread:$0]  %s3, 1024, %s212, [#allocation11]
        $region20: #{tpu_custom_call.1} parent=11 // pred_fallthru
          _
        // Predicated region
        $region21: #{tpu_custom_call.1} parent=11 // pred_check
          %p215 = pneg %p150
        $region22: #{tpu_custom_call.1} parent=11 // pred_check_branch
          %217 = sbr.rel (%p215) target = $region24
        $region23: #{tpu_custom_call.1} parent=11 // pred_region
          %s219 = ssub.s32 8192, 8192
          %220 = vsyncadd [#allocation11], %s219
          %s221 = sshll.u32 [#allocation12], 4
          %s222 = int_to_ptr.vmem [resolvable:$true] %s221
          %227 = dma.hbm_to_vmem [thread:$0]  %s4, 8192, %s222, [#allocation11], 512, 512, 32
        $region24: #{tpu_custom_call.1} parent=11 // pred_fallthru
          _
      $region12: #{tpu_custom_call.1} parent=5 // pred_fallthru
        _
      %p228 = scmp.lt.s32.totalorder %s21, 16
      // Predicated region
      $region25: #{tpu_custom_call.1} parent=5 // pred_check
        %p229 = pneg %p228
      $region26: #{tpu_custom_call.1} parent=5 // pred_check_branch
        %231 = sbr.rel (%p229) target = $region28
      $region27: #{tpu_custom_call.1} parent=5 // pred_region
        // Predicated region
        $region29: #{tpu_custom_call.1} parent=27 // pred_check
          %p232 = pneg %p55
        $region30: #{tpu_custom_call.1} parent=27 // pred_check_branch
          %234 = sbr.rel (%p232) target = $region32
        $region31: #{tpu_custom_call.1} parent=27 // pred_region
          %s235 = sand.u32 %s45, 1
          %s236 = scalar_lea.sflag [#allocation5], %s235
          %s237 = sand.u32 %s45, 1
          %s238 = smul.addr %s237, 8
          %s239 = scalar_lea.vmem [#allocation4], %s238
          %s241 = ssub.s32 128, 128
          %242 = vsyncadd %s236, %s241
          %s243 = smul.addr %s28, 4
          %s244 = sadd.s32 %s29, %s243
          %s245 = smul.addr %s244, 128
          %s246 = scalar_lea.hbm %s0, %s245
          %s248 = sshll.u32 %s239, 4
          %s249 = int_to_ptr.vmem [resolvable:$true] %s248
          %251 = dma.hbm_to_vmem [thread:$0]  %s246, 128, %s249, %s236
        $region32: #{tpu_custom_call.1} parent=27 // pred_fallthru
          _
        // Predicated region
        $region33: #{tpu_custom_call.1} parent=27 // pred_check
          %p252 = pneg %p81
        $region34: #{tpu_custom_call.1} parent=27 // pred_check_branch
          %254 = sbr.rel (%p252) target = $region36
        $region35: #{tpu_custom_call.1} parent=27 // pred_region
          %s255 = sand.u32 %s21, 1
          %s256 = scalar_lea.sflag [#allocation8], %s255
          %s257 = sand.u32 %s71, 1
          %s258 = smul.addr %s257, 8
          %s259 = scalar_lea.vmem [#allocation7], %s258
          %s261 = ssub.s32 128, 128
          %262 = vsyncadd %s256, %s261
          %s263 = smul.addr %s28, 128
          %s264 = scalar_lea.hbm %s1, %s263
          %s266 = sshll.u32 %s259, 4
          %s267 = int_to_ptr.vmem [resolvable:$true] %s266
          %269 = dma.hbm_to_vmem [thread:$0]  %s264, 128, %s267, %s256
        $region36: #{tpu_custom_call.1} parent=27 // pred_fallthru
          _
      $region28: #{tpu_custom_call.1} parent=5 // pred_fallthru
        _
      %p270 = scmp.le.s32.totalorder 1, %s21
      %p271 = scmp.lt.s32.totalorder %s21, 17
      %p272 = pnand %p270, %p271
      %p273 = pneg %p272
      // Predicated region
      $region37: #{tpu_custom_call.1} parent=5 // pred_check
        _
      $region38: #{tpu_custom_call.1} parent=5 // pred_check_branch
        %275 = sbr.rel (%p272) target = $region40
      $region39: #{tpu_custom_call.1} parent=5 // pred_region
        %s276 = ssub.s32 %s21, 1
        %s277 = sand.u32 %s48, 1
        %s278 = scalar_lea.sflag [#allocation5], %s277
        %s279 = sand.u32 %s48, 1
        %s280 = smul.addr %s279, 8
        %s281 = scalar_lea.vmem [#allocation4], %s280
        // Predicated region
        $region41: #{tpu_custom_call.1} parent=39 // pred_check
          %p282 = pneg %p61
        $region42: #{tpu_custom_call.1} parent=39 // pred_check_branch
          %284 = sbr.rel (%p282) target = $region44
        $region43: #{tpu_custom_call.1} parent=39 // pred_region
          %285 = dma.done %s278, 128
        $region44: #{tpu_custom_call.1} parent=39 // pred_fallthru
          _
        %s286 = sand.u32 %s26, 1
        %s287 = scalar_lea.sflag [#allocation8], %s286
        %s288 = sand.u32 %s74, 1
        %s289 = smul.addr %s288, 8
        %s290 = scalar_lea.vmem [#allocation7], %s289
        // Predicated region
        $region45: #{tpu_custom_call.1} parent=39 // pred_check
          %p291 = pneg %p87
        $region46: #{tpu_custom_call.1} parent=39 // pred_check_branch
          %293 = sbr.rel (%p291) target = $region48
        $region47: #{tpu_custom_call.1} parent=39 // pred_region
          %294 = dma.done %s287, 128
        $region48: #{tpu_custom_call.1} parent=39 // pred_fallthru
          _
        // Predicated region
        $region49: #{tpu_custom_call.1} parent=39 // pred_check
          %p295 = pneg %p108
        $region50: #{tpu_custom_call.1} parent=39 // pred_check_branch
          %297 = sbr.rel (%p295) target = $region52
        $region51: #{tpu_custom_call.1} parent=39 // pred_region
          %298 = dma.done [#allocation8], 128
        $region52: #{tpu_custom_call.1} parent=39 // pred_fallthru
          _
        // Predicated region
        $region53: #{tpu_custom_call.1} parent=39 // pred_check
          %p299 = pneg %p129
        $region54: #{tpu_custom_call.1} parent=39 // pred_check_branch
          %301 = sbr.rel (%p299) target = $region56
        $region55: #{tpu_custom_call.1} parent=39 // pred_region
          %302 = dma.done [#allocation11], 1024
        $region56: #{tpu_custom_call.1} parent=39 // pred_fallthru
          _
        // Predicated region
        $region57: #{tpu_custom_call.1} parent=39 // pred_check
          %p303 = pneg %p150
        $region58: #{tpu_custom_call.1} parent=39 // pred_check_branch
          %305 = sbr.rel (%p303) target = $region60
        $region59: #{tpu_custom_call.1} parent=39 // pred_region
          %306 = dma.done [#allocation11], 8192
        $region60: #{tpu_custom_call.1} parent=39 // pred_fallthru
          _
        %s307 = sand.u32 %s48, 1
        %s308 = scalar_lea.sflag [#allocation5], %s307
        %s309 = sand.u32 %s48, 1
        %s310 = smul.addr %s309, 8
        %s311 = scalar_lea.vmem [#allocation4], %s310
        %p312 = pneg %p61
        %p313 = pneg %p58
        %s314 = sand.u32 %s26, 1
        %s315 = scalar_lea.sflag [#allocation8], %s314
        %s316 = sand.u32 %s74, 1
        %s317 = smul.addr %s316, 8
        %s318 = scalar_lea.vmem [#allocation7], %s317
        %p319 = pneg %p87
        %p320 = pneg %p84
        %p321 = pneg %p108
        %p322 = pneg %p105
        %p323 = pneg %p129
        %p324 = pneg %p126
        %p325 = pneg %p150
        %p326 = pneg %p147
        %p327 = pneg %p178
        %p328 = pneg %p175
        %s329 = sand.u32 %s165, 1
        %s330 = scalar_lea.sflag [#allocation6], %s329
        %s331 = sand.u32 %s165, 1
        %s332 = smul.addr %s331, 64
        %s333 = scalar_lea.vmem [#allocation13], %s332
        %s334 = smul.u32 8, %s31
        %p336 = scmp.eq.s32.totalorder %s31, 0
        // Predicated region
        $region61: #{tpu_custom_call.1} parent=39 // pred_check
          %p337 = pneg %p336
        $region62: #{tpu_custom_call.1} parent=39 // pred_check_branch
          %339 = sbr.rel (%p337) target = $region64
        $region63: #{tpu_custom_call.1} parent=39 // pred_region
          %v340 = vld [vmem:[#allocation9] sm:$0xff]
          %vm341 = vcmp.eq.s32.totalorder %v340, 0
          %v342 = vld [vmem:[%s290] sm:$0xff]
          %v343 = vsel %vm341, 1, 0
          %v344 = vlaneseq
          %v345 = vshrl.u32 %v344, 7
          %v346 = vsub.s32 0, %v345
          %v347 = vrot.slane %v343, %v346
          %v348 = vlaneseq
          %v349 = vshrl.u32 %v348, 7
          %v350 = vsub.s32 1, %v349
          %v351 = vrot.slane %v343, %v350
          %v352 = vlaneseq
          %v353 = vshrl.u32 %v352, 7
          %v354 = vsub.s32 2, %v353
          %v355 = vrot.slane %v343, %v354
          %v356 = vlaneseq
          %v357 = vshrl.u32 %v356, 7
          %v358 = vsub.s32 3, %v357
          %v359 = vrot.slane %v343, %v358
          %v360 = vlaneseq
          %v361 = vshrl.u32 %v360, 7
          %v362 = vsub.s32 4, %v361
          %v363 = vrot.slane %v343, %v362
          %v364 = vlaneseq
          %v365 = vshrl.u32 %v364, 7
          %v366 = vsub.s32 5, %v365
          %v367 = vrot.slane %v343, %v366
          %v368 = vlaneseq
          %v369 = vshrl.u32 %v368, 7
          %v370 = vsub.s32 6, %v369
          %v371 = vrot.slane %v343, %v370
          %v372 = vlaneseq
          %v373 = vshrl.u32 %v372, 7
          %v374 = vsub.s32 7, %v373
          %v375 = vrot.slane %v343, %v374
          %vm376 = vcmp.eq.s32.totalorder %v347, 1
          %vm377 = vcmp.eq.s32.totalorder %v351, 1
          %vm378 = vcmp.eq.s32.totalorder %v355, 1
          %vm379 = vcmp.eq.s32.totalorder %v359, 1
          %vm380 = vcmp.eq.s32.totalorder %v363, 1
          %vm381 = vcmp.eq.s32.totalorder %v367, 1
          %vm382 = vcmp.eq.s32.totalorder %v371, 1
          %vm383 = vcmp.eq.s32.totalorder %v375, 1
          %385 = vset.pattern.permute.xlu0 0
          %386 = vperm.xlu0 %385, %v342
          %v387 = vpop.permute.xlu0 %386
          %v389 = vsel %vm376, %v387, 0.0
          %v390 = vsel %vm377, %v387, 0.0
          %v391 = vsel %vm378, %v387, 0.0
          %v392 = vsel %vm379, %v387, 0.0
          %v393 = vsel %vm380, %v387, 0.0
          %v394 = vsel %vm381, %v387, 0.0
          %v395 = vsel %vm382, %v387, 0.0
          %v396 = vsel %vm383, %v387, 0.0
          %v397 = vadd.f32 %v389, 0.0
          %v398 = vadd.f32 %v390, 0.0
          %v399 = vadd.f32 %v391, 0.0
          %v400 = vadd.f32 %v392, 0.0
          %v401 = vadd.f32 %v393, 0.0
          %v402 = vadd.f32 %v394, 0.0
          %v403 = vadd.f32 %v395, 0.0
          %v404 = vadd.f32 %v396, 0.0
          %vm405 = vcmp.eq.s32.totalorder %v340, 1
          %v406 = vsel %vm405, 1, 0
          %v407 = vlaneseq
          %v408 = vshrl.u32 %v407, 7
          %v409 = vsub.s32 0, %v408
          %v410 = vrot.slane %v406, %v409
          %v411 = vlaneseq
          %v412 = vshrl.u32 %v411, 7
          %v413 = vsub.s32 1, %v412
          %v414 = vrot.slane %v406, %v413
          %v415 = vlaneseq
          %v416 = vshrl.u32 %v415, 7
          %v417 = vsub.s32 2, %v416
          %v418 = vrot.slane %v406, %v417
          %v419 = vlaneseq
          %v420 = vshrl.u32 %v419, 7
          %v421 = vsub.s32 3, %v420
          %v422 = vrot.slane %v406, %v421
          %v423 = vlaneseq
          %v424 = vshrl.u32 %v423, 7
          %v425 = vsub.s32 4, %v424
          %v426 = vrot.slane %v406, %v425
          %v427 = vlaneseq
          %v428 = vshrl.u32 %v427, 7
          %v429 = vsub.s32 5, %v428
          %v430 = vrot.slane %v406, %v429
          %v431 = vlaneseq
          %v432 = vshrl.u32 %v431, 7
          %v433 = vsub.s32 6, %v432
          %v434 = vrot.slane %v406, %v433
          %v435 = vlaneseq
          %v436 = vshrl.u32 %v435, 7
          %v437 = vsub.s32 7, %v436
          %v438 = vrot.slane %v406, %v437
          %vm439 = vcmp.eq.s32.totalorder %v410, 1
          %vm440 = vcmp.eq.s32.totalorder %v414, 1
          %vm441 = vcmp.eq.s32.totalorder %v418, 1
          %vm442 = vcmp.eq.s32.totalorder %v422, 1
          %vm443 = vcmp.eq.s32.totalorder %v426, 1
          %vm444 = vcmp.eq.s32.totalorder %v430, 1
          %vm445 = vcmp.eq.s32.totalorder %v434, 1
          %vm446 = vcmp.eq.s32.totalorder %v438, 1
          %447 = vset.pattern.permute.xlu0 1
          %448 = vperm.xlu0 %447, %v342
          %v449 = vpop.permute.xlu0 %448
          %v451 = vsel %vm439, %v449, 0.0
          %v452 = vsel %vm440, %v449, 0.0
          %v453 = vsel %vm441, %v449, 0.0
          %v454 = vsel %vm442, %v449, 0.0
          %v455 = vsel %vm443, %v449, 0.0
          %v456 = vsel %vm444, %v449, 0.0
          %v457 = vsel %vm445, %v449, 0.0
          %v458 = vsel %vm446, %v449, 0.0
          %v459 = vadd.f32 %v397, %v451
          %v460 = vadd.f32 %v398, %v452
          %v461 = vadd.f32 %v399, %v453
          %v462 = vadd.f32 %v400, %v454
          %v463 = vadd.f32 %v401, %v455
          %v464 = vadd.f32 %v402, %v456
          %v465 = vadd.f32 %v403, %v457
          %v466 = vadd.f32 %v404, %v458
          %vm467 = vcmp.eq.s32.totalorder %v340, 2
          %v468 = vsel %vm467, 1, 0
          %v469 = vlaneseq
          %v470 = vshrl.u32 %v469, 7
          %v471 = vsub.s32 0, %v470
          %v472 = vrot.slane %v468, %v471
          %v473 = vlaneseq
          %v474 = vshrl.u32 %v473, 7
          %v475 = vsub.s32 1, %v474
          %v476 = vrot.slane %v468, %v475
          %v477 = vlaneseq
          %v478 = vshrl.u32 %v477, 7
          %v479 = vsub.s32 2, %v478
          %v480 = vrot.slane %v468, %v479
          %v481 = vlaneseq
          %v482 = vshrl.u32 %v481, 7
          %v483 = vsub.s32 3, %v482
          %v484 = vrot.slane %v468, %v483
          %v485 = vlaneseq
          %v486 = vshrl.u32 %v485, 7
          %v487 = vsub.s32 4, %v486
          %v488 = vrot.slane %v468, %v487
          %v489 = vlaneseq
          %v490 = vshrl.u32 %v489, 7
          %v491 = vsub.s32 5, %v490
          %v492 = vrot.slane %v468, %v491
          %v493 = vlaneseq
          %v494 = vshrl.u32 %v493, 7
          %v495 = vsub.s32 6, %v494
          %v496 = vrot.slane %v468, %v495
          %v497 = vlaneseq
          %v498 = vshrl.u32 %v497, 7
          %v499 = vsub.s32 7, %v498
          %v500 = vrot.slane %v468, %v499
          %vm501 = vcmp.eq.s32.totalorder %v472, 1
          %vm502 = vcmp.eq.s32.totalorder %v476, 1
          %vm503 = vcmp.eq.s32.totalorder %v480, 1
          %vm504 = vcmp.eq.s32.totalorder %v484, 1
          %vm505 = vcmp.eq.s32.totalorder %v488, 1
          %vm506 = vcmp.eq.s32.totalorder %v492, 1
          %vm507 = vcmp.eq.s32.totalorder %v496, 1
          %vm508 = vcmp.eq.s32.totalorder %v500, 1
          %509 = vset.pattern.permute.xlu0 2
          %510 = vperm.xlu0 %509, %v342
          %v511 = vpop.permute.xlu0 %510
          %v513 = vsel %vm501, %v511, 0.0
          %v514 = vsel %vm502, %v511, 0.0
          %v515 = vsel %vm503, %v511, 0.0
          %v516 = vsel %vm504, %v511, 0.0
          %v517 = vsel %vm505, %v511, 0.0
          %v518 = vsel %vm506, %v511, 0.0
          %v519 = vsel %vm507, %v511, 0.0
          %v520 = vsel %vm508, %v511, 0.0
          %v521 = vadd.f32 %v459, %v513
          %v522 = vadd.f32 %v460, %v514
          %v523 = vadd.f32 %v461, %v515
          %v524 = vadd.f32 %v462, %v516
          %v525 = vadd.f32 %v463, %v517
          %v526 = vadd.f32 %v464, %v518
          %v527 = vadd.f32 %v465, %v519
          %v528 = vadd.f32 %v466, %v520
          %vm529 = vcmp.eq.s32.totalorder %v340, 3
          %v530 = vsel %vm529, 1, 0
          %v531 = vlaneseq
          %v532 = vshrl.u32 %v531, 7
          %v533 = vsub.s32 0, %v532
          %v534 = vrot.slane %v530, %v533
          %v535 = vlaneseq
          %v536 = vshrl.u32 %v535, 7
          %v537 = vsub.s32 1, %v536
          %v538 = vrot.slane %v530, %v537
          %v539 = vlaneseq
          %v540 = vshrl.u32 %v539, 7
          %v541 = vsub.s32 2, %v540
          %v542 = vrot.slane %v530, %v541
          %v543 = vlaneseq
          %v544 = vshrl.u32 %v543, 7
          %v545 = vsub.s32 3, %v544
          %v546 = vrot.slane %v530, %v545
          %v547 = vlaneseq
          %v548 = vshrl.u32 %v547, 7
          %v549 = vsub.s32 4, %v548
          %v550 = vrot.slane %v530, %v549
          %v551 = vlaneseq
          %v552 = vshrl.u32 %v551, 7
          %v553 = vsub.s32 5, %v552
          %v554 = vrot.slane %v530, %v553
          %v555 = vlaneseq
          %v556 = vshrl.u32 %v555, 7
          %v557 = vsub.s32 6, %v556
          %v558 = vrot.slane %v530, %v557
          %v559 = vlaneseq
          %v560 = vshrl.u32 %v559, 7
          %v561 = vsub.s32 7, %v560
          %v562 = vrot.slane %v530, %v561
          %vm563 = vcmp.eq.s32.totalorder %v534, 1
          %vm564 = vcmp.eq.s32.totalorder %v538, 1
          %vm565 = vcmp.eq.s32.totalorder %v542, 1
          %vm566 = vcmp.eq.s32.totalorder %v546, 1
          %vm567 = vcmp.eq.s32.totalorder %v550, 1
          %vm568 = vcmp.eq.s32.totalorder %v554, 1
          %vm569 = vcmp.eq.s32.totalorder %v558, 1
          %vm570 = vcmp.eq.s32.totalorder %v562, 1
          %571 = vset.pattern.permute.xlu0 3
          %572 = vperm.xlu0 %571, %v342
          %v573 = vpop.permute.xlu0 %572
          %v575 = vsel %vm563, %v573, 0.0
          %v576 = vsel %vm564, %v573, 0.0
          %v577 = vsel %vm565, %v573, 0.0
          %v578 = vsel %vm566, %v573, 0.0
          %v579 = vsel %vm567, %v573, 0.0
          %v580 = vsel %vm568, %v573, 0.0
          %v581 = vsel %vm569, %v573, 0.0
          %v582 = vsel %vm570, %v573, 0.0
          %v583 = vadd.f32 %v521, %v575
          %v584 = vadd.f32 %v522, %v576
          %v585 = vadd.f32 %v523, %v577
          %v586 = vadd.f32 %v524, %v578
          %v587 = vadd.f32 %v525, %v579
          %v588 = vadd.f32 %v526, %v580
          %v589 = vadd.f32 %v527, %v581
          %v590 = vadd.f32 %v528, %v582
          %vm591 = vcmp.eq.s32.totalorder %v340, 4
          %v592 = vsel %vm591, 1, 0
          %v593 = vlaneseq
          %v594 = vshrl.u32 %v593, 7
          %v595 = vsub.s32 0, %v594
          %v596 = vrot.slane %v592, %v595
          %v597 = vlaneseq
          %v598 = vshrl.u32 %v597, 7
          %v599 = vsub.s32 1, %v598
          %v600 = vrot.slane %v592, %v599
          %v601 = vlaneseq
          %v602 = vshrl.u32 %v601, 7
          %v603 = vsub.s32 2, %v602
          %v604 = vrot.slane %v592, %v603
          %v605 = vlaneseq
          %v606 = vshrl.u32 %v605, 7
          %v607 = vsub.s32 3, %v606
          %v608 = vrot.slane %v592, %v607
          %v609 = vlaneseq
          %v610 = vshrl.u32 %v609, 7
          %v611 = vsub.s32 4, %v610
          %v612 = vrot.slane %v592, %v611
          %v613 = vlaneseq
          %v614 = vshrl.u32 %v613, 7
          %v615 = vsub.s32 5, %v614
          %v616 = vrot.slane %v592, %v615
          %v617 = vlaneseq
          %v618 = vshrl.u32 %v617, 7
          %v619 = vsub.s32 6, %v618
          %v620 = vrot.slane %v592, %v619
          %v621 = vlaneseq
          %v622 = vshrl.u32 %v621, 7
          %v623 = vsub.s32 7, %v622
          %v624 = vrot.slane %v592, %v623
          %vm625 = vcmp.eq.s32.totalorder %v596, 1
          %vm626 = vcmp.eq.s32.totalorder %v600, 1
          %vm627 = vcmp.eq.s32.totalorder %v604, 1
          %vm628 = vcmp.eq.s32.totalorder %v608, 1
          %vm629 = vcmp.eq.s32.totalorder %v612, 1
          %vm630 = vcmp.eq.s32.totalorder %v616, 1
          %vm631 = vcmp.eq.s32.totalorder %v620, 1
          %vm632 = vcmp.eq.s32.totalorder %v624, 1
          %633 = vset.pattern.permute.xlu0 4
          %634 = vperm.xlu0 %633, %v342
          %v635 = vpop.permute.xlu0 %634
          %v637 = vsel %vm625, %v635, 0.0
          %v638 = vsel %vm626, %v635, 0.0
          %v639 = vsel %vm627, %v635, 0.0
          %v640 = vsel %vm628, %v635, 0.0
          %v641 = vsel %vm629, %v635, 0.0
          %v642 = vsel %vm630, %v635, 0.0
          %v643 = vsel %vm631, %v635, 0.0
          %v644 = vsel %vm632, %v635, 0.0
          %v645 = vadd.f32 %v583, %v637
          %v646 = vadd.f32 %v584, %v638
          %v647 = vadd.f32 %v585, %v639
          %v648 = vadd.f32 %v586, %v640
          %v649 = vadd.f32 %v587, %v641
          %v650 = vadd.f32 %v588, %v642
          %v651 = vadd.f32 %v589, %v643
          %v652 = vadd.f32 %v590, %v644
          %vm653 = vcmp.eq.s32.totalorder %v340, 5
          %v654 = vsel %vm653, 1, 0
          %v655 = vlaneseq
          %v656 = vshrl.u32 %v655, 7
          %v657 = vsub.s32 0, %v656
          %v658 = vrot.slane %v654, %v657
          %v659 = vlaneseq
          %v660 = vshrl.u32 %v659, 7
          %v661 = vsub.s32 1, %v660
          %v662 = vrot.slane %v654, %v661
          %v663 = vlaneseq
          %v664 = vshrl.u32 %v663, 7
          %v665 = vsub.s32 2, %v664
          %v666 = vrot.slane %v654, %v665
          %v667 = vlaneseq
          %v668 = vshrl.u32 %v667, 7
          %v669 = vsub.s32 3, %v668
          %v670 = vrot.slane %v654, %v669
          %v671 = vlaneseq
          %v672 = vshrl.u32 %v671, 7
          %v673 = vsub.s32 4, %v672
          %v674 = vrot.slane %v654, %v673
          %v675 = vlaneseq
          %v676 = vshrl.u32 %v675, 7
          %v677 = vsub.s32 5, %v676
          %v678 = vrot.slane %v654, %v677
          %v679 = vlaneseq
          %v680 = vshrl.u32 %v679, 7
          %v681 = vsub.s32 6, %v680
          %v682 = vrot.slane %v654, %v681
          %v683 = vlaneseq
          %v684 = vshrl.u32 %v683, 7
          %v685 = vsub.s32 7, %v684
          %v686 = vrot.slane %v654, %v685
          %vm687 = vcmp.eq.s32.totalorder %v658, 1
          %vm688 = vcmp.eq.s32.totalorder %v662, 1
          %vm689 = vcmp.eq.s32.totalorder %v666, 1
          %vm690 = vcmp.eq.s32.totalorder %v670, 1
          %vm691 = vcmp.eq.s32.totalorder %v674, 1
          %vm692 = vcmp.eq.s32.totalorder %v678, 1
          %vm693 = vcmp.eq.s32.totalorder %v682, 1
          %vm694 = vcmp.eq.s32.totalorder %v686, 1
          %695 = vset.pattern.permute.xlu0 5
          %696 = vperm.xlu0 %695, %v342
          %v697 = vpop.permute.xlu0 %696
          %v699 = vsel %vm687, %v697, 0.0
          %v700 = vsel %vm688, %v697, 0.0
          %v701 = vsel %vm689, %v697, 0.0
          %v702 = vsel %vm690, %v697, 0.0
          %v703 = vsel %vm691, %v697, 0.0
          %v704 = vsel %vm692, %v697, 0.0
          %v705 = vsel %vm693, %v697, 0.0
          %v706 = vsel %vm694, %v697, 0.0
          %v707 = vadd.f32 %v645, %v699
          %v708 = vadd.f32 %v646, %v700
          %v709 = vadd.f32 %v647, %v701
          %v710 = vadd.f32 %v648, %v702
          %v711 = vadd.f32 %v649, %v703
          %v712 = vadd.f32 %v650, %v704
          %v713 = vadd.f32 %v651, %v705
          %v714 = vadd.f32 %v652, %v706
          %vm715 = vcmp.eq.s32.totalorder %v340, 6
          %v716 = vsel %vm715, 1, 0
          %v717 = vlaneseq
          %v718 = vshrl.u32 %v717, 7
          %v719 = vsub.s32 0, %v718
          %v720 = vrot.slane %v716, %v719
          %v721 = vlaneseq
          %v722 = vshrl.u32 %v721, 7
          %v723 = vsub.s32 1, %v722
          %v724 = vrot.slane %v716, %v723
          %v725 = vlaneseq
          %v726 = vshrl.u32 %v725, 7
          %v727 = vsub.s32 2, %v726
          %v728 = vrot.slane %v716, %v727
          %v729 = vlaneseq
          %v730 = vshrl.u32 %v729, 7
          %v731 = vsub.s32 3, %v730
          %v732 = vrot.slane %v716, %v731
          %v733 = vlaneseq
          %v734 = vshrl.u32 %v733, 7
          %v735 = vsub.s32 4, %v734
          %v736 = vrot.slane %v716, %v735
          %v737 = vlaneseq
          %v738 = vshrl.u32 %v737, 7
          %v739 = vsub.s32 5, %v738
          %v740 = vrot.slane %v716, %v739
          %v741 = vlaneseq
          %v742 = vshrl.u32 %v741, 7
          %v743 = vsub.s32 6, %v742
          %v744 = vrot.slane %v716, %v743
          %v745 = vlaneseq
          %v746 = vshrl.u32 %v745, 7
          %v747 = vsub.s32 7, %v746
          %v748 = vrot.slane %v716, %v747
          %vm749 = vcmp.eq.s32.totalorder %v720, 1
          %vm750 = vcmp.eq.s32.totalorder %v724, 1
          %vm751 = vcmp.eq.s32.totalorder %v728, 1
          %vm752 = vcmp.eq.s32.totalorder %v732, 1
          %vm753 = vcmp.eq.s32.totalorder %v736, 1
          %vm754 = vcmp.eq.s32.totalorder %v740, 1
          %vm755 = vcmp.eq.s32.totalorder %v744, 1
          %vm756 = vcmp.eq.s32.totalorder %v748, 1
          %757 = vset.pattern.permute.xlu0 6
          %758 = vperm.xlu0 %757, %v342
          %v759 = vpop.permute.xlu0 %758
          %v761 = vsel %vm749, %v759, 0.0
          %v762 = vsel %vm750, %v759, 0.0
          %v763 = vsel %vm751, %v759, 0.0
          %v764 = vsel %vm752, %v759, 0.0
          %v765 = vsel %vm753, %v759, 0.0
          %v766 = vsel %vm754, %v759, 0.0
          %v767 = vsel %vm755, %v759, 0.0
          %v768 = vsel %vm756, %v759, 0.0
          %v769 = vadd.f32 %v707, %v761
          %v770 = vadd.f32 %v708, %v762
          %v771 = vadd.f32 %v709, %v763
          %v772 = vadd.f32 %v710, %v764
          %v773 = vadd.f32 %v711, %v765
          %v774 = vadd.f32 %v712, %v766
          %v775 = vadd.f32 %v713, %v767
          %v776 = vadd.f32 %v714, %v768
          %vm777 = vcmp.eq.s32.totalorder %v340, 7
          %v778 = vsel %vm777, 1, 0
          %v779 = vlaneseq
          %v780 = vshrl.u32 %v779, 7
          %v781 = vsub.s32 0, %v780
          %v782 = vrot.slane %v778, %v781
          %v783 = vlaneseq
          %v784 = vshrl.u32 %v783, 7
          %v785 = vsub.s32 1, %v784
          %v786 = vrot.slane %v778, %v785
          %v787 = vlaneseq
          %v788 = vshrl.u32 %v787, 7
          %v789 = vsub.s32 2, %v788
          %v790 = vrot.slane %v778, %v789
          %v791 = vlaneseq
          %v792 = vshrl.u32 %v791, 7
          %v793 = vsub.s32 3, %v792
          %v794 = vrot.slane %v778, %v793
          %v795 = vlaneseq
          %v796 = vshrl.u32 %v795, 7
          %v797 = vsub.s32 4, %v796
          %v798 = vrot.slane %v778, %v797
          %v799 = vlaneseq
          %v800 = vshrl.u32 %v799, 7
          %v801 = vsub.s32 5, %v800
          %v802 = vrot.slane %v778, %v801
          %v803 = vlaneseq
          %v804 = vshrl.u32 %v803, 7
          %v805 = vsub.s32 6, %v804
          %v806 = vrot.slane %v778, %v805
          %v807 = vlaneseq
          %v808 = vshrl.u32 %v807, 7
          %v809 = vsub.s32 7, %v808
          %v810 = vrot.slane %v778, %v809
          %vm811 = vcmp.eq.s32.totalorder %v782, 1
          %vm812 = vcmp.eq.s32.totalorder %v786, 1
          %vm813 = vcmp.eq.s32.totalorder %v790, 1
          %vm814 = vcmp.eq.s32.totalorder %v794, 1
          %vm815 = vcmp.eq.s32.totalorder %v798, 1
          %vm816 = vcmp.eq.s32.totalorder %v802, 1
          %vm817 = vcmp.eq.s32.totalorder %v806, 1
          %vm818 = vcmp.eq.s32.totalorder %v810, 1
          %819 = vset.pattern.permute.xlu0 7
          %820 = vperm.xlu0 %819, %v342
          %v821 = vpop.permute.xlu0 %820
          %v823 = vsel %vm811, %v821, 0.0
          %v824 = vsel %vm812, %v821, 0.0
          %v825 = vsel %vm813, %v821, 0.0
          %v826 = vsel %vm814, %v821, 0.0
          %v827 = vsel %vm815, %v821, 0.0
          %v828 = vsel %vm816, %v821, 0.0
          %v829 = vsel %vm817, %v821, 0.0
          %v830 = vsel %vm818, %v821, 0.0
          %v831 = vadd.f32 %v769, %v823
          %v832 = vadd.f32 %v770, %v824
          %v833 = vadd.f32 %v771, %v825
          %v834 = vadd.f32 %v772, %v826
          %v835 = vadd.f32 %v773, %v827
          %v836 = vadd.f32 %v774, %v828
          %v837 = vadd.f32 %v775, %v829
          %v838 = vadd.f32 %v776, %v830
          %839 = vst [vmem:[#allocation2] sm:$0xff] %v831
          %840 = vst [vmem:[#allocation2 + $0x8] sm:$0xff] %v832
          %841 = vst [vmem:[#allocation2 + $0x10] sm:$0xff] %v833
          %842 = vst [vmem:[#allocation2 + $0x18] sm:$0xff] %v834
          %843 = vst [vmem:[#allocation2 + $0x20] sm:$0xff] %v835
          %844 = vst [vmem:[#allocation2 + $0x28] sm:$0xff] %v836
          %845 = vst [vmem:[#allocation2 + $0x30] sm:$0xff] %v837
          %846 = vst [vmem:[#allocation2 + $0x38] sm:$0xff] %v838
        $region64: #{tpu_custom_call.1} parent=39 // pred_fallthru
          _
        %v847 = vld [vmem:[#allocation12] sm:$0xff]
        %v848 = vld [vmem:[#allocation12 + $0x8] sm:$0xff]
        %v849 = vld [vmem:[#allocation12 + $0x10] sm:$0xff]
        %v850 = vld [vmem:[#allocation12 + $0x18] sm:$0xff]
        %v851 = vld [vmem:[#allocation12 + $0x20] sm:$0xff]
        %v852 = vld [vmem:[#allocation12 + $0x28] sm:$0xff]
        %v853 = vld [vmem:[#allocation12 + $0x30] sm:$0xff]
        %v854 = vld [vmem:[#allocation12 + $0x38] sm:$0xff]
        %v855 = vld [vmem:[#allocation12 + $0x40] sm:$0xff]
        %v856 = vld [vmem:[#allocation12 + $0x48] sm:$0xff]
        %v857 = vld [vmem:[#allocation12 + $0x50] sm:$0xff]
        %v858 = vld [vmem:[#allocation12 + $0x58] sm:$0xff]
        %v859 = vld [vmem:[#allocation12 + $0x60] sm:$0xff]
        %v860 = vld [vmem:[#allocation12 + $0x68] sm:$0xff]
        %v861 = vld [vmem:[#allocation12 + $0x70] sm:$0xff]
        %v862 = vld [vmem:[#allocation12 + $0x78] sm:$0xff]
        %v863 = vld [vmem:[#allocation12 + $0x80] sm:$0xff]
        %v864 = vld [vmem:[#allocation12 + $0x88] sm:$0xff]
        %v865 = vld [vmem:[#allocation12 + $0x90] sm:$0xff]
        %v866 = vld [vmem:[#allocation12 + $0x98] sm:$0xff]
        %v867 = vld [vmem:[#allocation12 + $0xa0] sm:$0xff]
        %v868 = vld [vmem:[#allocation12 + $0xa8] sm:$0xff]
        %v869 = vld [vmem:[#allocation12 + $0xb0] sm:$0xff]
        %v870 = vld [vmem:[#allocation12 + $0xb8] sm:$0xff]
        %v871 = vld [vmem:[#allocation12 + $0xc0] sm:$0xff]
        %v872 = vld [vmem:[#allocation12 + $0xc8] sm:$0xff]
        %v873 = vld [vmem:[#allocation12 + $0xd0] sm:$0xff]
        %v874 = vld [vmem:[#allocation12 + $0xd8] sm:$0xff]
        %v875 = vld [vmem:[#allocation12 + $0xe0] sm:$0xff]
        %v876 = vld [vmem:[#allocation12 + $0xe8] sm:$0xff]
        %v877 = vld [vmem:[#allocation12 + $0xf0] sm:$0xff]
        %v878 = vld [vmem:[#allocation12 + $0xf8] sm:$0xff]
        %v879 = vld [vmem:[#allocation12 + $0x100] sm:$0xff]
        %v880 = vld [vmem:[#allocation12 + $0x108] sm:$0xff]
        %v881 = vld [vmem:[#allocation12 + $0x110] sm:$0xff]
        %v882 = vld [vmem:[#allocation12 + $0x118] sm:$0xff]
        %v883 = vld [vmem:[#allocation12 + $0x120] sm:$0xff]
        %v884 = vld [vmem:[#allocation12 + $0x128] sm:$0xff]
        %v885 = vld [vmem:[#allocation12 + $0x130] sm:$0xff]
        %v886 = vld [vmem:[#allocation12 + $0x138] sm:$0xff]
        %v887 = vld [vmem:[#allocation12 + $0x140] sm:$0xff]
        %v888 = vld [vmem:[#allocation12 + $0x148] sm:$0xff]
        %v889 = vld [vmem:[#allocation12 + $0x150] sm:$0xff]
        %v890 = vld [vmem:[#allocation12 + $0x158] sm:$0xff]
        %v891 = vld [vmem:[#allocation12 + $0x160] sm:$0xff]
        %v892 = vld [vmem:[#allocation12 + $0x168] sm:$0xff]
        %v893 = vld [vmem:[#allocation12 + $0x170] sm:$0xff]
        %v894 = vld [vmem:[#allocation12 + $0x178] sm:$0xff]
        %v895 = vld [vmem:[#allocation12 + $0x180] sm:$0xff]
        %v896 = vld [vmem:[#allocation12 + $0x188] sm:$0xff]
        %v897 = vld [vmem:[#allocation12 + $0x190] sm:$0xff]
        %v898 = vld [vmem:[#allocation12 + $0x198] sm:$0xff]
        %v899 = vld [vmem:[#allocation12 + $0x1a0] sm:$0xff]
        %v900 = vld [vmem:[#allocation12 + $0x1a8] sm:$0xff]
        %v901 = vld [vmem:[#allocation12 + $0x1b0] sm:$0xff]
        %v902 = vld [vmem:[#allocation12 + $0x1b8] sm:$0xff]
        %v903 = vld [vmem:[#allocation12 + $0x1c0] sm:$0xff]
        %v904 = vld [vmem:[#allocation12 + $0x1c8] sm:$0xff]
        %v905 = vld [vmem:[#allocation12 + $0x1d0] sm:$0xff]
        %v906 = vld [vmem:[#allocation12 + $0x1d8] sm:$0xff]
        %v907 = vld [vmem:[#allocation12 + $0x1e0] sm:$0xff]
        %v908 = vld [vmem:[#allocation12 + $0x1e8] sm:$0xff]
        %v909 = vld [vmem:[#allocation12 + $0x1f0] sm:$0xff]
        %v910 = vld [vmem:[#allocation12 + $0x1f8] sm:$0xff]
        %v911 = vld [vmem:[%s281] sm:$0xff]
        %v912 = vcvt.s32.f32 %v911
        %v913 = vpack.c.bf16 %v912, %v912
        %v978 = vunpack.c.l.b16 %v847
        %v979 = vunpack.c.h.b16 %v847
        %v980 = vunpack.c.l.b16 %v848
        %v981 = vunpack.c.h.b16 %v848
        %v982 = vunpack.c.l.b16 %v849
        %v983 = vunpack.c.h.b16 %v849
        %v984 = vunpack.c.l.b16 %v850
        %v985 = vunpack.c.h.b16 %v850
        %v986 = vunpack.c.l.b16 %v851
        %v987 = vunpack.c.h.b16 %v851
        %v988 = vunpack.c.l.b16 %v852
        %v989 = vunpack.c.h.b16 %v852
        %v990 = vunpack.c.l.b16 %v853
        %v991 = vunpack.c.h.b16 %v853
        %v992 = vunpack.c.l.b16 %v854
        %v993 = vunpack.c.h.b16 %v854
        %v994 = vunpack.c.l.b16 %v855
        %v995 = vunpack.c.h.b16 %v855
        %v996 = vunpack.c.l.b16 %v856
        %v997 = vunpack.c.h.b16 %v856
        %v998 = vunpack.c.l.b16 %v857
        %v999 = vunpack.c.h.b16 %v857
        %v1000 = vunpack.c.l.b16 %v858
        %v1001 = vunpack.c.h.b16 %v858
        %v1002 = vunpack.c.l.b16 %v859
        %v1003 = vunpack.c.h.b16 %v859
        %v1004 = vunpack.c.l.b16 %v860
        %v1005 = vunpack.c.h.b16 %v860
        %v1006 = vunpack.c.l.b16 %v861
        %v1007 = vunpack.c.h.b16 %v861
        %v1008 = vunpack.c.l.b16 %v862
        %v1009 = vunpack.c.h.b16 %v862
        %v1010 = vunpack.c.l.b16 %v863
        %v1011 = vunpack.c.h.b16 %v863
        %v1012 = vunpack.c.l.b16 %v864
        %v1013 = vunpack.c.h.b16 %v864
        %v1014 = vunpack.c.l.b16 %v865
        %v1015 = vunpack.c.h.b16 %v865
        %v1016 = vunpack.c.l.b16 %v866
        %v1017 = vunpack.c.h.b16 %v866
        %v1018 = vunpack.c.l.b16 %v867
        %v1019 = vunpack.c.h.b16 %v867
        %v1020 = vunpack.c.l.b16 %v868
        %v1021 = vunpack.c.h.b16 %v868
        %v1022 = vunpack.c.l.b16 %v869
        %v1023 = vunpack.c.h.b16 %v869
        %v1024 = vunpack.c.l.b16 %v870
        %v1025 = vunpack.c.h.b16 %v870
        %v1026 = vunpack.c.l.b16 %v871
        %v1027 = vunpack.c.h.b16 %v871
        %v1028 = vunpack.c.l.b16 %v872
        %v1029 = vunpack.c.h.b16 %v872
        %v1030 = vunpack.c.l.b16 %v873
        %v1031 = vunpack.c.h.b16 %v873
        %v1032 = vunpack.c.l.b16 %v874
        %v1033 = vunpack.c.h.b16 %v874
        %v1034 = vunpack.c.l.b16 %v875
        %v1035 = vunpack.c.h.b16 %v875
        %v1036 = vunpack.c.l.b16 %v876
        %v1037 = vunpack.c.h.b16 %v876
        %v1038 = vunpack.c.l.b16 %v877
        %v1039 = vunpack.c.h.b16 %v877
        %v1040 = vunpack.c.l.b16 %v878
        %v1041 = vunpack.c.h.b16 %v878
        %v1042 = vunpack.c.l.b16 %v879
        %v1043 = vunpack.c.h.b16 %v879
        %v1044 = vunpack.c.l.b16 %v880
        %v1045 = vunpack.c.h.b16 %v880
        %v1046 = vunpack.c.l.b16 %v881
        %v1047 = vunpack.c.h.b16 %v881
        %v1048 = vunpack.c.l.b16 %v882
        %v1049 = vunpack.c.h.b16 %v882
        %v1050 = vunpack.c.l.b16 %v883
        %v1051 = vunpack.c.h.b16 %v883
        %v1052 = vunpack.c.l.b16 %v884
        %v1053 = vunpack.c.h.b16 %v884
        %v1054 = vunpack.c.l.b16 %v885
        %v1055 = vunpack.c.h.b16 %v885
        %v1056 = vunpack.c.l.b16 %v886
        %v1057 = vunpack.c.h.b16 %v886
        %v1058 = vunpack.c.l.b16 %v887
        %v1059 = vunpack.c.h.b16 %v887
        %v1060 = vunpack.c.l.b16 %v888
        %v1061 = vunpack.c.h.b16 %v888
        %v1062 = vunpack.c.l.b16 %v889
        %v1063 = vunpack.c.h.b16 %v889
        %v1064 = vunpack.c.l.b16 %v890
        %v1065 = vunpack.c.h.b16 %v890
        %v1066 = vunpack.c.l.b16 %v891
        %v1067 = vunpack.c.h.b16 %v891
        %v1068 = vunpack.c.l.b16 %v892
        %v1069 = vunpack.c.h.b16 %v892
        %v1070 = vunpack.c.l.b16 %v893
        %v1071 = vunpack.c.h.b16 %v893
        %v1072 = vunpack.c.l.b16 %v894
        %v1073 = vunpack.c.h.b16 %v894
        %v1074 = vunpack.c.l.b16 %v895
        %v1075 = vunpack.c.h.b16 %v895
        %v1076 = vunpack.c.l.b16 %v896
        %v1077 = vunpack.c.h.b16 %v896
        %v1078 = vunpack.c.l.b16 %v897
        %v1079 = vunpack.c.h.b16 %v897
        %v1080 = vunpack.c.l.b16 %v898
        %v1081 = vunpack.c.h.b16 %v898
        %v1082 = vunpack.c.l.b16 %v899
        %v1083 = vunpack.c.h.b16 %v899
        %v1084 = vunpack.c.l.b16 %v900
        %v1085 = vunpack.c.h.b16 %v900
        %v1086 = vunpack.c.l.b16 %v901
        %v1087 = vunpack.c.h.b16 %v901
        %v1088 = vunpack.c.l.b16 %v902
        %v1089 = vunpack.c.h.b16 %v902
        %v1090 = vunpack.c.l.b16 %v903
        %v1091 = vunpack.c.h.b16 %v903
        %v1092 = vunpack.c.l.b16 %v904
        %v1093 = vunpack.c.h.b16 %v904
        %v1094 = vunpack.c.l.b16 %v905
        %v1095 = vunpack.c.h.b16 %v905
        %v1096 = vunpack.c.l.b16 %v906
        %v1097 = vunpack.c.h.b16 %v906
        %v1098 = vunpack.c.l.b16 %v907
        %v1099 = vunpack.c.h.b16 %v907
        %v1100 = vunpack.c.l.b16 %v908
        %v1101 = vunpack.c.h.b16 %v908
        %v1102 = vunpack.c.l.b16 %v909
        %v1103 = vunpack.c.h.b16 %v909
        %v1104 = vunpack.c.l.b16 %v910
        %v1105 = vunpack.c.h.b16 %v910
        %v1106 = vpack.c.b16 %v986, %v978
        %v1107 = vpack.c.b16 %v987, %v979
        %v1108 = vpack.c.b16 %v988, %v980
        %v1109 = vpack.c.b16 %v989, %v981
        %v1110 = vpack.c.b16 %v990, %v982
        %v1111 = vpack.c.b16 %v991, %v983
        %v1112 = vpack.c.b16 %v992, %v984
        %v1113 = vpack.c.b16 %v993, %v985
        %v1114 = vpack.c.b16 %v1002, %v994
        %v1115 = vpack.c.b16 %v1003, %v995
        %v1116 = vpack.c.b16 %v1004, %v996
        %v1117 = vpack.c.b16 %v1005, %v997
        %v1118 = vpack.c.b16 %v1006, %v998
        %v1119 = vpack.c.b16 %v1007, %v999
        %v1120 = vpack.c.b16 %v1008, %v1000
        %v1121 = vpack.c.b16 %v1009, %v1001
        %v1122 = vpack.c.b16 %v1018, %v1010
        %v1123 = vpack.c.b16 %v1019, %v1011
        %v1124 = vpack.c.b16 %v1020, %v1012
        %v1125 = vpack.c.b16 %v1021, %v1013
        %v1126 = vpack.c.b16 %v1022, %v1014
        %v1127 = vpack.c.b16 %v1023, %v1015
        %v1128 = vpack.c.b16 %v1024, %v1016
        %v1129 = vpack.c.b16 %v1025, %v1017
        %v1130 = vpack.c.b16 %v1034, %v1026
        %v1131 = vpack.c.b16 %v1035, %v1027
        %v1132 = vpack.c.b16 %v1036, %v1028
        %v1133 = vpack.c.b16 %v1037, %v1029
        %v1134 = vpack.c.b16 %v1038, %v1030
        %v1135 = vpack.c.b16 %v1039, %v1031
        %v1136 = vpack.c.b16 %v1040, %v1032
        %v1137 = vpack.c.b16 %v1041, %v1033
        %v1138 = vpack.c.b16 %v1050, %v1042
        %v1139 = vpack.c.b16 %v1051, %v1043
        %v1140 = vpack.c.b16 %v1052, %v1044
        %v1141 = vpack.c.b16 %v1053, %v1045
        %v1142 = vpack.c.b16 %v1054, %v1046
        %v1143 = vpack.c.b16 %v1055, %v1047
        %v1144 = vpack.c.b16 %v1056, %v1048
        %v1145 = vpack.c.b16 %v1057, %v1049
        %v1146 = vpack.c.b16 %v1066, %v1058
        %v1147 = vpack.c.b16 %v1067, %v1059
        %v1148 = vpack.c.b16 %v1068, %v1060
        %v1149 = vpack.c.b16 %v1069, %v1061
        %v1150 = vpack.c.b16 %v1070, %v1062
        %v1151 = vpack.c.b16 %v1071, %v1063
        %v1152 = vpack.c.b16 %v1072, %v1064
        %v1153 = vpack.c.b16 %v1073, %v1065
        %v1154 = vpack.c.b16 %v1082, %v1074
        %v1155 = vpack.c.b16 %v1083, %v1075
        %v1156 = vpack.c.b16 %v1084, %v1076
        %v1157 = vpack.c.b16 %v1085, %v1077
        %v1158 = vpack.c.b16 %v1086, %v1078
        %v1159 = vpack.c.b16 %v1087, %v1079
        %v1160 = vpack.c.b16 %v1088, %v1080
        %v1161 = vpack.c.b16 %v1089, %v1081
        %v1162 = vpack.c.b16 %v1098, %v1090
        %v1163 = vpack.c.b16 %v1099, %v1091
        %v1164 = vpack.c.b16 %v1100, %v1092
        %v1165 = vpack.c.b16 %v1101, %v1093
        %v1166 = vpack.c.b16 %v1102, %v1094
        %v1167 = vpack.c.b16 %v1103, %v1095
        %v1168 = vpack.c.b16 %v1104, %v1096
        %v1169 = vpack.c.b16 %v1105, %v1097
        %1234 = vmatprep.subr.bf16.mxu0 %v1163
        %1235 = vmatpush1.bf16.msra.mxu0 %v1162
        %1236 = vmatprep.subr.bf16.mxu0 %v1155
        %1237 = vmatpush1.bf16.msra.mxu0 %v1154
        %1238 = vmatprep.subr.bf16.mxu0 %v1147
        %1239 = vmatpush1.bf16.msra.mxu0 %v1146
        %1240 = vmatprep.subr.bf16.mxu0 %v1139
        %1241 = vmatpush1.bf16.msra.mxu0 %v1138
        %1242 = vmatprep.subr.bf16.mxu0 %v1131
        %1243 = vmatpush1.bf16.msra.mxu0 %v1130
        %1244 = vmatprep.subr.bf16.mxu0 %v1123
        %1245 = vmatpush1.bf16.msra.mxu0 %v1122
        %1246 = vmatprep.subr.bf16.mxu0 %v1115
        %1247 = vmatpush1.bf16.msra.mxu0 %v1114
        %1248 = vmatprep.subr.bf16.mxu0 %v1107
        %1249 = vmatpush1.bf16.msra.mxu0 %v1106
        %1250 = vmatprep.subr.bf16.mxu0 0
        %1251 = vmatpush2.bf16.msra.mxu0 0
        %1252 = vmatprep.subr.bf16.mxu0 0
        %1253 = vmatpush2.bf16.msra.mxu0 0
        %1254 = vmatprep.subr.bf16.mxu0 0
        %1255 = vmatpush2.bf16.msra.mxu0 0
        %1256 = vmatprep.subr.bf16.mxu0 0
        %1257 = vmatpush2.bf16.msra.mxu0 0
        %1258 = vmatprep.subr.bf16.mxu0 0
        %1259 = vmatpush2.bf16.msra.mxu0 0
        %1260 = vmatprep.subr.bf16.mxu0 0
        %1261 = vmatpush2.bf16.msra.mxu0 0
        %1262 = vmatprep.subr.bf16.mxu0 0
        %1263 = vmatpush2.bf16.msra.mxu0 0
        %1264 = vmatprep.subr.bf16.mxu0 0
        %1265 = vmatpush2.bf16.msra.mxu0 0
        %1266 = vmatprep.mubr.bf16.mxu0 0
        %1267 = vmatmul.mubr.bf16.gmra.mxu0 %v913
        %v1268 = vpop.f32.mrf.mxu0
        %v1269 = vadd.f32 0.0, %v1268
        %v1270 = vpop.f32.mrf.mxu0
        %v1271 = vadd.f32 0.0, %v1270
        %v1272 = vpop.f32.mrf.mxu0
        %v1273 = vpop.f32.mrf.mxu0
        %1274 = vdwg.mxu0
        %1275 = vmatprep.subr.bf16.mxu0 %v1165
        %1276 = vmatpush1.bf16.msra.mxu0 %v1164
        %1277 = vmatprep.subr.bf16.mxu0 %v1157
        %1278 = vmatpush1.bf16.msra.mxu0 %v1156
        %1279 = vmatprep.subr.bf16.mxu0 %v1149
        %1280 = vmatpush1.bf16.msra.mxu0 %v1148
        %1281 = vmatprep.subr.bf16.mxu0 %v1141
        %1282 = vmatpush1.bf16.msra.mxu0 %v1140
        %1283 = vmatprep.subr.bf16.mxu0 %v1133
        %1284 = vmatpush1.bf16.msra.mxu0 %v1132
        %1285 = vmatprep.subr.bf16.mxu0 %v1125
        %1286 = vmatpush1.bf16.msra.mxu0 %v1124
        %1287 = vmatprep.subr.bf16.mxu0 %v1117
        %1288 = vmatpush1.bf16.msra.mxu0 %v1116
        %1289 = vmatprep.subr.bf16.mxu0 %v1109
        %1290 = vmatpush1.bf16.msra.mxu0 %v1108
        %1291 = vmatprep.subr.bf16.mxu0 0
        %1292 = vmatpush2.bf16.msra.mxu0 0
        %1293 = vmatprep.subr.bf16.mxu0 0
        %1294 = vmatpush2.bf16.msra.mxu0 0
        %1295 = vmatprep.subr.bf16.mxu0 0
        %1296 = vmatpush2.bf16.msra.mxu0 0
        %1297 = vmatprep.subr.bf16.mxu0 0
        %1298 = vmatpush2.bf16.msra.mxu0 0
        %1299 = vmatprep.subr.bf16.mxu0 0
        %1300 = vmatpush2.bf16.msra.mxu0 0
        %1301 = vmatprep.subr.bf16.mxu0 0
        %1302 = vmatpush2.bf16.msra.mxu0 0
        %1303 = vmatprep.subr.bf16.mxu0 0
        %1304 = vmatpush2.bf16.msra.mxu0 0
        %1305 = vmatprep.subr.bf16.mxu0 0
        %1306 = vmatpush2.bf16.msra.mxu0 0
        %1307 = vmatprep.mubr.bf16.mxu0 0
        %1308 = vmatmul.mubr.bf16.gmra.mxu0 %v913
        %v1309 = vpop.f32.mrf.mxu0
        %v1310 = vadd.f32 0.0, %v1309
        %v1311 = vpop.f32.mrf.mxu0
        %v1312 = vadd.f32 0.0, %v1311
        %v1313 = vpop.f32.mrf.mxu0
        %v1314 = vpop.f32.mrf.mxu0
        %1315 = vdwg.mxu0
        %1316 = vmatprep.subr.bf16.mxu0 %v1167
        %1317 = vmatpush1.bf16.msra.mxu0 %v1166
        %1318 = vmatprep.subr.bf16.mxu0 %v1159
        %1319 = vmatpush1.bf16.msra.mxu0 %v1158
        %1320 = vmatprep.subr.bf16.mxu0 %v1151
        %1321 = vmatpush1.bf16.msra.mxu0 %v1150
        %1322 = vmatprep.subr.bf16.mxu0 %v1143
        %1323 = vmatpush1.bf16.msra.mxu0 %v1142
        %1324 = vmatprep.subr.bf16.mxu0 %v1135
        %1325 = vmatpush1.bf16.msra.mxu0 %v1134
        %1326 = vmatprep.subr.bf16.mxu0 %v1127
        %1327 = vmatpush1.bf16.msra.mxu0 %v1126
        %1328 = vmatprep.subr.bf16.mxu0 %v1119
        %1329 = vmatpush1.bf16.msra.mxu0 %v1118
        %1330 = vmatprep.subr.bf16.mxu0 %v1111
        %1331 = vmatpush1.bf16.msra.mxu0 %v1110
        %1332 = vmatprep.subr.bf16.mxu0 0
        %1333 = vmatpush2.bf16.msra.mxu0 0
        %1334 = vmatprep.subr.bf16.mxu0 0
        %1335 = vmatpush2.bf16.msra.mxu0 0
        %1336 = vmatprep.subr.bf16.mxu0 0
        %1337 = vmatpush2.bf16.msra.mxu0 0
        %1338 = vmatprep.subr.bf16.mxu0 0
        %1339 = vmatpush2.bf16.msra.mxu0 0
        %1340 = vmatprep.subr.bf16.mxu0 0
        %1341 = vmatpush2.bf16.msra.mxu0 0
        %1342 = vmatprep.subr.bf16.mxu0 0
        %1343 = vmatpush2.bf16.msra.mxu0 0
        %1344 = vmatprep.subr.bf16.mxu0 0
        %1345 = vmatpush2.bf16.msra.mxu0 0
        %1346 = vmatprep.subr.bf16.mxu0 0
        %1347 = vmatpush2.bf16.msra.mxu0 0
        %1348 = vmatprep.mubr.bf16.mxu0 0
        %1349 = vmatmul.mubr.bf16.gmra.mxu0 %v913
        %v1350 = vpop.f32.mrf.mxu0
        %v1351 = vadd.f32 0.0, %v1350
        %v1352 = vpop.f32.mrf.mxu0
        %v1353 = vadd.f32 0.0, %v1352
        %v1354 = vpop.f32.mrf.mxu0
        %v1355 = vpop.f32.mrf.mxu0
        %1356 = vdwg.mxu0
        %1357 = vmatprep.subr.bf16.mxu0 %v1169
        %1358 = vmatpush1.bf16.msra.mxu0 %v1168
        %1359 = vmatprep.subr.bf16.mxu0 %v1161
        %1360 = vmatpush1.bf16.msra.mxu0 %v1160
        %1361 = vmatprep.subr.bf16.mxu0 %v1153
        %1362 = vmatpush1.bf16.msra.mxu0 %v1152
        %1363 = vmatprep.subr.bf16.mxu0 %v1145
        %1364 = vmatpush1.bf16.msra.mxu0 %v1144
        %1365 = vmatprep.subr.bf16.mxu0 %v1137
        %1366 = vmatpush1.bf16.msra.mxu0 %v1136
        %1367 = vmatprep.subr.bf16.mxu0 %v1129
        %1368 = vmatpush1.bf16.msra.mxu0 %v1128
        %1369 = vmatprep.subr.bf16.mxu0 %v1121
        %1370 = vmatpush1.bf16.msra.mxu0 %v1120
        %1371 = vmatprep.subr.bf16.mxu0 %v1113
        %1372 = vmatpush1.bf16.msra.mxu0 %v1112
        %1373 = vmatprep.subr.bf16.mxu0 0
        %1374 = vmatpush2.bf16.msra.mxu0 0
        %1375 = vmatprep.subr.bf16.mxu0 0
        %1376 = vmatpush2.bf16.msra.mxu0 0
        %1377 = vmatprep.subr.bf16.mxu0 0
        %1378 = vmatpush2.bf16.msra.mxu0 0
        %1379 = vmatprep.subr.bf16.mxu0 0
        %1380 = vmatpush2.bf16.msra.mxu0 0
        %1381 = vmatprep.subr.bf16.mxu0 0
        %1382 = vmatpush2.bf16.msra.mxu0 0
        %1383 = vmatprep.subr.bf16.mxu0 0
        %1384 = vmatpush2.bf16.msra.mxu0 0
        %1385 = vmatprep.subr.bf16.mxu0 0
        %1386 = vmatpush2.bf16.msra.mxu0 0
        %1387 = vmatprep.subr.bf16.mxu0 0
        %1388 = vmatpush2.bf16.msra.mxu0 0
        %1389 = vmatprep.mubr.bf16.mxu0 0
        %1390 = vmatmul.mubr.bf16.gmra.mxu0 %v913
        %v1391 = vpop.f32.mrf.mxu0
        %v1392 = vadd.f32 0.0, %v1391
        %v1393 = vpop.f32.mrf.mxu0
        %v1394 = vadd.f32 0.0, %v1393
        %v1395 = vpop.f32.mrf.mxu0
        %v1396 = vpop.f32.mrf.mxu0
        %1397 = vdwg.mxu0
        %1398 = vst [vmem:[#allocation3] sm:$0xff] %v1269
        %1399 = vst [vmem:[#allocation3 + $0x8] sm:$0xff] %v1271
        %1400 = vst [vmem:[#allocation3 + $0x10] sm:$0xff] %v1310
        %1401 = vst [vmem:[#allocation3 + $0x18] sm:$0xff] %v1312
        %1402 = vst [vmem:[#allocation3 + $0x20] sm:$0xff] %v1351
        %1403 = vst [vmem:[#allocation3 + $0x28] sm:$0xff] %v1353
        %1404 = vst [vmem:[#allocation3 + $0x30] sm:$0xff] %v1392
        %1405 = vst [vmem:[#allocation3 + $0x38] sm:$0xff] %v1394
        %v1406 = vld [vmem:[#allocation2] sm:$0xff]
        %v1407 = vld [vmem:[#allocation2 + $0x8] sm:$0xff]
        %v1408 = vld [vmem:[#allocation2 + $0x10] sm:$0xff]
        %v1409 = vld [vmem:[#allocation2 + $0x18] sm:$0xff]
        %v1410 = vld [vmem:[#allocation2 + $0x20] sm:$0xff]
        %v1411 = vld [vmem:[#allocation2 + $0x28] sm:$0xff]
        %v1412 = vld [vmem:[#allocation2 + $0x30] sm:$0xff]
        %v1413 = vld [vmem:[#allocation2 + $0x38] sm:$0xff]
        %v1414 = vld [vmem:[#allocation3] sm:$0xff]
        %v1415 = vld [vmem:[#allocation3 + $0x8] sm:$0xff]
        %v1416 = vld [vmem:[#allocation3 + $0x10] sm:$0xff]
        %v1417 = vld [vmem:[#allocation3 + $0x18] sm:$0xff]
        %v1418 = vld [vmem:[#allocation3 + $0x20] sm:$0xff]
        %v1419 = vld [vmem:[#allocation3 + $0x28] sm:$0xff]
        %v1420 = vld [vmem:[#allocation3 + $0x30] sm:$0xff]
        %v1421 = vld [vmem:[#allocation3 + $0x38] sm:$0xff]
        %vm1422 = vcmp.eq.f32.partialorder %v1414, 0.0
        %vm1423 = vcmp.eq.f32.partialorder %v1415, 0.0
        %vm1424 = vcmp.eq.f32.partialorder %v1416, 0.0
        %vm1425 = vcmp.eq.f32.partialorder %v1417, 0.0
        %vm1426 = vcmp.eq.f32.partialorder %v1418, 0.0
        %vm1427 = vcmp.eq.f32.partialorder %v1419, 0.0
        %vm1428 = vcmp.eq.f32.partialorder %v1420, 0.0
        %vm1429 = vcmp.eq.f32.partialorder %v1421, 0.0
        %v1430 = vld [vmem:[#allocation10] ss:$8 sm:$0xf]
        %v1431 = vld [vmem:[#allocation10] ss:$8 sm:$0xf0]
        %v1432 = vor.u32 %v1430, %v1431
        %v1434 = vlaneseq
        %v1435 = vshrl.u32 %v1434, 7
        %v1436 = vsub.s32 0, %v1435
        %v1437 = vrot.slane %v1432, %v1436
        %v1438 = vlaneseq
        %v1439 = vshrl.u32 %v1438, 7
        %v1440 = vsub.s32 1, %v1439
        %v1441 = vrot.slane %v1432, %v1440
        %v1442 = vlaneseq
        %v1443 = vshrl.u32 %v1442, 7
        %v1444 = vsub.s32 2, %v1443
        %v1445 = vrot.slane %v1432, %v1444
        %v1446 = vlaneseq
        %v1447 = vshrl.u32 %v1446, 7
        %v1448 = vsub.s32 3, %v1447
        %v1449 = vrot.slane %v1432, %v1448
        %v1450 = vlaneseq
        %v1451 = vshrl.u32 %v1450, 7
        %v1452 = vsub.s32 4, %v1451
        %v1453 = vrot.slane %v1432, %v1452
        %v1454 = vlaneseq
        %v1455 = vshrl.u32 %v1454, 7
        %v1456 = vsub.s32 5, %v1455
        %v1457 = vrot.slane %v1432, %v1456
        %v1458 = vlaneseq
        %v1459 = vshrl.u32 %v1458, 7
        %v1460 = vsub.s32 6, %v1459
        %v1461 = vrot.slane %v1432, %v1460
        %v1462 = vlaneseq
        %v1463 = vshrl.u32 %v1462, 7
        %v1464 = vsub.s32 7, %v1463
        %v1465 = vrot.slane %v1432, %v1464
        %v1474 = vsel %vm1422, %v1437, 0.0
        %v1475 = vsel %vm1423, %v1441, 0.0
        %v1476 = vsel %vm1424, %v1445, 0.0
        %v1477 = vsel %vm1425, %v1449, 0.0
        %v1478 = vsel %vm1426, %v1453, 0.0
        %v1479 = vsel %vm1427, %v1457, 0.0
        %v1480 = vsel %vm1428, %v1461, 0.0
        %v1481 = vsel %vm1429, %v1465, 0.0
        %v1482 = vadd.f32 %v1406, %v1474
        %v1483 = vadd.f32 %v1407, %v1475
        %v1484 = vadd.f32 %v1408, %v1476
        %v1485 = vadd.f32 %v1409, %v1477
        %v1486 = vadd.f32 %v1410, %v1478
        %v1487 = vadd.f32 %v1411, %v1479
        %v1488 = vadd.f32 %v1412, %v1480
        %v1489 = vadd.f32 %v1413, %v1481
        %vm1490 = vcmp.eq.f32.partialorder %v1414, 1.0
        %vm1491 = vcmp.eq.f32.partialorder %v1415, 1.0
        %vm1492 = vcmp.eq.f32.partialorder %v1416, 1.0
        %vm1493 = vcmp.eq.f32.partialorder %v1417, 1.0
        %vm1494 = vcmp.eq.f32.partialorder %v1418, 1.0
        %vm1495 = vcmp.eq.f32.partialorder %v1419, 1.0
        %vm1496 = vcmp.eq.f32.partialorder %v1420, 1.0
        %vm1497 = vcmp.eq.f32.partialorder %v1421, 1.0
        %s1498 = scalar_lea.vmem [#allocation10], 1
        %v1499 = vld [vmem:[%s1498] ss:$8 sm:$0xf]
        %v1500 = vld [vmem:[%s1498] ss:$8 sm:$0xf0]
        %v1501 = vor.u32 %v1499, %v1500
        %v1503 = vlaneseq
        %v1504 = vshrl.u32 %v1503, 7
        %v1505 = vsub.s32 0, %v1504
        %v1506 = vrot.slane %v1501, %v1505
        %v1507 = vlaneseq
        %v1508 = vshrl.u32 %v1507, 7
        %v1509 = vsub.s32 1, %v1508
        %v1510 = vrot.slane %v1501, %v1509
        %v1511 = vlaneseq
        %v1512 = vshrl.u32 %v1511, 7
        %v1513 = vsub.s32 2, %v1512
        %v1514 = vrot.slane %v1501, %v1513
        %v1515 = vlaneseq
        %v1516 = vshrl.u32 %v1515, 7
        %v1517 = vsub.s32 3, %v1516
        %v1518 = vrot.slane %v1501, %v1517
        %v1519 = vlaneseq
        %v1520 = vshrl.u32 %v1519, 7
        %v1521 = vsub.s32 4, %v1520
        %v1522 = vrot.slane %v1501, %v1521
        %v1523 = vlaneseq
        %v1524 = vshrl.u32 %v1523, 7
        %v1525 = vsub.s32 5, %v1524
        %v1526 = vrot.slane %v1501, %v1525
        %v1527 = vlaneseq
        %v1528 = vshrl.u32 %v1527, 7
        %v1529 = vsub.s32 6, %v1528
        %v1530 = vrot.slane %v1501, %v1529
        %v1531 = vlaneseq
        %v1532 = vshrl.u32 %v1531, 7
        %v1533 = vsub.s32 7, %v1532
        %v1534 = vrot.slane %v1501, %v1533
        %v1543 = vsel %vm1490, %v1506, 0.0
        %v1544 = vsel %vm1491, %v1510, 0.0
        %v1545 = vsel %vm1492, %v1514, 0.0
        %v1546 = vsel %vm1493, %v1518, 0.0
        %v1547 = vsel %vm1494, %v1522, 0.0
        %v1548 = vsel %vm1495, %v1526, 0.0
        %v1549 = vsel %vm1496, %v1530, 0.0
        %v1550 = vsel %vm1497, %v1534, 0.0
        %v1551 = vadd.f32 %v1482, %v1543
        %v1552 = vadd.f32 %v1483, %v1544
        %v1553 = vadd.f32 %v1484, %v1545
        %v1554 = vadd.f32 %v1485, %v1546
        %v1555 = vadd.f32 %v1486, %v1547
        %v1556 = vadd.f32 %v1487, %v1548
        %v1557 = vadd.f32 %v1488, %v1549
        %v1558 = vadd.f32 %v1489, %v1550
        %vm1559 = vcmp.eq.f32.partialorder %v1414, 2.0
        %vm1560 = vcmp.eq.f32.partialorder %v1415, 2.0
        %vm1561 = vcmp.eq.f32.partialorder %v1416, 2.0
        %vm1562 = vcmp.eq.f32.partialorder %v1417, 2.0
        %vm1563 = vcmp.eq.f32.partialorder %v1418, 2.0
        %vm1564 = vcmp.eq.f32.partialorder %v1419, 2.0
        %vm1565 = vcmp.eq.f32.partialorder %v1420, 2.0
        %vm1566 = vcmp.eq.f32.partialorder %v1421, 2.0
        %s1567 = scalar_lea.vmem [#allocation10], 2
        %v1568 = vld [vmem:[%s1567] ss:$8 sm:$0xf]
        %v1569 = vld [vmem:[%s1567] ss:$8 sm:$0xf0]
        %v1570 = vor.u32 %v1568, %v1569
        %v1572 = vlaneseq
        %v1573 = vshrl.u32 %v1572, 7
        %v1574 = vsub.s32 0, %v1573
        %v1575 = vrot.slane %v1570, %v1574
        %v1576 = vlaneseq
        %v1577 = vshrl.u32 %v1576, 7
        %v1578 = vsub.s32 1, %v1577
        %v1579 = vrot.slane %v1570, %v1578
        %v1580 = vlaneseq
        %v1581 = vshrl.u32 %v1580, 7
        %v1582 = vsub.s32 2, %v1581
        %v1583 = vrot.slane %v1570, %v1582
        %v1584 = vlaneseq
        %v1585 = vshrl.u32 %v1584, 7
        %v1586 = vsub.s32 3, %v1585
        %v1587 = vrot.slane %v1570, %v1586
        %v1588 = vlaneseq
        %v1589 = vshrl.u32 %v1588, 7
        %v1590 = vsub.s32 4, %v1589
        %v1591 = vrot.slane %v1570, %v1590
        %v1592 = vlaneseq
        %v1593 = vshrl.u32 %v1592, 7
        %v1594 = vsub.s32 5, %v1593
        %v1595 = vrot.slane %v1570, %v1594
        %v1596 = vlaneseq
        %v1597 = vshrl.u32 %v1596, 7
        %v1598 = vsub.s32 6, %v1597
        %v1599 = vrot.slane %v1570, %v1598
        %v1600 = vlaneseq
        %v1601 = vshrl.u32 %v1600, 7
        %v1602 = vsub.s32 7, %v1601
        %v1603 = vrot.slane %v1570, %v1602
        %v1612 = vsel %vm1559, %v1575, 0.0
        %v1613 = vsel %vm1560, %v1579, 0.0
        %v1614 = vsel %vm1561, %v1583, 0.0
        %v1615 = vsel %vm1562, %v1587, 0.0
        %v1616 = vsel %vm1563, %v1591, 0.0
        %v1617 = vsel %vm1564, %v1595, 0.0
        %v1618 = vsel %vm1565, %v1599, 0.0
        %v1619 = vsel %vm1566, %v1603, 0.0
        %v1620 = vadd.f32 %v1551, %v1612
        %v1621 = vadd.f32 %v1552, %v1613
        %v1622 = vadd.f32 %v1553, %v1614
        %v1623 = vadd.f32 %v1554, %v1615
        %v1624 = vadd.f32 %v1555, %v1616
        %v1625 = vadd.f32 %v1556, %v1617
        %v1626 = vadd.f32 %v1557, %v1618
        %v1627 = vadd.f32 %v1558, %v1619
        %vm1628 = vcmp.eq.f32.partialorder %v1414, 3.0
        %vm1629 = vcmp.eq.f32.partialorder %v1415, 3.0
        %vm1630 = vcmp.eq.f32.partialorder %v1416, 3.0
        %vm1631 = vcmp.eq.f32.partialorder %v1417, 3.0
        %vm1632 = vcmp.eq.f32.partialorder %v1418, 3.0
        %vm1633 = vcmp.eq.f32.partialorder %v1419, 3.0
        %vm1634 = vcmp.eq.f32.partialorder %v1420, 3.0
        %vm1635 = vcmp.eq.f32.partialorder %v1421, 3.0
        %s1636 = scalar_lea.vmem [#allocation10], 3
        %v1637 = vld [vmem:[%s1636] ss:$8 sm:$0xf]
        %v1638 = vld [vmem:[%s1636] ss:$8 sm:$0xf0]
        %v1639 = vor.u32 %v1637, %v1638
        %v1641 = vlaneseq
        %v1642 = vshrl.u32 %v1641, 7
        %v1643 = vsub.s32 0, %v1642
        %v1644 = vrot.slane %v1639, %v1643
        %v1645 = vlaneseq
        %v1646 = vshrl.u32 %v1645, 7
        %v1647 = vsub.s32 1, %v1646
        %v1648 = vrot.slane %v1639, %v1647
        %v1649 = vlaneseq
        %v1650 = vshrl.u32 %v1649, 7
        %v1651 = vsub.s32 2, %v1650
        %v1652 = vrot.slane %v1639, %v1651
        %v1653 = vlaneseq
        %v1654 = vshrl.u32 %v1653, 7
        %v1655 = vsub.s32 3, %v1654
        %v1656 = vrot.slane %v1639, %v1655
        %v1657 = vlaneseq
        %v1658 = vshrl.u32 %v1657, 7
        %v1659 = vsub.s32 4, %v1658
        %v1660 = vrot.slane %v1639, %v1659
        %v1661 = vlaneseq
        %v1662 = vshrl.u32 %v1661, 7
        %v1663 = vsub.s32 5, %v1662
        %v1664 = vrot.slane %v1639, %v1663
        %v1665 = vlaneseq
        %v1666 = vshrl.u32 %v1665, 7
        %v1667 = vsub.s32 6, %v1666
        %v1668 = vrot.slane %v1639, %v1667
        %v1669 = vlaneseq
        %v1670 = vshrl.u32 %v1669, 7
        %v1671 = vsub.s32 7, %v1670
        %v1672 = vrot.slane %v1639, %v1671
        %v1681 = vsel %vm1628, %v1644, 0.0
        %v1682 = vsel %vm1629, %v1648, 0.0
        %v1683 = vsel %vm1630, %v1652, 0.0
        %v1684 = vsel %vm1631, %v1656, 0.0
        %v1685 = vsel %vm1632, %v1660, 0.0
        %v1686 = vsel %vm1633, %v1664, 0.0
        %v1687 = vsel %vm1634, %v1668, 0.0
        %v1688 = vsel %vm1635, %v1672, 0.0
        %v1689 = vadd.f32 %v1620, %v1681
        %v1690 = vadd.f32 %v1621, %v1682
        %v1691 = vadd.f32 %v1622, %v1683
        %v1692 = vadd.f32 %v1623, %v1684
        %v1693 = vadd.f32 %v1624, %v1685
        %v1694 = vadd.f32 %v1625, %v1686
        %v1695 = vadd.f32 %v1626, %v1687
        %v1696 = vadd.f32 %v1627, %v1688
        %vm1697 = vcmp.eq.f32.partialorder %v1414, 4.0
        %vm1698 = vcmp.eq.f32.partialorder %v1415, 4.0
        %vm1699 = vcmp.eq.f32.partialorder %v1416, 4.0
        %vm1700 = vcmp.eq.f32.partialorder %v1417, 4.0
        %vm1701 = vcmp.eq.f32.partialorder %v1418, 4.0
        %vm1702 = vcmp.eq.f32.partialorder %v1419, 4.0
        %vm1703 = vcmp.eq.f32.partialorder %v1420, 4.0
        %vm1704 = vcmp.eq.f32.partialorder %v1421, 4.0
        %s1705 = scalar_lea.vmem [#allocation10], 4
        %v1706 = vld [vmem:[%s1705] ss:$8 sm:$0xf]
        %v1707 = vld [vmem:[%s1705] ss:$8 sm:$0xf0]
        %v1708 = vor.u32 %v1706, %v1707
        %v1710 = vlaneseq
        %v1711 = vshrl.u32 %v1710, 7
        %v1712 = vsub.s32 0, %v1711
        %v1713 = vrot.slane %v1708, %v1712
        %v1714 = vlaneseq
        %v1715 = vshrl.u32 %v1714, 7
        %v1716 = vsub.s32 1, %v1715
        %v1717 = vrot.slane %v1708, %v1716
        %v1718 = vlaneseq
        %v1719 = vshrl.u32 %v1718, 7
        %v1720 = vsub.s32 2, %v1719
        %v1721 = vrot.slane %v1708, %v1720
        %v1722 = vlaneseq
        %v1723 = vshrl.u32 %v1722, 7
        %v1724 = vsub.s32 3, %v1723
        %v1725 = vrot.slane %v1708, %v1724
        %v1726 = vlaneseq
        %v1727 = vshrl.u32 %v1726, 7
        %v1728 = vsub.s32 4, %v1727
        %v1729 = vrot.slane %v1708, %v1728
        %v1730 = vlaneseq
        %v1731 = vshrl.u32 %v1730, 7
        %v1732 = vsub.s32 5, %v1731
        %v1733 = vrot.slane %v1708, %v1732
        %v1734 = vlaneseq
        %v1735 = vshrl.u32 %v1734, 7
        %v1736 = vsub.s32 6, %v1735
        %v1737 = vrot.slane %v1708, %v1736
        %v1738 = vlaneseq
        %v1739 = vshrl.u32 %v1738, 7
        %v1740 = vsub.s32 7, %v1739
        %v1741 = vrot.slane %v1708, %v1740
        %v1750 = vsel %vm1697, %v1713, 0.0
        %v1751 = vsel %vm1698, %v1717, 0.0
        %v1752 = vsel %vm1699, %v1721, 0.0
        %v1753 = vsel %vm1700, %v1725, 0.0
        %v1754 = vsel %vm1701, %v1729, 0.0
        %v1755 = vsel %vm1702, %v1733, 0.0
        %v1756 = vsel %vm1703, %v1737, 0.0
        %v1757 = vsel %vm1704, %v1741, 0.0
        %v1758 = vadd.f32 %v1689, %v1750
        %v1759 = vadd.f32 %v1690, %v1751
        %v1760 = vadd.f32 %v1691, %v1752
        %v1761 = vadd.f32 %v1692, %v1753
        %v1762 = vadd.f32 %v1693, %v1754
        %v1763 = vadd.f32 %v1694, %v1755
        %v1764 = vadd.f32 %v1695, %v1756
        %v1765 = vadd.f32 %v1696, %v1757
        %vm1766 = vcmp.eq.f32.partialorder %v1414, 5.0
        %vm1767 = vcmp.eq.f32.partialorder %v1415, 5.0
        %vm1768 = vcmp.eq.f32.partialorder %v1416, 5.0
        %vm1769 = vcmp.eq.f32.partialorder %v1417, 5.0
        %vm1770 = vcmp.eq.f32.partialorder %v1418, 5.0
        %vm1771 = vcmp.eq.f32.partialorder %v1419, 5.0
        %vm1772 = vcmp.eq.f32.partialorder %v1420, 5.0
        %vm1773 = vcmp.eq.f32.partialorder %v1421, 5.0
        %s1774 = scalar_lea.vmem [#allocation10], 5
        %v1775 = vld [vmem:[%s1774] ss:$8 sm:$0xf]
        %v1776 = vld [vmem:[%s1774] ss:$8 sm:$0xf0]
        %v1777 = vor.u32 %v1775, %v1776
        %v1779 = vlaneseq
        %v1780 = vshrl.u32 %v1779, 7
        %v1781 = vsub.s32 0, %v1780
        %v1782 = vrot.slane %v1777, %v1781
        %v1783 = vlaneseq
        %v1784 = vshrl.u32 %v1783, 7
        %v1785 = vsub.s32 1, %v1784
        %v1786 = vrot.slane %v1777, %v1785
        %v1787 = vlaneseq
        %v1788 = vshrl.u32 %v1787, 7
        %v1789 = vsub.s32 2, %v1788
        %v1790 = vrot.slane %v1777, %v1789
        %v1791 = vlaneseq
        %v1792 = vshrl.u32 %v1791, 7
        %v1793 = vsub.s32 3, %v1792
        %v1794 = vrot.slane %v1777, %v1793
        %v1795 = vlaneseq
        %v1796 = vshrl.u32 %v1795, 7
        %v1797 = vsub.s32 4, %v1796
        %v1798 = vrot.slane %v1777, %v1797
        %v1799 = vlaneseq
        %v1800 = vshrl.u32 %v1799, 7
        %v1801 = vsub.s32 5, %v1800
        %v1802 = vrot.slane %v1777, %v1801
        %v1803 = vlaneseq
        %v1804 = vshrl.u32 %v1803, 7
        %v1805 = vsub.s32 6, %v1804
        %v1806 = vrot.slane %v1777, %v1805
        %v1807 = vlaneseq
        %v1808 = vshrl.u32 %v1807, 7
        %v1809 = vsub.s32 7, %v1808
        %v1810 = vrot.slane %v1777, %v1809
        %v1819 = vsel %vm1766, %v1782, 0.0
        %v1820 = vsel %vm1767, %v1786, 0.0
        %v1821 = vsel %vm1768, %v1790, 0.0
        %v1822 = vsel %vm1769, %v1794, 0.0
        %v1823 = vsel %vm1770, %v1798, 0.0
        %v1824 = vsel %vm1771, %v1802, 0.0
        %v1825 = vsel %vm1772, %v1806, 0.0
        %v1826 = vsel %vm1773, %v1810, 0.0
        %v1827 = vadd.f32 %v1758, %v1819
        %v1828 = vadd.f32 %v1759, %v1820
        %v1829 = vadd.f32 %v1760, %v1821
        %v1830 = vadd.f32 %v1761, %v1822
        %v1831 = vadd.f32 %v1762, %v1823
        %v1832 = vadd.f32 %v1763, %v1824
        %v1833 = vadd.f32 %v1764, %v1825
        %v1834 = vadd.f32 %v1765, %v1826
        %vm1835 = vcmp.eq.f32.partialorder %v1414, 6.0
        %vm1836 = vcmp.eq.f32.partialorder %v1415, 6.0
        %vm1837 = vcmp.eq.f32.partialorder %v1416, 6.0
        %vm1838 = vcmp.eq.f32.partialorder %v1417, 6.0
        %vm1839 = vcmp.eq.f32.partialorder %v1418, 6.0
        %vm1840 = vcmp.eq.f32.partialorder %v1419, 6.0
        %vm1841 = vcmp.eq.f32.partialorder %v1420, 6.0
        %vm1842 = vcmp.eq.f32.partialorder %v1421, 6.0
        %s1843 = scalar_lea.vmem [#allocation10], 6
        %v1844 = vld [vmem:[%s1843] ss:$8 sm:$0xf]
        %v1845 = vld [vmem:[%s1843] ss:$8 sm:$0xf0]
        %v1846 = vor.u32 %v1844, %v1845
        %v1848 = vlaneseq
        %v1849 = vshrl.u32 %v1848, 7
        %v1850 = vsub.s32 0, %v1849
        %v1851 = vrot.slane %v1846, %v1850
        %v1852 = vlaneseq
        %v1853 = vshrl.u32 %v1852, 7
        %v1854 = vsub.s32 1, %v1853
        %v1855 = vrot.slane %v1846, %v1854
        %v1856 = vlaneseq
        %v1857 = vshrl.u32 %v1856, 7
        %v1858 = vsub.s32 2, %v1857
        %v1859 = vrot.slane %v1846, %v1858
        %v1860 = vlaneseq
        %v1861 = vshrl.u32 %v1860, 7
        %v1862 = vsub.s32 3, %v1861
        %v1863 = vrot.slane %v1846, %v1862
        %v1864 = vlaneseq
        %v1865 = vshrl.u32 %v1864, 7
        %v1866 = vsub.s32 4, %v1865
        %v1867 = vrot.slane %v1846, %v1866
        %v1868 = vlaneseq
        %v1869 = vshrl.u32 %v1868, 7
        %v1870 = vsub.s32 5, %v1869
        %v1871 = vrot.slane %v1846, %v1870
        %v1872 = vlaneseq
        %v1873 = vshrl.u32 %v1872, 7
        %v1874 = vsub.s32 6, %v1873
        %v1875 = vrot.slane %v1846, %v1874
        %v1876 = vlaneseq
        %v1877 = vshrl.u32 %v1876, 7
        %v1878 = vsub.s32 7, %v1877
        %v1879 = vrot.slane %v1846, %v1878
        %v1888 = vsel %vm1835, %v1851, 0.0
        %v1889 = vsel %vm1836, %v1855, 0.0
        %v1890 = vsel %vm1837, %v1859, 0.0
        %v1891 = vsel %vm1838, %v1863, 0.0
        %v1892 = vsel %vm1839, %v1867, 0.0
        %v1893 = vsel %vm1840, %v1871, 0.0
        %v1894 = vsel %vm1841, %v1875, 0.0
        %v1895 = vsel %vm1842, %v1879, 0.0
        %v1896 = vadd.f32 %v1827, %v1888
        %v1897 = vadd.f32 %v1828, %v1889
        %v1898 = vadd.f32 %v1829, %v1890
        %v1899 = vadd.f32 %v1830, %v1891
        %v1900 = vadd.f32 %v1831, %v1892
        %v1901 = vadd.f32 %v1832, %v1893
        %v1902 = vadd.f32 %v1833, %v1894
        %v1903 = vadd.f32 %v1834, %v1895
        %1904 = vst [vmem:[%s333] sm:$0xff] %v1896
        %1905 = vst [vmem:[%s333 + $0x8] sm:$0xff] %v1897
        %1906 = vst [vmem:[%s333 + $0x10] sm:$0xff] %v1898
        %1907 = vst [vmem:[%s333 + $0x18] sm:$0xff] %v1899
        %1908 = vst [vmem:[%s333 + $0x20] sm:$0xff] %v1900
        %1909 = vst [vmem:[%s333 + $0x28] sm:$0xff] %v1901
        %1910 = vst [vmem:[%s333 + $0x30] sm:$0xff] %v1902
        %1911 = vst [vmem:[%s333 + $0x38] sm:$0xff] %v1903
        %s1912 = sand.u32 %s165, 1
        %s1913 = scalar_lea.sflag [#allocation6], %s1912
        %s1914 = sand.u32 %s165, 1
        %s1915 = smul.addr %s1914, 64
        %s1916 = scalar_lea.vmem [#allocation13], %s1915
        // Predicated region
        $region65: #{tpu_custom_call.1} parent=39 // pred_check
          %p1917 = pneg %p175
        $region66: #{tpu_custom_call.1} parent=39 // pred_check_branch
          %1919 = sbr.rel (%p1917) target = $region68
        $region67: #{tpu_custom_call.1} parent=39 // pred_region
          %s1920 = smul.u32 8, %s31
          %s1922 = ssub.s32 1024, 1024
          %1923 = vsyncadd %s1913, %s1922
          %s1924 = smul.addr %s30, 32
          %s1925 = sadd.s32 %s1920, %s1924
          %s1926 = smul.addr %s1925, 128
          %s1927 = scalar_lea.hbm %s5, %s1926
          %s1929 = sshll.u32 %s1916, 4
          %s1930 = int_to_ptr.vmem [resolvable:$true] %s1929
          %1932 = dma.vmem_to_hbm [thread:$0]  %s1930, 1024, %s1927, %s1913
        $region68: #{tpu_custom_call.1} parent=39 // pred_fallthru
          _
      $region40: #{tpu_custom_call.1} parent=5 // pred_fallthru
        _
      %p1933 = scmp.le.s32.totalorder 2, %s21
      // Predicated region
      $region69: #{tpu_custom_call.1} parent=5 // pred_check
        %p1934 = pneg %p1933
      $region70: #{tpu_custom_call.1} parent=5 // pred_check_branch
        %1936 = sbr.rel (%p1934) target = $region72
      $region71: #{tpu_custom_call.1} parent=5 // pred_region
        %s1937 = ssub.s32 %s21, 2
        // Predicated region
        $region73: #{tpu_custom_call.1} parent=71 // pred_check
          %p1938 = pneg %p181
        $region74: #{tpu_custom_call.1} parent=71 // pred_check_branch
          %1940 = sbr.rel (%p1938) target = $region76
        $region75: #{tpu_custom_call.1} parent=71 // pred_region
          %s1941 = sand.u32 %s166, 1
          %s1942 = scalar_lea.sflag [#allocation6], %s1941
          %s1943 = sand.u32 %s166, 1
          %s1944 = smul.addr %s1943, 64
          %s1945 = scalar_lea.vmem [#allocation13], %s1944
          %1946 = dma.done %s1942, 1024
        $region76: #{tpu_custom_call.1} parent=71 // pred_fallthru
          _
      $region72: #{tpu_custom_call.1} parent=5 // pred_fallthru
        _
    $region6: #{tpu_custom_call.1} parent=1 // loop_footer
      %s25 = sadd.s32 1, %s21
    $region7: #{tpu_custom_call.1} parent=1 // loop_footer_branch
      %20 = sbr.rel target = $region3
    $region8: #{tpu_custom_call.1} parent=1 // loop_exit
      _
    %1947 = vsyncpa [#allocation5], 1
    %s1948 = scalar_lea.sflag [#allocation5], 1
    %1949 = vsyncpa %s1948, 1
    %1950 = vsyncpa [#allocation8], 1
    %s1951 = scalar_lea.sflag [#allocation8], 1
    %1952 = vsyncpa %s1951, 1
    %1953 = vsyncpa [#allocation11], 1
    %1954 = vsyncpa [#allocation6], 1
    %s1955 = scalar_lea.sflag [#allocation6], 1
    %1956 = vsyncpa %s1955, 1

// kernel: tpu_custom_call.1
$region0: #{tpu_custom_call.1}
  #allocation0 [shape = 'u32[]', space=smem, size = 0x4, offset = 0x4, fixed_abs, tag = 'smem constant byte address 0x4 - core index']
  #allocation1 [shape = 'u32[144,128]{1,0:T(1,128)}', space=vmem, size = 0x12000, scoped, tag = 'internal scratch']
  #allocation2 [shape = 'f32[1,8,1024]{2,1,0:T(8,128)}', space=vmem, size = 0x8000, scoped, tag = 'scratch operand']
  #allocation3 [shape = 'f32[1,8,1024]{2,1,0:T(8,128)}', space=vmem, size = 0x8000, scoped, tag = 'scratch operand']
  %s0 = inlined_call_operand.hbm [shape: s32[4,8,512], index: 0, kind: input, shape index: {}]
  %s1 = inlined_call_operand.hbm [shape: f32[4,8,8], index: 1, kind: input, shape index: {}]
  %s2 = inlined_call_operand.hbm [shape: s32[1,1024], index: 2, kind: input, shape index: {}]
  %s3 = inlined_call_operand.hbm [shape: f32[7,1024], index: 3, kind: input, shape index: {}]
  %s4 = inlined_call_operand.hbm [shape: bf16[128,1024], index: 4, kind: input, shape index: {}]
  %s5 = inlined_call_operand.hbm [shape: f32[4,8,4096], index: 5, kind: output, shape index: {}]
  %s6 = sld [smem:[#allocation0]]
  $region77: #{tpu_custom_call.1} parent=0
    _
  %s8 = ssub.s32 1, %s6
  %s9 = scalar_select 0, %s8, %s6
  $region1: #{tpu_custom_call.1} parent=0
    #allocation4 [shape = 'u8[8192]{0}', space=vmem, size = 0x2000, scoped, tag = 'input window, operand 0']
    #allocation5 [shape = 's32[2]{0}', space=sflag, size = 0x8, scoped, tag = 'scoped memory for tpu_custom_call.1']
    #allocation6 [shape = 's32[2]{0}', space=sflag, size = 0x8, scoped, tag = 'scoped memory for tpu_custom_call.1']
    #allocation7 [shape = 'u8[8192]{0}', space=vmem, size = 0x2000, scoped, tag = 'input window, operand 1']
    #allocation8 [shape = 's32[2]{0}', space=sflag, size = 0x8, scoped, tag = 'scoped memory for tpu_custom_call.1']
    #allocation9 [shape = 'u8[4096]{0}', space=vmem, size = 0x1000, scoped, tag = 'input window, operand 2, single buffered']
    #allocation10 [shape = 'u8[32768]{0}', space=vmem, size = 0x8000, scoped, tag = 'input window, operand 3, single buffered']
    #allocation11 [shape = 's32[1]{0}', space=sflag, size = 0x4, scoped, tag = 'scoped memory for tpu_custom_call.1']
    #allocation12 [shape = 'u8[262144]{0}', space=vmem, size = 0x40000, scoped, tag = 'input window, operand 4, single buffered']
    #allocation13 [shape = 'u8[65536]{0}', space=vmem, size = 0x10000, scoped, tag = 'output window, operand 0']
    %10 = vsyncpa [#allocation5], 0
    %s11 = scalar_lea.sflag [#allocation5], 1
    %12 = vsyncpa %s11, 0
    %13 = vsyncpa [#allocation8], 0
    %s14 = scalar_lea.sflag [#allocation8], 1
    %15 = vsyncpa %s14, 0
    %16 = vsyncpa [#allocation11], 0
    %17 = vsyncpa [#allocation6], 0
    %s18 = scalar_lea.sflag [#allocation6], 1
    %19 = vsyncpa %s18, 0
    loop: start=0, step=1, limit=18
    $region2: #{tpu_custom_call.1} parent=1 // loop_pre_header
      _
    $region3: #{tpu_custom_call.1} parent=1 // loop_header
      %s21 = sphi 0, %s25
      %p22 = scmp.ge.s32.totalorder %s21, 18
      %s28 = sphi 0, %s40
      %s29 = sphi 0, %s36
      %s30 = sphi 0, %s28
      %s31 = sphi 0, %s29
      %s32 = sphi 0, %s30
      %s33 = sphi 0, %s31
      %s45 = sphi 0, %s47
      %s48 = sphi 0, %s45
      %s49 = sphi 0, %s48
      %s65 = sphi 0, %s49
      %s71 = sphi 0, %s73
      %s74 = sphi 0, %s71
      %s75 = sphi 0, %s74
      %s91 = sphi 0, %s75
      %s95 = sphi 0, %s95
      %s97 = sphi 0, %s95
      %s98 = sphi 0, %s97
      %s112 = sphi 0, %s98
      %s116 = sphi 0, %s116
      %s118 = sphi 0, %s116
      %s119 = sphi 0, %s118
      %s133 = sphi 0, %s119
      %s137 = sphi 0, %s137
      %s139 = sphi 0, %s137
      %s140 = sphi 0, %s139
      %s154 = sphi 0, %s140
      %s162 = sphi 0, %s164
      %s165 = sphi 0, %s162
      %s166 = sphi 0, %s165
      %s182 = sphi 0, %s166
    $region4: #{tpu_custom_call.1} parent=1 // loop_header_branch
      %24 = sbr.rel (%p22) target = $region8
    $region5: #{tpu_custom_call.1} parent=1 // loop_body
      %s26 = ssub.s32 %s21, 1
      %s27 = ssub.s32 %s21, 2
      %s34 = sadd.s32 1, %s29
      %p35 = scmp.ge.s32.totalorder %s34, 4
      %s36 = scalar_select %p35, 0, %s34
      %s37 = sadd.s32 1, %s28
      %s38 = scalar_select %p35, %s37, %s28
      %p39 = scmp.ge.s32.totalorder %s38, 4
      %s40 = scalar_select %p39, 0, %s38
      %s41 = ssub.s32 %s28, %s40
      %s42 = ssub.s32 %s29, %s36
      %s43 = sor.u32 %s41, %s42
      %p44 = scmp.eq.s32.totalorder %s43, 0
      %s46 = sadd.s32 %s45, 1
      %s47 = scalar_select %p44, %s45, %s46
      %p50 = pneg %p44
      %p51 = scmp.eq.s32.totalorder %s21, 15
      %p52 = por %p50, %p51
      %p53 = scmp.ne.s32.totalorder %s45, %s48
      %p54 = scmp.eq.s32.totalorder %s21, 0
      %p55 = por %p53, %p54
      %p56 = scmp.ne.s32.totalorder %s45, %s48
      %p57 = scmp.eq.s32.totalorder %s26, 15
      %p58 = por %p56, %p57
      %p59 = scmp.ne.s32.totalorder %s48, %s49
      %p60 = scmp.eq.s32.totalorder %s26, 0
      %p61 = por %p59, %p60
      %p62 = scmp.ne.s32.totalorder %s48, %s49
      %p63 = scmp.eq.s32.totalorder %s27, 15
      %p64 = por %p62, %p63
      %p66 = scmp.ne.s32.totalorder %s49, %s65
      %p67 = scmp.eq.s32.totalorder %s27, 0
      %p68 = por %p66, %p67
      %s69 = ssub.s32 %s28, %s40
      %p70 = scmp.eq.s32.totalorder %s69, 0
      %s72 = sadd.s32 %s71, 1
      %s73 = scalar_select %p70, %s71, %s72
      %p76 = pneg %p70
      %p77 = scmp.eq.s32.totalorder %s21, 15
      %p78 = por %p76, %p77
      %p79 = scmp.ne.s32.totalorder %s71, %s74
      %p80 = scmp.eq.s32.totalorder %s21, 0
      %p81 = por %p79, %p80
      %p82 = scmp.ne.s32.totalorder %s71, %s74
      %p83 = scmp.eq.s32.totalorder %s26, 15
      %p84 = por %p82, %p83
      %p85 = scmp.ne.s32.totalorder %s74, %s75
      %p86 = scmp.eq.s32.totalorder %s26, 0
      %p87 = por %p85, %p86
      %p88 = scmp.ne.s32.totalorder %s74, %s75
      %p89 = scmp.eq.s32.totalorder %s27, 15
      %p90 = por %p88, %p89
      %p92 = scmp.ne.s32.totalorder %s75, %s91
      %p93 = scmp.eq.s32.totalorder %s27, 0
      %p94 = por %p92, %p93
      %s96 = sadd.s32 %s95, 1
      %p99 = scmp.eq.s32.totalorder %s21, 15
      %p100 = scmp.ne.s32.totalorder %s95, %s97
      %p101 = scmp.eq.s32.totalorder %s21, 0
      %p102 = por %p100, %p101
      %p103 = scmp.ne.s32.totalorder %s95, %s97
      %p104 = scmp.eq.s32.totalorder %s26, 15
      %p105 = por %p103, %p104
      %p106 = scmp.ne.s32.totalorder %s97, %s98
      %p107 = scmp.eq.s32.totalorder %s26, 0
      %p108 = por %p106, %p107
      %p109 = scmp.ne.s32.totalorder %s97, %s98
      %p110 = scmp.eq.s32.totalorder %s27, 15
      %p111 = por %p109, %p110
      %p113 = scmp.ne.s32.totalorder %s98, %s112
      %p114 = scmp.eq.s32.totalorder %s27, 0
      %p115 = por %p113, %p114
      %s117 = sadd.s32 %s116, 1
      %p120 = scmp.eq.s32.totalorder %s21, 15
      %p121 = scmp.ne.s32.totalorder %s116, %s118
      %p122 = scmp.eq.s32.totalorder %s21, 0
      %p123 = por %p121, %p122
      %p124 = scmp.ne.s32.totalorder %s116, %s118
      %p125 = scmp.eq.s32.totalorder %s26, 15
      %p126 = por %p124, %p125
      %p127 = scmp.ne.s32.totalorder %s118, %s119
      %p128 = scmp.eq.s32.totalorder %s26, 0
      %p129 = por %p127, %p128
      %p130 = scmp.ne.s32.totalorder %s118, %s119
      %p131 = scmp.eq.s32.totalorder %s27, 15
      %p132 = por %p130, %p131
      %p134 = scmp.ne.s32.totalorder %s119, %s133
      %p135 = scmp.eq.s32.totalorder %s27, 0
      %p136 = por %p134, %p135
      %s138 = sadd.s32 %s137, 1
      %p141 = scmp.eq.s32.totalorder %s21, 15
      %p142 = scmp.ne.s32.totalorder %s137, %s139
      %p143 = scmp.eq.s32.totalorder %s21, 0
      %p144 = por %p142, %p143
      %p145 = scmp.ne.s32.totalorder %s137, %s139
      %p146 = scmp.eq.s32.totalorder %s26, 15
      %p147 = por %p145, %p146
      %p148 = scmp.ne.s32.totalorder %s139, %s140
      %p149 = scmp.eq.s32.totalorder %s26, 0
      %p150 = por %p148, %p149
      %p151 = scmp.ne.s32.totalorder %s139, %s140
      %p152 = scmp.eq.s32.totalorder %s27, 15
      %p153 = por %p151, %p152
      %p155 = scmp.ne.s32.totalorder %s140, %s154
      %p156 = scmp.eq.s32.totalorder %s27, 0
      %p157 = por %p155, %p156
      %s158 = ssub.s32 %s28, %s40
      %s159 = ssub.s32 %s29, %s36
      %s160 = sor.u32 %s158, %s159
      %p161 = scmp.eq.s32.totalorder %s160, 0
      %s163 = sadd.s32 %s162, 1
      %s164 = scalar_select %p161, %s162, %s163
      %p167 = pneg %p161
      %p168 = scmp.eq.s32.totalorder %s21, 15
      %p169 = por %p167, %p168
      %p170 = scmp.ne.s32.totalorder %s162, %s165
      %p171 = scmp.eq.s32.totalorder %s21, 0
      %p172 = por %p170, %p171
      %p173 = scmp.ne.s32.totalorder %s162, %s165
      %p174 = scmp.eq.s32.totalorder %s26, 15
      %p175 = por %p173, %p174
      %p176 = scmp.ne.s32.totalorder %s165, %s166
      %p177 = scmp.eq.s32.totalorder %s26, 0
      %p178 = por %p176, %p177
      %p179 = scmp.ne.s32.totalorder %s165, %s166
      %p180 = scmp.eq.s32.totalorder %s27, 15
      %p181 = por %p179, %p180
      %p183 = scmp.ne.s32.totalorder %s166, %s182
      %p184 = scmp.eq.s32.totalorder %s27, 0
      %p185 = por %p183, %p184
      %p186 = scmp.le.s32.totalorder 1, %s21
      %p187 = scmp.lt.s32.totalorder %s21, 17
      %p188 = pnand %p186, %p187
      %p189 = pneg %p188
      // Predicated region
      $region9: #{tpu_custom_call.1} parent=5 // pred_check
        _
      $region10: #{tpu_custom_call.1} parent=5 // pred_check_branch
        %191 = sbr.rel (%p188) target = $region12
      $region11: #{tpu_custom_call.1} parent=5 // pred_region
        %s192 = ssub.s32 %s21, 1
        // Predicated region
        $region13: #{tpu_custom_call.1} parent=11 // pred_check
          %p193 = pneg %p108
        $region14: #{tpu_custom_call.1} parent=11 // pred_check_branch
          %195 = sbr.rel (%p193) target = $region16
        $region15: #{tpu_custom_call.1} parent=11 // pred_region
          %s197 = ssub.s32 128, 128
          %198 = vsyncadd [#allocation8], %s197
          %s200 = sshll.u32 [#allocation9], 4
          %s201 = int_to_ptr.vmem [resolvable:$true] %s200
          %203 = dma.hbm_to_vmem [thread:$0]  %s2, 128, %s201, [#allocation8]
        $region16: #{tpu_custom_call.1} parent=11 // pred_fallthru
          _
        // Predicated region
        $region17: #{tpu_custom_call.1} parent=11 // pred_check
          %p204 = pneg %p129
        $region18: #{tpu_custom_call.1} parent=11 // pred_check_branch
          %206 = sbr.rel (%p204) target = $region20
        $region19: #{tpu_custom_call.1} parent=11 // pred_region
          %s208 = ssub.s32 1024, 1024
          %209 = vsyncadd [#allocation11], %s208
          %s211 = sshll.u32 [#allocation10], 4
          %s212 = int_to_ptr.vmem [resolvable:$true] %s211
          %214 = dma.hbm_to_vmem [thread:$0]  %s3, 1024, %s212, [#allocation11]
        $region20: #{tpu_custom_call.1} parent=11 // pred_fallthru
          _
        // Predicated region
        $region21: #{tpu_custom_call.1} parent=11 // pred_check
          %p215 = pneg %p150
        $region22: #{tpu_custom_call.1} parent=11 // pred_check_branch
          %217 = sbr.rel (%p215) target = $region24
        $region23: #{tpu_custom_call.1} parent=11 // pred_region
          %s219 = ssub.s32 8192, 8192
          %220 = vsyncadd [#allocation11], %s219
          %s221 = sshll.u32 [#allocation12], 4
          %s222 = int_to_ptr.vmem [resolvable:$true] %s221
          %227 = dma.hbm_to_vmem [thread:$0]  %s4, 8192, %s222, [#allocation11], 512, 512, 32
        $region24: #{tpu_custom_call.1} parent=11 // pred_fallthru
          _
      $region12: #{tpu_custom_call.1} parent=5 // pred_fallthru
        _
      %p228 = scmp.lt.s32.totalorder %s21, 16
      // Predicated region
      $region25: #{tpu_custom_call.1} parent=5 // pred_check
        %p229 = pneg %p228
      $region26: #{tpu_custom_call.1} parent=5 // pred_check_branch
        %231 = sbr.rel (%p229) target = $region28
      $region27: #{tpu_custom_call.1} parent=5 // pred_region
        // Predicated region
        $region29: #{tpu_custom_call.1} parent=27 // pred_check
          %p232 = pneg %p55
        $region30: #{tpu_custom_call.1} parent=27 // pred_check_branch
          %234 = sbr.rel (%p232) target = $region32
        $region31: #{tpu_custom_call.1} parent=27 // pred_region
          %s235 = sand.u32 %s45, 1
          %s236 = scalar_lea.sflag [#allocation5], %s235
          %s237 = sand.u32 %s45, 1
          %s238 = smul.addr %s237, 8
          %s239 = scalar_lea.vmem [#allocation4], %s238
          %s241 = ssub.s32 128, 128
          %242 = vsyncadd %s236, %s241
          %s243 = smul.addr %s28, 4
          %s244 = sadd.s32 %s29, %s243
          %s245 = smul.addr %s244, 128
          %s246 = scalar_lea.hbm %s0, %s245
          %s248 = sshll.u32 %s239, 4
          %s249 = int_to_ptr.vmem [resolvable:$true] %s248
          %251 = dma.hbm_to_vmem [thread:$0]  %s246, 128, %s249, %s236
        $region32: #{tpu_custom_call.1} parent=27 // pred_fallthru
          _
        // Predicated region
        $region33: #{tpu_custom_call.1} parent=27 // pred_check
          %p252 = pneg %p81
        $region34: #{tpu_custom_call.1} parent=27 // pred_check_branch
          %254 = sbr.rel (%p252) target = $region36
        $region35: #{tpu_custom_call.1} parent=27 // pred_region
          %s255 = sand.u32 %s21, 1
          %s256 = scalar_lea.sflag [#allocation8], %s255
          %s257 = sand.u32 %s71, 1
          %s258 = smul.addr %s257, 8
          %s259 = scalar_lea.vmem [#allocation7], %s258
          %s261 = ssub.s32 128, 128
          %262 = vsyncadd %s256, %s261
          %s263 = smul.addr %s28, 128
          %s264 = scalar_lea.hbm %s1, %s263
          %s266 = sshll.u32 %s259, 4
          %s267 = int_to_ptr.vmem [resolvable:$true] %s266
          %269 = dma.hbm_to_vmem [thread:$0]  %s264, 128, %s267, %s256
        $region36: #{tpu_custom_call.1} parent=27 // pred_fallthru
          _
      $region28: #{tpu_custom_call.1} parent=5 // pred_fallthru
        _
      %p270 = scmp.le.s32.totalorder 1, %s21
      %p271 = scmp.lt.s32.totalorder %s21, 17
      %p272 = pnand %p270, %p271
      %p273 = pneg %p272
      // Predicated region
      $region37: #{tpu_custom_call.1} parent=5 // pred_check
        _
      $region38: #{tpu_custom_call.1} parent=5 // pred_check_branch
        %275 = sbr.rel (%p272) target = $region40
      $region39: #{tpu_custom_call.1} parent=5 // pred_region
        %s276 = ssub.s32 %s21, 1
        %s277 = sand.u32 %s48, 1
        %s278 = scalar_lea.sflag [#allocation5], %s277
        %s279 = sand.u32 %s48, 1
        %s280 = smul.addr %s279, 8
        %s281 = scalar_lea.vmem [#allocation4], %s280
        // Predicated region
        $region41: #{tpu_custom_call.1} parent=39 // pred_check
          %p282 = pneg %p61
        $region42: #{tpu_custom_call.1} parent=39 // pred_check_branch
          %284 = sbr.rel (%p282) target = $region44
        $region43: #{tpu_custom_call.1} parent=39 // pred_region
          %285 = dma.done %s278, 128
        $region44: #{tpu_custom_call.1} parent=39 // pred_fallthru
          _
        %s286 = sand.u32 %s26, 1
        %s287 = scalar_lea.sflag [#allocation8], %s286
        %s288 = sand.u32 %s74, 1
        %s289 = smul.addr %s288, 8
        %s290 = scalar_lea.vmem [#allocation7], %s289
        // Predicated region
        $region45: #{tpu_custom_call.1} parent=39 // pred_check
          %p291 = pneg %p87
        $region46: #{tpu_custom_call.1} parent=39 // pred_check_branch
          %293 = sbr.rel (%p291) target = $region48
        $region47: #{tpu_custom_call.1} parent=39 // pred_region
          %294 = dma.done %s287, 128
        $region48: #{tpu_custom_call.1} parent=39 // pred_fallthru
          _
        // Predicated region
        $region49: #{tpu_custom_call.1} parent=39 // pred_check
          %p295 = pneg %p108
        $region50: #{tpu_custom_call.1} parent=39 // pred_check_branch
          %297 = sbr.rel (%p295) target = $region52
        $region51: #{tpu_custom_call.1} parent=39 // pred_region
          %298 = dma.done [#allocation8], 128
        $region52: #{tpu_custom_call.1} parent=39 // pred_fallthru
          _
        // Predicated region
        $region53: #{tpu_custom_call.1} parent=39 // pred_check
          %p299 = pneg %p129
        $region54: #{tpu_custom_call.1} parent=39 // pred_check_branch
          %301 = sbr.rel (%p299) target = $region56
        $region55: #{tpu_custom_call.1} parent=39 // pred_region
          %302 = dma.done [#allocation11], 1024
        $region56: #{tpu_custom_call.1} parent=39 // pred_fallthru
          _
        // Predicated region
        $region57: #{tpu_custom_call.1} parent=39 // pred_check
          %p303 = pneg %p150
        $region58: #{tpu_custom_call.1} parent=39 // pred_check_branch
          %305 = sbr.rel (%p303) target = $region60
        $region59: #{tpu_custom_call.1} parent=39 // pred_region
          %306 = dma.done [#allocation11], 8192
        $region60: #{tpu_custom_call.1} parent=39 // pred_fallthru
          _
        %s307 = sand.u32 %s48, 1
        %s308 = scalar_lea.sflag [#allocation5], %s307
        %s309 = sand.u32 %s48, 1
        %s310 = smul.addr %s309, 8
        %s311 = scalar_lea.vmem [#allocation4], %s310
        %p312 = pneg %p61
        %p313 = pneg %p58
        %s314 = sand.u32 %s26, 1
        %s315 = scalar_lea.sflag [#allocation8], %s314
        %s316 = sand.u32 %s74, 1
        %s317 = smul.addr %s316, 8
        %s318 = scalar_lea.vmem [#allocation7], %s317
        %p319 = pneg %p87
        %p320 = pneg %p84
        %p321 = pneg %p108
        %p322 = pneg %p105
        %p323 = pneg %p129
        %p324 = pneg %p126
        %p325 = pneg %p150
        %p326 = pneg %p147
        %p327 = pneg %p178
        %p328 = pneg %p175
        %s329 = sand.u32 %s165, 1
        %s330 = scalar_lea.sflag [#allocation6], %s329
        %s331 = sand.u32 %s165, 1
        %s332 = smul.addr %s331, 64
        %s333 = scalar_lea.vmem [#allocation13], %s332
        %s334 = smul.u32 8, %s31
        %p336 = scmp.eq.s32.totalorder %s31, 0
        // Predicated region
        $region61: #{tpu_custom_call.1} parent=39 // pred_check
          %p337 = pneg %p336
        $region62: #{tpu_custom_call.1} parent=39 // pred_check_branch
          %339 = sbr.rel (%p337) target = $region64
        $region63: #{tpu_custom_call.1} parent=39 // pred_region
          %v340 = vld [vmem:[#allocation9] sm:$0xff]
          %vm341 = vcmp.eq.s32.totalorder %v340, 0
          %v342 = vld [vmem:[%s290] sm:$0xff]
          %v343 = vsel %vm341, 1, 0
          %v344 = vlaneseq
          %v345 = vshrl.u32 %v344, 7
          %v346 = vsub.s32 0, %v345
          %v347 = vrot.slane %v343, %v346
          %v348 = vlaneseq
          %v349 = vshrl.u32 %v348, 7
          %v350 = vsub.s32 1, %v349
          %v351 = vrot.slane %v343, %v350
          %v352 = vlaneseq
          %v353 = vshrl.u32 %v352, 7
          %v354 = vsub.s32 2, %v353
          %v355 = vrot.slane %v343, %v354
          %v356 = vlaneseq
          %v357 = vshrl.u32 %v356, 7
          %v358 = vsub.s32 3, %v357
          %v359 = vrot.slane %v343, %v358
          %v360 = vlaneseq
          %v361 = vshrl.u32 %v360, 7
          %v362 = vsub.s32 4, %v361
          %v363 = vrot.slane %v343, %v362
          %v364 = vlaneseq
          %v365 = vshrl.u32 %v364, 7
          %v366 = vsub.s32 5, %v365
          %v367 = vrot.slane %v343, %v366
          %v368 = vlaneseq
          %v369 = vshrl.u32 %v368, 7
          %v370 = vsub.s32 6, %v369
          %v371 = vrot.slane %v343, %v370
          %v372 = vlaneseq
          %v373 = vshrl.u32 %v372, 7
          %v374 = vsub.s32 7, %v373
          %v375 = vrot.slane %v343, %v374
          %vm376 = vcmp.eq.s32.totalorder %v347, 1
          %vm377 = vcmp.eq.s32.totalorder %v351, 1
          %vm378 = vcmp.eq.s32.totalorder %v355, 1
          %vm379 = vcmp.eq.s32.totalorder %v359, 1
          %vm380 = vcmp.eq.s32.totalorder %v363, 1
          %vm381 = vcmp.eq.s32.totalorder %v367, 1
          %vm382 = vcmp.eq.s32.totalorder %v371, 1
          %vm383 = vcmp.eq.s32.totalorder %v375, 1
          %385 = vset.pattern.permute.xlu0 0
          %386 = vperm.xlu0 %385, %v342
          %v387 = vpop.permute.xlu0 %386
          %v389 = vsel %vm376, %v387, 0.0
          %v390 = vsel %vm377, %v387, 0.0
          %v391 = vsel %vm378, %v387, 0.0
          %v392 = vsel %vm379, %v387, 0.0
          %v393 = vsel %vm380, %v387, 0.0
          %v394 = vsel %vm381, %v387, 0.0
          %v395 = vsel %vm382, %v387, 0.0
          %v396 = vsel %vm383, %v387, 0.0
          %v397 = vadd.f32 %v389, 0.0
          %v398 = vadd.f32 %v390, 0.0
          %v399 = vadd.f32 %v391, 0.0
          %v400 = vadd.f32 %v392, 0.0
          %v401 = vadd.f32 %v393, 0.0
          %v402 = vadd.f32 %v394, 0.0
          %v403 = vadd.f32 %v395, 0.0
          %v404 = vadd.f32 %v396, 0.0
          %vm405 = vcmp.eq.s32.totalorder %v340, 1
          %v406 = vsel %vm405, 1, 0
          %v407 = vlaneseq
          %v408 = vshrl.u32 %v407, 7
          %v409 = vsub.s32 0, %v408
          %v410 = vrot.slane %v406, %v409
          %v411 = vlaneseq
          %v412 = vshrl.u32 %v411, 7
          %v413 = vsub.s32 1, %v412
          %v414 = vrot.slane %v406, %v413
          %v415 = vlaneseq
          %v416 = vshrl.u32 %v415, 7
          %v417 = vsub.s32 2, %v416
          %v418 = vrot.slane %v406, %v417
          %v419 = vlaneseq
          %v420 = vshrl.u32 %v419, 7
          %v421 = vsub.s32 3, %v420
          %v422 = vrot.slane %v406, %v421
          %v423 = vlaneseq
          %v424 = vshrl.u32 %v423, 7
          %v425 = vsub.s32 4, %v424
          %v426 = vrot.slane %v406, %v425
          %v427 = vlaneseq
          %v428 = vshrl.u32 %v427, 7
          %v429 = vsub.s32 5, %v428
          %v430 = vrot.slane %v406, %v429
          %v431 = vlaneseq
          %v432 = vshrl.u32 %v431, 7
          %v433 = vsub.s32 6, %v432
          %v434 = vrot.slane %v406, %v433
          %v435 = vlaneseq
          %v436 = vshrl.u32 %v435, 7
          %v437 = vsub.s32 7, %v436
          %v438 = vrot.slane %v406, %v437
          %vm439 = vcmp.eq.s32.totalorder %v410, 1
          %vm440 = vcmp.eq.s32.totalorder %v414, 1
          %vm441 = vcmp.eq.s32.totalorder %v418, 1
          %vm442 = vcmp.eq.s32.totalorder %v422, 1
          %vm443 = vcmp.eq.s32.totalorder %v426, 1
          %vm444 = vcmp.eq.s32.totalorder %v430, 1
          %vm445 = vcmp.eq.s32.totalorder %v434, 1
          %vm446 = vcmp.eq.s32.totalorder %v438, 1
          %447 = vset.pattern.permute.xlu0 1
          %448 = vperm.xlu0 %447, %v342
          %v449 = vpop.permute.xlu0 %448
          %v451 = vsel %vm439, %v449, 0.0
          %v452 = vsel %vm440, %v449, 0.0
          %v453 = vsel %vm441, %v449, 0.0
          %v454 = vsel %vm442, %v449, 0.0
          %v455 = vsel %vm443, %v449, 0.0
          %v456 = vsel %vm444, %v449, 0.0
          %v457 = vsel %vm445, %v449, 0.0
          %v458 = vsel %vm446, %v449, 0.0
          %v459 = vadd.f32 %v397, %v451
          %v460 = vadd.f32 %v398, %v452
          %v461 = vadd.f32 %v399, %v453
          %v462 = vadd.f32 %v400, %v454
          %v463 = vadd.f32 %v401, %v455
          %v464 = vadd.f32 %v402, %v456
          %v465 = vadd.f32 %v403, %v457
          %v466 = vadd.f32 %v404, %v458
          %vm467 = vcmp.eq.s32.totalorder %v340, 2
          %v468 = vsel %vm467, 1, 0
          %v469 = vlaneseq
          %v470 = vshrl.u32 %v469, 7
          %v471 = vsub.s32 0, %v470
          %v472 = vrot.slane %v468, %v471
          %v473 = vlaneseq
          %v474 = vshrl.u32 %v473, 7
          %v475 = vsub.s32 1, %v474
          %v476 = vrot.slane %v468, %v475
          %v477 = vlaneseq
          %v478 = vshrl.u32 %v477, 7
          %v479 = vsub.s32 2, %v478
          %v480 = vrot.slane %v468, %v479
          %v481 = vlaneseq
          %v482 = vshrl.u32 %v481, 7
          %v483 = vsub.s32 3, %v482
          %v484 = vrot.slane %v468, %v483
          %v485 = vlaneseq
          %v486 = vshrl.u32 %v485, 7
          %v487 = vsub.s32 4, %v486
          %v488 = vrot.slane %v468, %v487
          %v489 = vlaneseq
          %v490 = vshrl.u32 %v489, 7
          %v491 = vsub.s32 5, %v490
          %v492 = vrot.slane %v468, %v491
          %v493 = vlaneseq
          %v494 = vshrl.u32 %v493, 7
          %v495 = vsub.s32 6, %v494
          %v496 = vrot.slane %v468, %v495
          %v497 = vlaneseq
          %v498 = vshrl.u32 %v497, 7
          %v499 = vsub.s32 7, %v498
          %v500 = vrot.slane %v468, %v499
          %vm501 = vcmp.eq.s32.totalorder %v472, 1
          %vm502 = vcmp.eq.s32.totalorder %v476, 1
          %vm503 = vcmp.eq.s32.totalorder %v480, 1
          %vm504 = vcmp.eq.s32.totalorder %v484, 1
          %vm505 = vcmp.eq.s32.totalorder %v488, 1
          %vm506 = vcmp.eq.s32.totalorder %v492, 1
          %vm507 = vcmp.eq.s32.totalorder %v496, 1
          %vm508 = vcmp.eq.s32.totalorder %v500, 1
          %509 = vset.pattern.permute.xlu0 2
          %510 = vperm.xlu0 %509, %v342
          %v511 = vpop.permute.xlu0 %510
          %v513 = vsel %vm501, %v511, 0.0
          %v514 = vsel %vm502, %v511, 0.0
          %v515 = vsel %vm503, %v511, 0.0
          %v516 = vsel %vm504, %v511, 0.0
          %v517 = vsel %vm505, %v511, 0.0
          %v518 = vsel %vm506, %v511, 0.0
          %v519 = vsel %vm507, %v511, 0.0
          %v520 = vsel %vm508, %v511, 0.0
          %v521 = vadd.f32 %v459, %v513
          %v522 = vadd.f32 %v460, %v514
          %v523 = vadd.f32 %v461, %v515
          %v524 = vadd.f32 %v462, %v516
          %v525 = vadd.f32 %v463, %v517
          %v526 = vadd.f32 %v464, %v518
          %v527 = vadd.f32 %v465, %v519
          %v528 = vadd.f32 %v466, %v520
          %vm529 = vcmp.eq.s32.totalorder %v340, 3
          %v530 = vsel %vm529, 1, 0
          %v531 = vlaneseq
          %v532 = vshrl.u32 %v531, 7
          %v533 = vsub.s32 0, %v532
          %v534 = vrot.slane %v530, %v533
          %v535 = vlaneseq
          %v536 = vshrl.u32 %v535, 7
          %v537 = vsub.s32 1, %v536
          %v538 = vrot.slane %v530, %v537
          %v539 = vlaneseq
          %v540 = vshrl.u32 %v539, 7
          %v541 = vsub.s32 2, %v540
          %v542 = vrot.slane %v530, %v541
          %v543 = vlaneseq
          %v544 = vshrl.u32 %v543, 7
          %v545 = vsub.s32 3, %v544
          %v546 = vrot.slane %v530, %v545
          %v547 = vlaneseq
          %v548 = vshrl.u32 %v547, 7
          %v549 = vsub.s32 4, %v548
          %v550 = vrot.slane %v530, %v549
          %v551 = vlaneseq
          %v552 = vshrl.u32 %v551, 7
          %v553 = vsub.s32 5, %v552
          %v554 = vrot.slane %v530, %v553
          %v555 = vlaneseq
          %v556 = vshrl.u32 %v555, 7
          %v557 = vsub.s32 6, %v556
          %v558 = vrot.slane %v530, %v557
          %v559 = vlaneseq
          %v560 = vshrl.u32 %v559, 7
          %v561 = vsub.s32 7, %v560
          %v562 = vrot.slane %v530, %v561
          %vm563 = vcmp.eq.s32.totalorder %v534, 1
          %vm564 = vcmp.eq.s32.totalorder %v538, 1
          %vm565 = vcmp.eq.s32.totalorder %v542, 1
          %vm566 = vcmp.eq.s32.totalorder %v546, 1
          %vm567 = vcmp.eq.s32.totalorder %v550, 1
          %vm568 = vcmp.eq.s32.totalorder %v554, 1
          %vm569 = vcmp.eq.s32.totalorder %v558, 1
          %vm570 = vcmp.eq.s32.totalorder %v562, 1
          %571 = vset.pattern.permute.xlu0 3
          %572 = vperm.xlu0 %571, %v342
          %v573 = vpop.permute.xlu0 %572
          %v575 = vsel %vm563, %v573, 0.0
          %v576 = vsel %vm564, %v573, 0.0
          %v577 = vsel %vm565, %v573, 0.0
          %v578 = vsel %vm566, %v573, 0.0
          %v579 = vsel %vm567, %v573, 0.0
          %v580 = vsel %vm568, %v573, 0.0
          %v581 = vsel %vm569, %v573, 0.0
          %v582 = vsel %vm570, %v573, 0.0
          %v583 = vadd.f32 %v521, %v575
          %v584 = vadd.f32 %v522, %v576
          %v585 = vadd.f32 %v523, %v577
          %v586 = vadd.f32 %v524, %v578
          %v587 = vadd.f32 %v525, %v579
          %v588 = vadd.f32 %v526, %v580
          %v589 = vadd.f32 %v527, %v581
          %v590 = vadd.f32 %v528, %v582
          %vm591 = vcmp.eq.s32.totalorder %v340, 4
          %v592 = vsel %vm591, 1, 0
          %v593 = vlaneseq
          %v594 = vshrl.u32 %v593, 7
          %v595 = vsub.s32 0, %v594
          %v596 = vrot.slane %v592, %v595
          %v597 = vlaneseq
          %v598 = vshrl.u32 %v597, 7
          %v599 = vsub.s32 1, %v598
          %v600 = vrot.slane %v592, %v599
          %v601 = vlaneseq
          %v602 = vshrl.u32 %v601, 7
          %v603 = vsub.s32 2, %v602
          %v604 = vrot.slane %v592, %v603
          %v605 = vlaneseq
          %v606 = vshrl.u32 %v605, 7
          %v607 = vsub.s32 3, %v606
          %v608 = vrot.slane %v592, %v607
          %v609 = vlaneseq
          %v610 = vshrl.u32 %v609, 7
          %v611 = vsub.s32 4, %v610
          %v612 = vrot.slane %v592, %v611
          %v613 = vlaneseq
          %v614 = vshrl.u32 %v613, 7
          %v615 = vsub.s32 5, %v614
          %v616 = vrot.slane %v592, %v615
          %v617 = vlaneseq
          %v618 = vshrl.u32 %v617, 7
          %v619 = vsub.s32 6, %v618
          %v620 = vrot.slane %v592, %v619
          %v621 = vlaneseq
          %v622 = vshrl.u32 %v621, 7
          %v623 = vsub.s32 7, %v622
          %v624 = vrot.slane %v592, %v623
          %vm625 = vcmp.eq.s32.totalorder %v596, 1
          %vm626 = vcmp.eq.s32.totalorder %v600, 1
          %vm627 = vcmp.eq.s32.totalorder %v604, 1
          %vm628 = vcmp.eq.s32.totalorder %v608, 1
          %vm629 = vcmp.eq.s32.totalorder %v612, 1
          %vm630 = vcmp.eq.s32.totalorder %v616, 1
          %vm631 = vcmp.eq.s32.totalorder %v620, 1
          %vm632 = vcmp.eq.s32.totalorder %v624, 1
          %633 = vset.pattern.permute.xlu0 4
          %634 = vperm.xlu0 %633, %v342
          %v635 = vpop.permute.xlu0 %634
          %v637 = vsel %vm625, %v635, 0.0
          %v638 = vsel %vm626, %v635, 0.0
          %v639 = vsel %vm627, %v635, 0.0
          %v640 = vsel %vm628, %v635, 0.0
          %v641 = vsel %vm629, %v635, 0.0
          %v642 = vsel %vm630, %v635, 0.0
          %v643 = vsel %vm631, %v635, 0.0
          %v644 = vsel %vm632, %v635, 0.0
          %v645 = vadd.f32 %v583, %v637
          %v646 = vadd.f32 %v584, %v638
          %v647 = vadd.f32 %v585, %v639
          %v648 = vadd.f32 %v586, %v640
          %v649 = vadd.f32 %v587, %v641
          %v650 = vadd.f32 %v588, %v642
          %v651 = vadd.f32 %v589, %v643
          %v652 = vadd.f32 %v590, %v644
          %vm653 = vcmp.eq.s32.totalorder %v340, 5
          %v654 = vsel %vm653, 1, 0
          %v655 = vlaneseq
          %v656 = vshrl.u32 %v655, 7
          %v657 = vsub.s32 0, %v656
          %v658 = vrot.slane %v654, %v657
          %v659 = vlaneseq
          %v660 = vshrl.u32 %v659, 7
          %v661 = vsub.s32 1, %v660
          %v662 = vrot.slane %v654, %v661
          %v663 = vlaneseq
          %v664 = vshrl.u32 %v663, 7
          %v665 = vsub.s32 2, %v664
          %v666 = vrot.slane %v654, %v665
          %v667 = vlaneseq
          %v668 = vshrl.u32 %v667, 7
          %v669 = vsub.s32 3, %v668
          %v670 = vrot.slane %v654, %v669
          %v671 = vlaneseq
          %v672 = vshrl.u32 %v671, 7
          %v673 = vsub.s32 4, %v672
          %v674 = vrot.slane %v654, %v673
          %v675 = vlaneseq
          %v676 = vshrl.u32 %v675, 7
          %v677 = vsub.s32 5, %v676
          %v678 = vrot.slane %v654, %v677
          %v679 = vlaneseq
          %v680 = vshrl.u32 %v679, 7
          %v681 = vsub.s32 6, %v680
          %v682 = vrot.slane %v654, %v681
          %v683 = vlaneseq
          %v684 = vshrl.u32 %v683, 7
          %v685 = vsub.s32 7, %v684
          %v686 = vrot.slane %v654, %v685
          %vm687 = vcmp.eq.s32.totalorder %v658, 1
          %vm688 = vcmp.eq.s32.totalorder %v662, 1
          %vm689 = vcmp.eq.s32.totalorder %v666, 1
          %vm690 = vcmp.eq.s32.totalorder %v670, 1
          %vm691 = vcmp.eq.s32.totalorder %v674, 1
          %vm692 = vcmp.eq.s32.totalorder %v678, 1
          %vm693 = vcmp.eq.s32.totalorder %v682, 1
          %vm694 = vcmp.eq.s32.totalorder %v686, 1
          %695 = vset.pattern.permute.xlu0 5
          %696 = vperm.xlu0 %695, %v342
          %v697 = vpop.permute.xlu0 %696
          %v699 = vsel %vm687, %v697, 0.0
          %v700 = vsel %vm688, %v697, 0.0
          %v701 = vsel %vm689, %v697, 0.0
          %v702 = vsel %vm690, %v697, 0.0
          %v703 = vsel %vm691, %v697, 0.0
          %v704 = vsel %vm692, %v697, 0.0
          %v705 = vsel %vm693, %v697, 0.0
          %v706 = vsel %vm694, %v697, 0.0
          %v707 = vadd.f32 %v645, %v699
          %v708 = vadd.f32 %v646, %v700
          %v709 = vadd.f32 %v647, %v701
          %v710 = vadd.f32 %v648, %v702
          %v711 = vadd.f32 %v649, %v703
          %v712 = vadd.f32 %v650, %v704
          %v713 = vadd.f32 %v651, %v705
          %v714 = vadd.f32 %v652, %v706
          %vm715 = vcmp.eq.s32.totalorder %v340, 6
          %v716 = vsel %vm715, 1, 0
          %v717 = vlaneseq
          %v718 = vshrl.u32 %v717, 7
          %v719 = vsub.s32 0, %v718
          %v720 = vrot.slane %v716, %v719
          %v721 = vlaneseq
          %v722 = vshrl.u32 %v721, 7
          %v723 = vsub.s32 1, %v722
          %v724 = vrot.slane %v716, %v723
          %v725 = vlaneseq
          %v726 = vshrl.u32 %v725, 7
          %v727 = vsub.s32 2, %v726
          %v728 = vrot.slane %v716, %v727
          %v729 = vlaneseq
          %v730 = vshrl.u32 %v729, 7
          %v731 = vsub.s32 3, %v730
          %v732 = vrot.slane %v716, %v731
          %v733 = vlaneseq
          %v734 = vshrl.u32 %v733, 7
          %v735 = vsub.s32 4, %v734
          %v736 = vrot.slane %v716, %v735
          %v737 = vlaneseq
          %v738 = vshrl.u32 %v737, 7
          %v739 = vsub.s32 5, %v738
          %v740 = vrot.slane %v716, %v739
          %v741 = vlaneseq
          %v742 = vshrl.u32 %v741, 7
          %v743 = vsub.s32 6, %v742
          %v744 = vrot.slane %v716, %v743
          %v745 = vlaneseq
          %v746 = vshrl.u32 %v745, 7
          %v747 = vsub.s32 7, %v746
          %v748 = vrot.slane %v716, %v747
          %vm749 = vcmp.eq.s32.totalorder %v720, 1
          %vm750 = vcmp.eq.s32.totalorder %v724, 1
          %vm751 = vcmp.eq.s32.totalorder %v728, 1
          %vm752 = vcmp.eq.s32.totalorder %v732, 1
          %vm753 = vcmp.eq.s32.totalorder %v736, 1
          %vm754 = vcmp.eq.s32.totalorder %v740, 1
          %vm755 = vcmp.eq.s32.totalorder %v744, 1
          %vm756 = vcmp.eq.s32.totalorder %v748, 1
          %757 = vset.pattern.permute.xlu0 6
          %758 = vperm.xlu0 %757, %v342
          %v759 = vpop.permute.xlu0 %758
          %v761 = vsel %vm749, %v759, 0.0
          %v762 = vsel %vm750, %v759, 0.0
          %v763 = vsel %vm751, %v759, 0.0
          %v764 = vsel %vm752, %v759, 0.0
          %v765 = vsel %vm753, %v759, 0.0
          %v766 = vsel %vm754, %v759, 0.0
          %v767 = vsel %vm755, %v759, 0.0
          %v768 = vsel %vm756, %v759, 0.0
          %v769 = vadd.f32 %v707, %v761
          %v770 = vadd.f32 %v708, %v762
          %v771 = vadd.f32 %v709, %v763
          %v772 = vadd.f32 %v710, %v764
          %v773 = vadd.f32 %v711, %v765
          %v774 = vadd.f32 %v712, %v766
          %v775 = vadd.f32 %v713, %v767
          %v776 = vadd.f32 %v714, %v768
          %vm777 = vcmp.eq.s32.totalorder %v340, 7
          %v778 = vsel %vm777, 1, 0
          %v779 = vlaneseq
          %v780 = vshrl.u32 %v779, 7
          %v781 = vsub.s32 0, %v780
          %v782 = vrot.slane %v778, %v781
          %v783 = vlaneseq
          %v784 = vshrl.u32 %v783, 7
          %v785 = vsub.s32 1, %v784
          %v786 = vrot.slane %v778, %v785
          %v787 = vlaneseq
          %v788 = vshrl.u32 %v787, 7
          %v789 = vsub.s32 2, %v788
          %v790 = vrot.slane %v778, %v789
          %v791 = vlaneseq
          %v792 = vshrl.u32 %v791, 7
          %v793 = vsub.s32 3, %v792
          %v794 = vrot.slane %v778, %v793
          %v795 = vlaneseq
          %v796 = vshrl.u32 %v795, 7
          %v797 = vsub.s32 4, %v796
          %v798 = vrot.slane %v778, %v797
          %v799 = vlaneseq
          %v800 = vshrl.u32 %v799, 7
          %v801 = vsub.s32 5, %v800
          %v802 = vrot.slane %v778, %v801
          %v803 = vlaneseq
          %v804 = vshrl.u32 %v803, 7
          %v805 = vsub.s32 6, %v804
          %v806 = vrot.slane %v778, %v805
          %v807 = vlaneseq
          %v808 = vshrl.u32 %v807, 7
          %v809 = vsub.s32 7, %v808
          %v810 = vrot.slane %v778, %v809
          %vm811 = vcmp.eq.s32.totalorder %v782, 1
          %vm812 = vcmp.eq.s32.totalorder %v786, 1
          %vm813 = vcmp.eq.s32.totalorder %v790, 1
          %vm814 = vcmp.eq.s32.totalorder %v794, 1
          %vm815 = vcmp.eq.s32.totalorder %v798, 1
          %vm816 = vcmp.eq.s32.totalorder %v802, 1
          %vm817 = vcmp.eq.s32.totalorder %v806, 1
          %vm818 = vcmp.eq.s32.totalorder %v810, 1
          %819 = vset.pattern.permute.xlu0 7
          %820 = vperm.xlu0 %819, %v342
          %v821 = vpop.permute.xlu0 %820
          %v823 = vsel %vm811, %v821, 0.0
          %v824 = vsel %vm812, %v821, 0.0
          %v825 = vsel %vm813, %v821, 0.0
          %v826 = vsel %vm814, %v821, 0.0
          %v827 = vsel %vm815, %v821, 0.0
          %v828 = vsel %vm816, %v821, 0.0
          %v829 = vsel %vm817, %v821, 0.0
          %v830 = vsel %vm818, %v821, 0.0
          %v831 = vadd.f32 %v769, %v823
          %v832 = vadd.f32 %v770, %v824
          %v833 = vadd.f32 %v771, %v825
          %v834 = vadd.f32 %v772, %v826
          %v835 = vadd.f32 %v773, %v827
          %v836 = vadd.f32 %v774, %v828
          %v837 = vadd.f32 %v775, %v829
          %v838 = vadd.f32 %v776, %v830
          %839 = vst [vmem:[#allocation2] sm:$0xff] %v831
          %840 = vst [vmem:[#allocation2 + $0x8] sm:$0xff] %v832
          %841 = vst [vmem:[#allocation2 + $0x10] sm:$0xff] %v833
          %842 = vst [vmem:[#allocation2 + $0x18] sm:$0xff] %v834
          %843 = vst [vmem:[#allocation2 + $0x20] sm:$0xff] %v835
          %844 = vst [vmem:[#allocation2 + $0x28] sm:$0xff] %v836
          %845 = vst [vmem:[#allocation2 + $0x30] sm:$0xff] %v837
          %846 = vst [vmem:[#allocation2 + $0x38] sm:$0xff] %v838
        $region64: #{tpu_custom_call.1} parent=39 // pred_fallthru
          _
        %v847 = vld [vmem:[#allocation12] sm:$0xff]
        %v848 = vld [vmem:[#allocation12 + $0x8] sm:$0xff]
        %v849 = vld [vmem:[#allocation12 + $0x10] sm:$0xff]
        %v850 = vld [vmem:[#allocation12 + $0x18] sm:$0xff]
        %v851 = vld [vmem:[#allocation12 + $0x20] sm:$0xff]
        %v852 = vld [vmem:[#allocation12 + $0x28] sm:$0xff]
        %v853 = vld [vmem:[#allocation12 + $0x30] sm:$0xff]
        %v854 = vld [vmem:[#allocation12 + $0x38] sm:$0xff]
        %v855 = vld [vmem:[#allocation12 + $0x40] sm:$0xff]
        %v856 = vld [vmem:[#allocation12 + $0x48] sm:$0xff]
        %v857 = vld [vmem:[#allocation12 + $0x50] sm:$0xff]
        %v858 = vld [vmem:[#allocation12 + $0x58] sm:$0xff]
        %v859 = vld [vmem:[#allocation12 + $0x60] sm:$0xff]
        %v860 = vld [vmem:[#allocation12 + $0x68] sm:$0xff]
        %v861 = vld [vmem:[#allocation12 + $0x70] sm:$0xff]
        %v862 = vld [vmem:[#allocation12 + $0x78] sm:$0xff]
        %v863 = vld [vmem:[#allocation12 + $0x80] sm:$0xff]
        %v864 = vld [vmem:[#allocation12 + $0x88] sm:$0xff]
        %v865 = vld [vmem:[#allocation12 + $0x90] sm:$0xff]
        %v866 = vld [vmem:[#allocation12 + $0x98] sm:$0xff]
        %v867 = vld [vmem:[#allocation12 + $0xa0] sm:$0xff]
        %v868 = vld [vmem:[#allocation12 + $0xa8] sm:$0xff]
        %v869 = vld [vmem:[#allocation12 + $0xb0] sm:$0xff]
        %v870 = vld [vmem:[#allocation12 + $0xb8] sm:$0xff]
        %v871 = vld [vmem:[#allocation12 + $0xc0] sm:$0xff]
        %v872 = vld [vmem:[#allocation12 + $0xc8] sm:$0xff]
        %v873 = vld [vmem:[#allocation12 + $0xd0] sm:$0xff]
        %v874 = vld [vmem:[#allocation12 + $0xd8] sm:$0xff]
        %v875 = vld [vmem:[#allocation12 + $0xe0] sm:$0xff]
        %v876 = vld [vmem:[#allocation12 + $0xe8] sm:$0xff]
        %v877 = vld [vmem:[#allocation12 + $0xf0] sm:$0xff]
        %v878 = vld [vmem:[#allocation12 + $0xf8] sm:$0xff]
        %v879 = vld [vmem:[#allocation12 + $0x100] sm:$0xff]
        %v880 = vld [vmem:[#allocation12 + $0x108] sm:$0xff]
        %v881 = vld [vmem:[#allocation12 + $0x110] sm:$0xff]
        %v882 = vld [vmem:[#allocation12 + $0x118] sm:$0xff]
        %v883 = vld [vmem:[#allocation12 + $0x120] sm:$0xff]
        %v884 = vld [vmem:[#allocation12 + $0x128] sm:$0xff]
        %v885 = vld [vmem:[#allocation12 + $0x130] sm:$0xff]
        %v886 = vld [vmem:[#allocation12 + $0x138] sm:$0xff]
        %v887 = vld [vmem:[#allocation12 + $0x140] sm:$0xff]
        %v888 = vld [vmem:[#allocation12 + $0x148] sm:$0xff]
        %v889 = vld [vmem:[#allocation12 + $0x150] sm:$0xff]
        %v890 = vld [vmem:[#allocation12 + $0x158] sm:$0xff]
        %v891 = vld [vmem:[#allocation12 + $0x160] sm:$0xff]
        %v892 = vld [vmem:[#allocation12 + $0x168] sm:$0xff]
        %v893 = vld [vmem:[#allocation12 + $0x170] sm:$0xff]
        %v894 = vld [vmem:[#allocation12 + $0x178] sm:$0xff]
        %v895 = vld [vmem:[#allocation12 + $0x180] sm:$0xff]
        %v896 = vld [vmem:[#allocation12 + $0x188] sm:$0xff]
        %v897 = vld [vmem:[#allocation12 + $0x190] sm:$0xff]
        %v898 = vld [vmem:[#allocation12 + $0x198] sm:$0xff]
        %v899 = vld [vmem:[#allocation12 + $0x1a0] sm:$0xff]
        %v900 = vld [vmem:[#allocation12 + $0x1a8] sm:$0xff]
        %v901 = vld [vmem:[#allocation12 + $0x1b0] sm:$0xff]
        %v902 = vld [vmem:[#allocation12 + $0x1b8] sm:$0xff]
        %v903 = vld [vmem:[#allocation12 + $0x1c0] sm:$0xff]
        %v904 = vld [vmem:[#allocation12 + $0x1c8] sm:$0xff]
        %v905 = vld [vmem:[#allocation12 + $0x1d0] sm:$0xff]
        %v906 = vld [vmem:[#allocation12 + $0x1d8] sm:$0xff]
        %v907 = vld [vmem:[#allocation12 + $0x1e0] sm:$0xff]
        %v908 = vld [vmem:[#allocation12 + $0x1e8] sm:$0xff]
        %v909 = vld [vmem:[#allocation12 + $0x1f0] sm:$0xff]
        %v910 = vld [vmem:[#allocation12 + $0x1f8] sm:$0xff]
        %v911 = vld [vmem:[%s281] sm:$0xff]
        %v912 = vcvt.s32.f32 %v911
        %v913 = vpack.c.bf16 %v912, %v912
        %v978 = vunpack.c.l.b16 %v847
        %v979 = vunpack.c.h.b16 %v847
        %v980 = vunpack.c.l.b16 %v848
        %v981 = vunpack.c.h.b16 %v848
        %v982 = vunpack.c.l.b16 %v849
        %v983 = vunpack.c.h.b16 %v849
        %v984 = vunpack.c.l.b16 %v850
        %v985 = vunpack.c.h.b16 %v850
        %v986 = vunpack.c.l.b16 %v851
        %v987 = vunpack.c.h.b16 %v851
        %v988 = vunpack.c.l.b16 %v852
        %v989 = vunpack.c.h.b16 %v852
        %v990 = vunpack.c.l.b16 %v853
        %v991 = vunpack.c.h.b16 %v853
        %v992 = vunpack.c.l.b16 %v854
        %v993 = vunpack.c.h.b16 %v854
        %v994 = vunpack.c.l.b16 %v855
        %v995 = vunpack.c.h.b16 %v855
        %v996 = vunpack.c.l.b16 %v856
        %v997 = vunpack.c.h.b16 %v856
        %v998 = vunpack.c.l.b16 %v857
        %v999 = vunpack.c.h.b16 %v857
        %v1000 = vunpack.c.l.b16 %v858
        %v1001 = vunpack.c.h.b16 %v858
        %v1002 = vunpack.c.l.b16 %v859
        %v1003 = vunpack.c.h.b16 %v859
        %v1004 = vunpack.c.l.b16 %v860
        %v1005 = vunpack.c.h.b16 %v860
        %v1006 = vunpack.c.l.b16 %v861
        %v1007 = vunpack.c.h.b16 %v861
        %v1008 = vunpack.c.l.b16 %v862
        %v1009 = vunpack.c.h.b16 %v862
        %v1010 = vunpack.c.l.b16 %v863
        %v1011 = vunpack.c.h.b16 %v863
        %v1012 = vunpack.c.l.b16 %v864
        %v1013 = vunpack.c.h.b16 %v864
        %v1014 = vunpack.c.l.b16 %v865
        %v1015 = vunpack.c.h.b16 %v865
        %v1016 = vunpack.c.l.b16 %v866
        %v1017 = vunpack.c.h.b16 %v866
        %v1018 = vunpack.c.l.b16 %v867
        %v1019 = vunpack.c.h.b16 %v867
        %v1020 = vunpack.c.l.b16 %v868
        %v1021 = vunpack.c.h.b16 %v868
        %v1022 = vunpack.c.l.b16 %v869
        %v1023 = vunpack.c.h.b16 %v869
        %v1024 = vunpack.c.l.b16 %v870
        %v1025 = vunpack.c.h.b16 %v870
        %v1026 = vunpack.c.l.b16 %v871
        %v1027 = vunpack.c.h.b16 %v871
        %v1028 = vunpack.c.l.b16 %v872
        %v1029 = vunpack.c.h.b16 %v872
        %v1030 = vunpack.c.l.b16 %v873
        %v1031 = vunpack.c.h.b16 %v873
        %v1032 = vunpack.c.l.b16 %v874
        %v1033 = vunpack.c.h.b16 %v874
        %v1034 = vunpack.c.l.b16 %v875
        %v1035 = vunpack.c.h.b16 %v875
        %v1036 = vunpack.c.l.b16 %v876
        %v1037 = vunpack.c.h.b16 %v876
        %v1038 = vunpack.c.l.b16 %v877
        %v1039 = vunpack.c.h.b16 %v877
        %v1040 = vunpack.c.l.b16 %v878
        %v1041 = vunpack.c.h.b16 %v878
        %v1042 = vunpack.c.l.b16 %v879
        %v1043 = vunpack.c.h.b16 %v879
        %v1044 = vunpack.c.l.b16 %v880
        %v1045 = vunpack.c.h.b16 %v880
        %v1046 = vunpack.c.l.b16 %v881
        %v1047 = vunpack.c.h.b16 %v881
        %v1048 = vunpack.c.l.b16 %v882
        %v1049 = vunpack.c.h.b16 %v882
        %v1050 = vunpack.c.l.b16 %v883
        %v1051 = vunpack.c.h.b16 %v883
        %v1052 = vunpack.c.l.b16 %v884
        %v1053 = vunpack.c.h.b16 %v884
        %v1054 = vunpack.c.l.b16 %v885
        %v1055 = vunpack.c.h.b16 %v885
        %v1056 = vunpack.c.l.b16 %v886
        %v1057 = vunpack.c.h.b16 %v886
        %v1058 = vunpack.c.l.b16 %v887
        %v1059 = vunpack.c.h.b16 %v887
        %v1060 = vunpack.c.l.b16 %v888
        %v1061 = vunpack.c.h.b16 %v888
        %v1062 = vunpack.c.l.b16 %v889
        %v1063 = vunpack.c.h.b16 %v889
        %v1064 = vunpack.c.l.b16 %v890
        %v1065 = vunpack.c.h.b16 %v890
        %v1066 = vunpack.c.l.b16 %v891
        %v1067 = vunpack.c.h.b16 %v891
        %v1068 = vunpack.c.l.b16 %v892
        %v1069 = vunpack.c.h.b16 %v892
        %v1070 = vunpack.c.l.b16 %v893
        %v1071 = vunpack.c.h.b16 %v893
        %v1072 = vunpack.c.l.b16 %v894
        %v1073 = vunpack.c.h.b16 %v894
        %v1074 = vunpack.c.l.b16 %v895
        %v1075 = vunpack.c.h.b16 %v895
        %v1076 = vunpack.c.l.b16 %v896
        %v1077 = vunpack.c.h.b16 %v896
        %v1078 = vunpack.c.l.b16 %v897
        %v1079 = vunpack.c.h.b16 %v897
        %v1080 = vunpack.c.l.b16 %v898
        %v1081 = vunpack.c.h.b16 %v898
        %v1082 = vunpack.c.l.b16 %v899
        %v1083 = vunpack.c.h.b16 %v899
        %v1084 = vunpack.c.l.b16 %v900
        %v1085 = vunpack.c.h.b16 %v900
        %v1086 = vunpack.c.l.b16 %v901
        %v1087 = vunpack.c.h.b16 %v901
        %v1088 = vunpack.c.l.b16 %v902
        %v1089 = vunpack.c.h.b16 %v902
        %v1090 = vunpack.c.l.b16 %v903
        %v1091 = vunpack.c.h.b16 %v903
        %v1092 = vunpack.c.l.b16 %v904
        %v1093 = vunpack.c.h.b16 %v904
        %v1094 = vunpack.c.l.b16 %v905
        %v1095 = vunpack.c.h.b16 %v905
        %v1096 = vunpack.c.l.b16 %v906
        %v1097 = vunpack.c.h.b16 %v906
        %v1098 = vunpack.c.l.b16 %v907
        %v1099 = vunpack.c.h.b16 %v907
        %v1100 = vunpack.c.l.b16 %v908
        %v1101 = vunpack.c.h.b16 %v908
        %v1102 = vunpack.c.l.b16 %v909
        %v1103 = vunpack.c.h.b16 %v909
        %v1104 = vunpack.c.l.b16 %v910
        %v1105 = vunpack.c.h.b16 %v910
        %v1106 = vpack.c.b16 %v986, %v978
        %v1107 = vpack.c.b16 %v987, %v979
        %v1108 = vpack.c.b16 %v988, %v980
        %v1109 = vpack.c.b16 %v989, %v981
        %v1110 = vpack.c.b16 %v990, %v982
        %v1111 = vpack.c.b16 %v991, %v983
        %v1112 = vpack.c.b16 %v992, %v984
        %v1113 = vpack.c.b16 %v993, %v985
        %v1114 = vpack.c.b16 %v1002, %v994
        %v1115 = vpack.c.b16 %v1003, %v995
        %v1116 = vpack.c.b16 %v1004, %v996
        %v1117 = vpack.c.b16 %v1005, %v997
        %v1118 = vpack.c.b16 %v1006, %v998
        %v1119 = vpack.c.b16 %v1007, %v999
        %v1120 = vpack.c.b16 %v1008, %v1000
        %v1121 = vpack.c.b16 %v1009, %v1001
        %v1122 = vpack.c.b16 %v1018, %v1010
        %v1123 = vpack.c.b16 %v1019, %v1011
        %v1124 = vpack.c.b16 %v1020, %v1012
        %v1125 = vpack.c.b16 %v1021, %v1013
        %v1126 = vpack.c.b16 %v1022, %v1014
        %v1127 = vpack.c.b16 %v1023, %v1015
        %v1128 = vpack.c.b16 %v1024, %v1016
        %v1129 = vpack.c.b16 %v1025, %v1017
        %v1130 = vpack.c.b16 %v1034, %v1026
        %v1131 = vpack.c.b16 %v1035, %v1027
        %v1132 = vpack.c.b16 %v1036, %v1028
        %v1133 = vpack.c.b16 %v1037, %v1029
        %v1134 = vpack.c.b16 %v1038, %v1030
        %v1135 = vpack.c.b16 %v1039, %v1031
        %v1136 = vpack.c.b16 %v1040, %v1032
        %v1137 = vpack.c.b16 %v1041, %v1033
        %v1138 = vpack.c.b16 %v1050, %v1042
        %v1139 = vpack.c.b16 %v1051, %v1043
        %v1140 = vpack.c.b16 %v1052, %v1044
        %v1141 = vpack.c.b16 %v1053, %v1045
        %v1142 = vpack.c.b16 %v1054, %v1046
        %v1143 = vpack.c.b16 %v1055, %v1047
        %v1144 = vpack.c.b16 %v1056, %v1048
        %v1145 = vpack.c.b16 %v1057, %v1049
        %v1146 = vpack.c.b16 %v1066, %v1058
        %v1147 = vpack.c.b16 %v1067, %v1059
        %v1148 = vpack.c.b16 %v1068, %v1060
        %v1149 = vpack.c.b16 %v1069, %v1061
        %v1150 = vpack.c.b16 %v1070, %v1062
        %v1151 = vpack.c.b16 %v1071, %v1063
        %v1152 = vpack.c.b16 %v1072, %v1064
        %v1153 = vpack.c.b16 %v1073, %v1065
        %v1154 = vpack.c.b16 %v1082, %v1074
        %v1155 = vpack.c.b16 %v1083, %v1075
        %v1156 = vpack.c.b16 %v1084, %v1076
        %v1157 = vpack.c.b16 %v1085, %v1077
        %v1158 = vpack.c.b16 %v1086, %v1078
        %v1159 = vpack.c.b16 %v1087, %v1079
        %v1160 = vpack.c.b16 %v1088, %v1080
        %v1161 = vpack.c.b16 %v1089, %v1081
        %v1162 = vpack.c.b16 %v1098, %v1090
        %v1163 = vpack.c.b16 %v1099, %v1091
        %v1164 = vpack.c.b16 %v1100, %v1092
        %v1165 = vpack.c.b16 %v1101, %v1093
        %v1166 = vpack.c.b16 %v1102, %v1094
        %v1167 = vpack.c.b16 %v1103, %v1095
        %v1168 = vpack.c.b16 %v1104, %v1096
        %v1169 = vpack.c.b16 %v1105, %v1097
        %1234 = vmatprep.subr.bf16.mxu0 %v1163
        %1235 = vmatpush1.bf16.msra.mxu0 %v1162
        %1236 = vmatprep.subr.bf16.mxu0 %v1155
        %1237 = vmatpush1.bf16.msra.mxu0 %v1154
        %1238 = vmatprep.subr.bf16.mxu0 %v1147
        %1239 = vmatpush1.bf16.msra.mxu0 %v1146
        %1240 = vmatprep.subr.bf16.mxu0 %v1139
        %1241 = vmatpush1.bf16.msra.mxu0 %v1138
        %1242 = vmatprep.subr.bf16.mxu0 %v1131
        %1243 = vmatpush1.bf16.msra.mxu0 %v1130
        %1244 = vmatprep.subr.bf16.mxu0 %v1123
        %1245 = vmatpush1.bf16.msra.mxu0 %v1122
        %1246 = vmatprep.subr.bf16.mxu0 %v1115
        %1247 = vmatpush1.bf16.msra.mxu0 %v1114
        %1248 = vmatprep.subr.bf16.mxu0 %v1107
        %1249 = vmatpush1.bf16.msra.mxu0 %v1106
        %1250 = vmatprep.subr.bf16.mxu0 0
        %1251 = vmatpush2.bf16.msra.mxu0 0
        %1252 = vmatprep.subr.bf16.mxu0 0
        %1253 = vmatpush2.bf16.msra.mxu0 0
        %1254 = vmatprep.subr.bf16.mxu0 0
        %1255 = vmatpush2.bf16.msra.mxu0 0
        %1256 = vmatprep.subr.bf16.mxu0 0
        %1257 = vmatpush2.bf16.msra.mxu0 0
        %1258 = vmatprep.subr.bf16.mxu0 0
        %1259 = vmatpush2.bf16.msra.mxu0 0
        %1260 = vmatprep.subr.bf16.mxu0 0
        %1261 = vmatpush2.bf16.msra.mxu0 0
        %1262 = vmatprep.subr.bf16.mxu0 0
        %1263 = vmatpush2.bf16.msra.mxu0 0
        %1264 = vmatprep.subr.bf16.mxu0 0
        %1265 = vmatpush2.bf16.msra.mxu0 0
        %1266 = vmatprep.mubr.bf16.mxu0 0
        %1267 = vmatmul.mubr.bf16.gmra.mxu0 %v913
        %v1268 = vpop.f32.mrf.mxu0
        %v1269 = vadd.f32 0.0, %v1268
        %v1270 = vpop.f32.mrf.mxu0
        %v1271 = vadd.f32 0.0, %v1270
        %v1272 = vpop.f32.mrf.mxu0
        %v1273 = vpop.f32.mrf.mxu0
        %1274 = vdwg.mxu0
        %1275 = vmatprep.subr.bf16.mxu0 %v1165
        %1276 = vmatpush1.bf16.msra.mxu0 %v1164
        %1277 = vmatprep.subr.bf16.mxu0 %v1157
        %1278 = vmatpush1.bf16.msra.mxu0 %v1156
        %1279 = vmatprep.subr.bf16.mxu0 %v1149
        %1280 = vmatpush1.bf16.msra.mxu0 %v1148
        %1281 = vmatprep.subr.bf16.mxu0 %v1141
        %1282 = vmatpush1.bf16.msra.mxu0 %v1140
        %1283 = vmatprep.subr.bf16.mxu0 %v1133
        %1284 = vmatpush1.bf16.msra.mxu0 %v1132
        %1285 = vmatprep.subr.bf16.mxu0 %v1125
        %1286 = vmatpush1.bf16.msra.mxu0 %v1124
        %1287 = vmatprep.subr.bf16.mxu0 %v1117
        %1288 = vmatpush1.bf16.msra.mxu0 %v1116
        %1289 = vmatprep.subr.bf16.mxu0 %v1109
        %1290 = vmatpush1.bf16.msra.mxu0 %v1108
        %1291 = vmatprep.subr.bf16.mxu0 0
        %1292 = vmatpush2.bf16.msra.mxu0 0
        %1293 = vmatprep.subr.bf16.mxu0 0
        %1294 = vmatpush2.bf16.msra.mxu0 0
        %1295 = vmatprep.subr.bf16.mxu0 0
        %1296 = vmatpush2.bf16.msra.mxu0 0
        %1297 = vmatprep.subr.bf16.mxu0 0
        %1298 = vmatpush2.bf16.msra.mxu0 0
        %1299 = vmatprep.subr.bf16.mxu0 0
        %1300 = vmatpush2.bf16.msra.mxu0 0
        %1301 = vmatprep.subr.bf16.mxu0 0
        %1302 = vmatpush2.bf16.msra.mxu0 0
        %1303 = vmatprep.subr.bf16.mxu0 0
        %1304 = vmatpush2.bf16.msra.mxu0 0
        %1305 = vmatprep.subr.bf16.mxu0 0
        %1306 = vmatpush2.bf16.msra.mxu0 0
        %1307 = vmatprep.mubr.bf16.mxu0 0
        %1308 = vmatmul.mubr.bf16.gmra.mxu0 %v913
        %v1309 = vpop.f32.mrf.mxu0
        %v1310 = vadd.f32 0.0, %v1309
        %v1311 = vpop.f32.mrf.mxu0
        %v1312 = vadd.f32 0.0, %v1311
        %v1313 = vpop.f32.mrf.mxu0
        %v1314 = vpop.f32.mrf.mxu0
        %1315 = vdwg.mxu0
        %1316 = vmatprep.subr.bf16.mxu0 %v1167
        %1317 = vmatpush1.bf16.msra.mxu0 %v1166
        %1318 = vmatprep.subr.bf16.mxu0 %v1159
        %1319 = vmatpush1.bf16.msra.mxu0 %v1158
        %1320 = vmatprep.subr.bf16.mxu0 %v1151
        %1321 = vmatpush1.bf16.msra.mxu0 %v1150
        %1322 = vmatprep.subr.bf16.mxu0 %v1143
        %1323 = vmatpush1.bf16.msra.mxu0 %v1142
        %1324 = vmatprep.subr.bf16.mxu0 %v1135
        %1325 = vmatpush1.bf16.msra.mxu0 %v1134
        %1326 = vmatprep.subr.bf16.mxu0 %v1127
        %1327 = vmatpush1.bf16.msra.mxu0 %v1126
        %1328 = vmatprep.subr.bf16.mxu0 %v1119
        %1329 = vmatpush1.bf16.msra.mxu0 %v1118
        %1330 = vmatprep.subr.bf16.mxu0 %v1111
        %1331 = vmatpush1.bf16.msra.mxu0 %v1110
        %1332 = vmatprep.subr.bf16.mxu0 0
        %1333 = vmatpush2.bf16.msra.mxu0 0
        %1334 = vmatprep.subr.bf16.mxu0 0
        %1335 = vmatpush2.bf16.msra.mxu0 0
        %1336 = vmatprep.subr.bf16.mxu0 0
        %1337 = vmatpush2.bf16.msra.mxu0 0
        %1338 = vmatprep.subr.bf16.mxu0 0
        %1339 = vmatpush2.bf16.msra.mxu0 0
        %1340 = vmatprep.subr.bf16.mxu0 0
        %1341 = vmatpush2.bf16.msra.mxu0 0
        %1342 = vmatprep.subr.bf16.mxu0 0
        %1343 = vmatpush2.bf16.msra.mxu0 0
        %1344 = vmatprep.subr.bf16.mxu0 0
        %1345 = vmatpush2.bf16.msra.mxu0 0
        %1346 = vmatprep.subr.bf16.mxu0 0
        %1347 = vmatpush2.bf16.msra.mxu0 0
        %1348 = vmatprep.mubr.bf16.mxu0 0
        %1349 = vmatmul.mubr.bf16.gmra.mxu0 %v913
        %v1350 = vpop.f32.mrf.mxu0
        %v1351 = vadd.f32 0.0, %v1350
        %v1352 = vpop.f32.mrf.mxu0
        %v1353 = vadd.f32 0.0, %v1352
        %v1354 = vpop.f32.mrf.mxu0
        %v1355 = vpop.f32.mrf.mxu0
        %1356 = vdwg.mxu0
        %1357 = vmatprep.subr.bf16.mxu0 %v1169
        %1358 = vmatpush1.bf16.msra.mxu0 %v1168
        %1359 = vmatprep.subr.bf16.mxu0 %v1161
        %1360 = vmatpush1.bf16.msra.mxu0 %v1160
        %1361 = vmatprep.subr.bf16.mxu0 %v1153
        %1362 = vmatpush1.bf16.msra.mxu0 %v1152
        %1363 = vmatprep.subr.bf16.mxu0 %v1145
        %1364 = vmatpush1.bf16.msra.mxu0 %v1144
        %1365 = vmatprep.subr.bf16.mxu0 %v1137
        %1366 = vmatpush1.bf16.msra.mxu0 %v1136
        %1367 = vmatprep.subr.bf16.mxu0 %v1129
        %1368 = vmatpush1.bf16.msra.mxu0 %v1128
        %1369 = vmatprep.subr.bf16.mxu0 %v1121
        %1370 = vmatpush1.bf16.msra.mxu0 %v1120
        %1371 = vmatprep.subr.bf16.mxu0 %v1113
        %1372 = vmatpush1.bf16.msra.mxu0 %v1112
        %1373 = vmatprep.subr.bf16.mxu0 0
        %1374 = vmatpush2.bf16.msra.mxu0 0
        %1375 = vmatprep.subr.bf16.mxu0 0
        %1376 = vmatpush2.bf16.msra.mxu0 0
        %1377 = vmatprep.subr.bf16.mxu0 0
        %1378 = vmatpush2.bf16.msra.mxu0 0
        %1379 = vmatprep.subr.bf16.mxu0 0
        %1380 = vmatpush2.bf16.msra.mxu0 0
        %1381 = vmatprep.subr.bf16.mxu0 0
        %1382 = vmatpush2.bf16.msra.mxu0 0
        %1383 = vmatprep.subr.bf16.mxu0 0
        %1384 = vmatpush2.bf16.msra.mxu0 0
        %1385 = vmatprep.subr.bf16.mxu0 0
        %1386 = vmatpush2.bf16.msra.mxu0 0
        %1387 = vmatprep.subr.bf16.mxu0 0
        %1388 = vmatpush2.bf16.msra.mxu0 0
        %1389 = vmatprep.mubr.bf16.mxu0 0
        %1390 = vmatmul.mubr.bf16.gmra.mxu0 %v913
        %v1391 = vpop.f32.mrf.mxu0
        %v1392 = vadd.f32 0.0, %v1391
        %v1393 = vpop.f32.mrf.mxu0
        %v1394 = vadd.f32 0.0, %v1393
        %v1395 = vpop.f32.mrf.mxu0
        %v1396 = vpop.f32.mrf.mxu0
        %1397 = vdwg.mxu0
        %1398 = vst [vmem:[#allocation3] sm:$0xff] %v1269
        %1399 = vst [vmem:[#allocation3 + $0x8] sm:$0xff] %v1271
        %1400 = vst [vmem:[#allocation3 + $0x10] sm:$0xff] %v1310
        %1401 = vst [vmem:[#allocation3 + $0x18] sm:$0xff] %v1312
        %1402 = vst [vmem:[#allocation3 + $0x20] sm:$0xff] %v1351
        %1403 = vst [vmem:[#allocation3 + $0x28] sm:$0xff] %v1353
        %1404 = vst [vmem:[#allocation3 + $0x30] sm:$0xff] %v1392
        %1405 = vst [vmem:[#allocation3 + $0x38] sm:$0xff] %v1394
        %v1406 = vld [vmem:[#allocation2] sm:$0xff]
        %v1407 = vld [vmem:[#allocation2 + $0x8] sm:$0xff]
        %v1408 = vld [vmem:[#allocation2 + $0x10] sm:$0xff]
        %v1409 = vld [vmem:[#allocation2 + $0x18] sm:$0xff]
        %v1410 = vld [vmem:[#allocation2 + $0x20] sm:$0xff]
        %v1411 = vld [vmem:[#allocation2 + $0x28] sm:$0xff]
        %v1412 = vld [vmem:[#allocation2 + $0x30] sm:$0xff]
        %v1413 = vld [vmem:[#allocation2 + $0x38] sm:$0xff]
        %v1414 = vld [vmem:[#allocation3] sm:$0xff]
        %v1415 = vld [vmem:[#allocation3 + $0x8] sm:$0xff]
        %v1416 = vld [vmem:[#allocation3 + $0x10] sm:$0xff]
        %v1417 = vld [vmem:[#allocation3 + $0x18] sm:$0xff]
        %v1418 = vld [vmem:[#allocation3 + $0x20] sm:$0xff]
        %v1419 = vld [vmem:[#allocation3 + $0x28] sm:$0xff]
        %v1420 = vld [vmem:[#allocation3 + $0x30] sm:$0xff]
        %v1421 = vld [vmem:[#allocation3 + $0x38] sm:$0xff]
        %vm1422 = vcmp.eq.f32.partialorder %v1414, 0.0
        %vm1423 = vcmp.eq.f32.partialorder %v1415, 0.0
        %vm1424 = vcmp.eq.f32.partialorder %v1416, 0.0
        %vm1425 = vcmp.eq.f32.partialorder %v1417, 0.0
        %vm1426 = vcmp.eq.f32.partialorder %v1418, 0.0
        %vm1427 = vcmp.eq.f32.partialorder %v1419, 0.0
        %vm1428 = vcmp.eq.f32.partialorder %v1420, 0.0
        %vm1429 = vcmp.eq.f32.partialorder %v1421, 0.0
        %v1430 = vld [vmem:[#allocation10] ss:$8 sm:$0xf]
        %v1431 = vld [vmem:[#allocation10] ss:$8 sm:$0xf0]
        %v1432 = vor.u32 %v1430, %v1431
        %v1434 = vlaneseq
        %v1435 = vshrl.u32 %v1434, 7
        %v1436 = vsub.s32 0, %v1435
        %v1437 = vrot.slane %v1432, %v1436
        %v1438 = vlaneseq
        %v1439 = vshrl.u32 %v1438, 7
        %v1440 = vsub.s32 1, %v1439
        %v1441 = vrot.slane %v1432, %v1440
        %v1442 = vlaneseq
        %v1443 = vshrl.u32 %v1442, 7
        %v1444 = vsub.s32 2, %v1443
        %v1445 = vrot.slane %v1432, %v1444
        %v1446 = vlaneseq
        %v1447 = vshrl.u32 %v1446, 7
        %v1448 = vsub.s32 3, %v1447
        %v1449 = vrot.slane %v1432, %v1448
        %v1450 = vlaneseq
        %v1451 = vshrl.u32 %v1450, 7
        %v1452 = vsub.s32 4, %v1451
        %v1453 = vrot.slane %v1432, %v1452
        %v1454 = vlaneseq
        %v1455 = vshrl.u32 %v1454, 7
        %v1456 = vsub.s32 5, %v1455
        %v1457 = vrot.slane %v1432, %v1456
        %v1458 = vlaneseq
        %v1459 = vshrl.u32 %v1458, 7
        %v1460 = vsub.s32 6, %v1459
        %v1461 = vrot.slane %v1432, %v1460
        %v1462 = vlaneseq
        %v1463 = vshrl.u32 %v1462, 7
        %v1464 = vsub.s32 7, %v1463
        %v1465 = vrot.slane %v1432, %v1464
        %v1474 = vsel %vm1422, %v1437, 0.0
        %v1475 = vsel %vm1423, %v1441, 0.0
        %v1476 = vsel %vm1424, %v1445, 0.0
        %v1477 = vsel %vm1425, %v1449, 0.0
        %v1478 = vsel %vm1426, %v1453, 0.0
        %v1479 = vsel %vm1427, %v1457, 0.0
        %v1480 = vsel %vm1428, %v1461, 0.0
        %v1481 = vsel %vm1429, %v1465, 0.0
        %v1482 = vadd.f32 %v1406, %v1474
        %v1483 = vadd.f32 %v1407, %v1475
        %v1484 = vadd.f32 %v1408, %v1476
        %v1485 = vadd.f32 %v1409, %v1477
        %v1486 = vadd.f32 %v1410, %v1478
        %v1487 = vadd.f32 %v1411, %v1479
        %v1488 = vadd.f32 %v1412, %v1480
        %v1489 = vadd.f32 %v1413, %v1481
        %vm1490 = vcmp.eq.f32.partialorder %v1414, 1.0
        %vm1491 = vcmp.eq.f32.partialorder %v1415, 1.0
        %vm1492 = vcmp.eq.f32.partialorder %v1416, 1.0
        %vm1493 = vcmp.eq.f32.partialorder %v1417, 1.0
        %vm1494 = vcmp.eq.f32.partialorder %v1418, 1.0
        %vm1495 = vcmp.eq.f32.partialorder %v1419, 1.0
        %vm1496 = vcmp.eq.f32.partialorder %v1420, 1.0
        %vm1497 = vcmp.eq.f32.partialorder %v1421, 1.0
        %s1498 = scalar_lea.vmem [#allocation10], 1
        %v1499 = vld [vmem:[%s1498] ss:$8 sm:$0xf]
        %v1500 = vld [vmem:[%s1498] ss:$8 sm:$0xf0]
        %v1501 = vor.u32 %v1499, %v1500
        %v1503 = vlaneseq
        %v1504 = vshrl.u32 %v1503, 7
        %v1505 = vsub.s32 0, %v1504
        %v1506 = vrot.slane %v1501, %v1505
        %v1507 = vlaneseq
        %v1508 = vshrl.u32 %v1507, 7
        %v1509 = vsub.s32 1, %v1508
        %v1510 = vrot.slane %v1501, %v1509
        %v1511 = vlaneseq
        %v1512 = vshrl.u32 %v1511, 7
        %v1513 = vsub.s32 2, %v1512
        %v1514 = vrot.slane %v1501, %v1513
        %v1515 = vlaneseq
        %v1516 = vshrl.u32 %v1515, 7
        %v1517 = vsub.s32 3, %v1516
        %v1518 = vrot.slane %v1501, %v1517
        %v1519 = vlaneseq
        %v1520 = vshrl.u32 %v1519, 7
        %v1521 = vsub.s32 4, %v1520
        %v1522 = vrot.slane %v1501, %v1521
        %v1523 = vlaneseq
        %v1524 = vshrl.u32 %v1523, 7
        %v1525 = vsub.s32 5, %v1524
        %v1526 = vrot.slane %v1501, %v1525
        %v1527 = vlaneseq
        %v1528 = vshrl.u32 %v1527, 7
        %v1529 = vsub.s32 6, %v1528
        %v1530 = vrot.slane %v1501, %v1529
        %v1531 = vlaneseq
        %v1532 = vshrl.u32 %v1531, 7
        %v1533 = vsub.s32 7, %v1532
        %v1534 = vrot.slane %v1501, %v1533
        %v1543 = vsel %vm1490, %v1506, 0.0
        %v1544 = vsel %vm1491, %v1510, 0.0
        %v1545 = vsel %vm1492, %v1514, 0.0
        %v1546 = vsel %vm1493, %v1518, 0.0
        %v1547 = vsel %vm1494, %v1522, 0.0
        %v1548 = vsel %vm1495, %v1526, 0.0
        %v1549 = vsel %vm1496, %v1530, 0.0
        %v1550 = vsel %vm1497, %v1534, 0.0
        %v1551 = vadd.f32 %v1482, %v1543
        %v1552 = vadd.f32 %v1483, %v1544
        %v1553 = vadd.f32 %v1484, %v1545
        %v1554 = vadd.f32 %v1485, %v1546
        %v1555 = vadd.f32 %v1486, %v1547
        %v1556 = vadd.f32 %v1487, %v1548
        %v1557 = vadd.f32 %v1488, %v1549
        %v1558 = vadd.f32 %v1489, %v1550
        %vm1559 = vcmp.eq.f32.partialorder %v1414, 2.0
        %vm1560 = vcmp.eq.f32.partialorder %v1415, 2.0
        %vm1561 = vcmp.eq.f32.partialorder %v1416, 2.0
        %vm1562 = vcmp.eq.f32.partialorder %v1417, 2.0
        %vm1563 = vcmp.eq.f32.partialorder %v1418, 2.0
        %vm1564 = vcmp.eq.f32.partialorder %v1419, 2.0
        %vm1565 = vcmp.eq.f32.partialorder %v1420, 2.0
        %vm1566 = vcmp.eq.f32.partialorder %v1421, 2.0
        %s1567 = scalar_lea.vmem [#allocation10], 2
        %v1568 = vld [vmem:[%s1567] ss:$8 sm:$0xf]
        %v1569 = vld [vmem:[%s1567] ss:$8 sm:$0xf0]
        %v1570 = vor.u32 %v1568, %v1569
        %v1572 = vlaneseq
        %v1573 = vshrl.u32 %v1572, 7
        %v1574 = vsub.s32 0, %v1573
        %v1575 = vrot.slane %v1570, %v1574
        %v1576 = vlaneseq
        %v1577 = vshrl.u32 %v1576, 7
        %v1578 = vsub.s32 1, %v1577
        %v1579 = vrot.slane %v1570, %v1578
        %v1580 = vlaneseq
        %v1581 = vshrl.u32 %v1580, 7
        %v1582 = vsub.s32 2, %v1581
        %v1583 = vrot.slane %v1570, %v1582
        %v1584 = vlaneseq
        %v1585 = vshrl.u32 %v1584, 7
        %v1586 = vsub.s32 3, %v1585
        %v1587 = vrot.slane %v1570, %v1586
        %v1588 = vlaneseq
        %v1589 = vshrl.u32 %v1588, 7
        %v1590 = vsub.s32 4, %v1589
        %v1591 = vrot.slane %v1570, %v1590
        %v1592 = vlaneseq
        %v1593 = vshrl.u32 %v1592, 7
        %v1594 = vsub.s32 5, %v1593
        %v1595 = vrot.slane %v1570, %v1594
        %v1596 = vlaneseq
        %v1597 = vshrl.u32 %v1596, 7
        %v1598 = vsub.s32 6, %v1597
        %v1599 = vrot.slane %v1570, %v1598
        %v1600 = vlaneseq
        %v1601 = vshrl.u32 %v1600, 7
        %v1602 = vsub.s32 7, %v1601
        %v1603 = vrot.slane %v1570, %v1602
        %v1612 = vsel %vm1559, %v1575, 0.0
        %v1613 = vsel %vm1560, %v1579, 0.0
        %v1614 = vsel %vm1561, %v1583, 0.0
        %v1615 = vsel %vm1562, %v1587, 0.0
        %v1616 = vsel %vm1563, %v1591, 0.0
        %v1617 = vsel %vm1564, %v1595, 0.0
        %v1618 = vsel %vm1565, %v1599, 0.0
        %v1619 = vsel %vm1566, %v1603, 0.0
        %v1620 = vadd.f32 %v1551, %v1612
        %v1621 = vadd.f32 %v1552, %v1613
        %v1622 = vadd.f32 %v1553, %v1614
        %v1623 = vadd.f32 %v1554, %v1615
        %v1624 = vadd.f32 %v1555, %v1616
        %v1625 = vadd.f32 %v1556, %v1617
        %v1626 = vadd.f32 %v1557, %v1618
        %v1627 = vadd.f32 %v1558, %v1619
        %vm1628 = vcmp.eq.f32.partialorder %v1414, 3.0
        %vm1629 = vcmp.eq.f32.partialorder %v1415, 3.0
        %vm1630 = vcmp.eq.f32.partialorder %v1416, 3.0
        %vm1631 = vcmp.eq.f32.partialorder %v1417, 3.0
        %vm1632 = vcmp.eq.f32.partialorder %v1418, 3.0
        %vm1633 = vcmp.eq.f32.partialorder %v1419, 3.0
        %vm1634 = vcmp.eq.f32.partialorder %v1420, 3.0
        %vm1635 = vcmp.eq.f32.partialorder %v1421, 3.0
        %s1636 = scalar_lea.vmem [#allocation10], 3
        %v1637 = vld [vmem:[%s1636] ss:$8 sm:$0xf]
        %v1638 = vld [vmem:[%s1636] ss:$8 sm:$0xf0]
        %v1639 = vor.u32 %v1637, %v1638
        %v1641 = vlaneseq
        %v1642 = vshrl.u32 %v1641, 7
        %v1643 = vsub.s32 0, %v1642
        %v1644 = vrot.slane %v1639, %v1643
        %v1645 = vlaneseq
        %v1646 = vshrl.u32 %v1645, 7
        %v1647 = vsub.s32 1, %v1646
        %v1648 = vrot.slane %v1639, %v1647
        %v1649 = vlaneseq
        %v1650 = vshrl.u32 %v1649, 7
        %v1651 = vsub.s32 2, %v1650
        %v1652 = vrot.slane %v1639, %v1651
        %v1653 = vlaneseq
        %v1654 = vshrl.u32 %v1653, 7
        %v1655 = vsub.s32 3, %v1654
        %v1656 = vrot.slane %v1639, %v1655
        %v1657 = vlaneseq
        %v1658 = vshrl.u32 %v1657, 7
        %v1659 = vsub.s32 4, %v1658
        %v1660 = vrot.slane %v1639, %v1659
        %v1661 = vlaneseq
        %v1662 = vshrl.u32 %v1661, 7
        %v1663 = vsub.s32 5, %v1662
        %v1664 = vrot.slane %v1639, %v1663
        %v1665 = vlaneseq
        %v1666 = vshrl.u32 %v1665, 7
        %v1667 = vsub.s32 6, %v1666
        %v1668 = vrot.slane %v1639, %v1667
        %v1669 = vlaneseq
        %v1670 = vshrl.u32 %v1669, 7
        %v1671 = vsub.s32 7, %v1670
        %v1672 = vrot.slane %v1639, %v1671
        %v1681 = vsel %vm1628, %v1644, 0.0
        %v1682 = vsel %vm1629, %v1648, 0.0
        %v1683 = vsel %vm1630, %v1652, 0.0
        %v1684 = vsel %vm1631, %v1656, 0.0
        %v1685 = vsel %vm1632, %v1660, 0.0
        %v1686 = vsel %vm1633, %v1664, 0.0
        %v1687 = vsel %vm1634, %v1668, 0.0
        %v1688 = vsel %vm1635, %v1672, 0.0
        %v1689 = vadd.f32 %v1620, %v1681
        %v1690 = vadd.f32 %v1621, %v1682
        %v1691 = vadd.f32 %v1622, %v1683
        %v1692 = vadd.f32 %v1623, %v1684
        %v1693 = vadd.f32 %v1624, %v1685
        %v1694 = vadd.f32 %v1625, %v1686
        %v1695 = vadd.f32 %v1626, %v1687
        %v1696 = vadd.f32 %v1627, %v1688
        %vm1697 = vcmp.eq.f32.partialorder %v1414, 4.0
        %vm1698 = vcmp.eq.f32.partialorder %v1415, 4.0
        %vm1699 = vcmp.eq.f32.partialorder %v1416, 4.0
        %vm1700 = vcmp.eq.f32.partialorder %v1417, 4.0
        %vm1701 = vcmp.eq.f32.partialorder %v1418, 4.0
        %vm1702 = vcmp.eq.f32.partialorder %v1419, 4.0
        %vm1703 = vcmp.eq.f32.partialorder %v1420, 4.0
        %vm1704 = vcmp.eq.f32.partialorder %v1421, 4.0
        %s1705 = scalar_lea.vmem [#allocation10], 4
        %v1706 = vld [vmem:[%s1705] ss:$8 sm:$0xf]
        %v1707 = vld [vmem:[%s1705] ss:$8 sm:$0xf0]
        %v1708 = vor.u32 %v1706, %v1707
        %v1710 = vlaneseq
        %v1711 = vshrl.u32 %v1710, 7
        %v1712 = vsub.s32 0, %v1711
        %v1713 = vrot.slane %v1708, %v1712
        %v1714 = vlaneseq
        %v1715 = vshrl.u32 %v1714, 7
        %v1716 = vsub.s32 1, %v1715
        %v1717 = vrot.slane %v1708, %v1716
        %v1718 = vlaneseq
        %v1719 = vshrl.u32 %v1718, 7
        %v1720 = vsub.s32 2, %v1719
        %v1721 = vrot.slane %v1708, %v1720
        %v1722 = vlaneseq
        %v1723 = vshrl.u32 %v1722, 7
        %v1724 = vsub.s32 3, %v1723
        %v1725 = vrot.slane %v1708, %v1724
        %v1726 = vlaneseq
        %v1727 = vshrl.u32 %v1726, 7
        %v1728 = vsub.s32 4, %v1727
        %v1729 = vrot.slane %v1708, %v1728
        %v1730 = vlaneseq
        %v1731 = vshrl.u32 %v1730, 7
        %v1732 = vsub.s32 5, %v1731
        %v1733 = vrot.slane %v1708, %v1732
        %v1734 = vlaneseq
        %v1735 = vshrl.u32 %v1734, 7
        %v1736 = vsub.s32 6, %v1735
        %v1737 = vrot.slane %v1708, %v1736
        %v1738 = vlaneseq
        %v1739 = vshrl.u32 %v1738, 7
        %v1740 = vsub.s32 7, %v1739
        %v1741 = vrot.slane %v1708, %v1740
        %v1750 = vsel %vm1697, %v1713, 0.0
        %v1751 = vsel %vm1698, %v1717, 0.0
        %v1752 = vsel %vm1699, %v1721, 0.0
        %v1753 = vsel %vm1700, %v1725, 0.0
        %v1754 = vsel %vm1701, %v1729, 0.0
        %v1755 = vsel %vm1702, %v1733, 0.0
        %v1756 = vsel %vm1703, %v1737, 0.0
        %v1757 = vsel %vm1704, %v1741, 0.0
        %v1758 = vadd.f32 %v1689, %v1750
        %v1759 = vadd.f32 %v1690, %v1751
        %v1760 = vadd.f32 %v1691, %v1752
        %v1761 = vadd.f32 %v1692, %v1753
        %v1762 = vadd.f32 %v1693, %v1754
        %v1763 = vadd.f32 %v1694, %v1755
        %v1764 = vadd.f32 %v1695, %v1756
        %v1765 = vadd.f32 %v1696, %v1757
        %vm1766 = vcmp.eq.f32.partialorder %v1414, 5.0
        %vm1767 = vcmp.eq.f32.partialorder %v1415, 5.0
        %vm1768 = vcmp.eq.f32.partialorder %v1416, 5.0
        %vm1769 = vcmp.eq.f32.partialorder %v1417, 5.0
        %vm1770 = vcmp.eq.f32.partialorder %v1418, 5.0
        %vm1771 = vcmp.eq.f32.partialorder %v1419, 5.0
        %vm1772 = vcmp.eq.f32.partialorder %v1420, 5.0
        %vm1773 = vcmp.eq.f32.partialorder %v1421, 5.0
        %s1774 = scalar_lea.vmem [#allocation10], 5
        %v1775 = vld [vmem:[%s1774] ss:$8 sm:$0xf]
        %v1776 = vld [vmem:[%s1774] ss:$8 sm:$0xf0]
        %v1777 = vor.u32 %v1775, %v1776
        %v1779 = vlaneseq
        %v1780 = vshrl.u32 %v1779, 7
        %v1781 = vsub.s32 0, %v1780
        %v1782 = vrot.slane %v1777, %v1781
        %v1783 = vlaneseq
        %v1784 = vshrl.u32 %v1783, 7
        %v1785 = vsub.s32 1, %v1784
        %v1786 = vrot.slane %v1777, %v1785
        %v1787 = vlaneseq
        %v1788 = vshrl.u32 %v1787, 7
        %v1789 = vsub.s32 2, %v1788
        %v1790 = vrot.slane %v1777, %v1789
        %v1791 = vlaneseq
        %v1792 = vshrl.u32 %v1791, 7
        %v1793 = vsub.s32 3, %v1792
        %v1794 = vrot.slane %v1777, %v1793
        %v1795 = vlaneseq
        %v1796 = vshrl.u32 %v1795, 7
        %v1797 = vsub.s32 4, %v1796
        %v1798 = vrot.slane %v1777, %v1797
        %v1799 = vlaneseq
        %v1800 = vshrl.u32 %v1799, 7
        %v1801 = vsub.s32 5, %v1800
        %v1802 = vrot.slane %v1777, %v1801
        %v1803 = vlaneseq
        %v1804 = vshrl.u32 %v1803, 7
        %v1805 = vsub.s32 6, %v1804
        %v1806 = vrot.slane %v1777, %v1805
        %v1807 = vlaneseq
        %v1808 = vshrl.u32 %v1807, 7
        %v1809 = vsub.s32 7, %v1808
        %v1810 = vrot.slane %v1777, %v1809
        %v1819 = vsel %vm1766, %v1782, 0.0
        %v1820 = vsel %vm1767, %v1786, 0.0
        %v1821 = vsel %vm1768, %v1790, 0.0
        %v1822 = vsel %vm1769, %v1794, 0.0
        %v1823 = vsel %vm1770, %v1798, 0.0
        %v1824 = vsel %vm1771, %v1802, 0.0
        %v1825 = vsel %vm1772, %v1806, 0.0
        %v1826 = vsel %vm1773, %v1810, 0.0
        %v1827 = vadd.f32 %v1758, %v1819
        %v1828 = vadd.f32 %v1759, %v1820
        %v1829 = vadd.f32 %v1760, %v1821
        %v1830 = vadd.f32 %v1761, %v1822
        %v1831 = vadd.f32 %v1762, %v1823
        %v1832 = vadd.f32 %v1763, %v1824
        %v1833 = vadd.f32 %v1764, %v1825
        %v1834 = vadd.f32 %v1765, %v1826
        %vm1835 = vcmp.eq.f32.partialorder %v1414, 6.0
        %vm1836 = vcmp.eq.f32.partialorder %v1415, 6.0
        %vm1837 = vcmp.eq.f32.partialorder %v1416, 6.0
        %vm1838 = vcmp.eq.f32.partialorder %v1417, 6.0
        %vm1839 = vcmp.eq.f32.partialorder %v1418, 6.0
        %vm1840 = vcmp.eq.f32.partialorder %v1419, 6.0
        %vm1841 = vcmp.eq.f32.partialorder %v1420, 6.0
        %vm1842 = vcmp.eq.f32.partialorder %v1421, 6.0
        %s1843 = scalar_lea.vmem [#allocation10], 6
        %v1844 = vld [vmem:[%s1843] ss:$8 sm:$0xf]
        %v1845 = vld [vmem:[%s1843] ss:$8 sm:$0xf0]
        %v1846 = vor.u32 %v1844, %v1845
        %v1848 = vlaneseq
        %v1849 = vshrl.u32 %v1848, 7
        %v1850 = vsub.s32 0, %v1849
        %v1851 = vrot.slane %v1846, %v1850
        %v1852 = vlaneseq
        %v1853 = vshrl.u32 %v1852, 7
        %v1854 = vsub.s32 1, %v1853
        %v1855 = vrot.slane %v1846, %v1854
        %v1856 = vlaneseq
        %v1857 = vshrl.u32 %v1856, 7
        %v1858 = vsub.s32 2, %v1857
        %v1859 = vrot.slane %v1846, %v1858
        %v1860 = vlaneseq
        %v1861 = vshrl.u32 %v1860, 7
        %v1862 = vsub.s32 3, %v1861
        %v1863 = vrot.slane %v1846, %v1862
        %v1864 = vlaneseq
        %v1865 = vshrl.u32 %v1864, 7
        %v1866 = vsub.s32 4, %v1865
        %v1867 = vrot.slane %v1846, %v1866
        %v1868 = vlaneseq
        %v1869 = vshrl.u32 %v1868, 7
        %v1870 = vsub.s32 5, %v1869
        %v1871 = vrot.slane %v1846, %v1870
        %v1872 = vlaneseq
        %v1873 = vshrl.u32 %v1872, 7
        %v1874 = vsub.s32 6, %v1873
        %v1875 = vrot.slane %v1846, %v1874
        %v1876 = vlaneseq
        %v1877 = vshrl.u32 %v1876, 7
        %v1878 = vsub.s32 7, %v1877
        %v1879 = vrot.slane %v1846, %v1878
        %v1888 = vsel %vm1835, %v1851, 0.0
        %v1889 = vsel %vm1836, %v1855, 0.0
        %v1890 = vsel %vm1837, %v1859, 0.0
        %v1891 = vsel %vm1838, %v1863, 0.0
        %v1892 = vsel %vm1839, %v1867, 0.0
        %v1893 = vsel %vm1840, %v1871, 0.0
        %v1894 = vsel %vm1841, %v1875, 0.0
        %v1895 = vsel %vm1842, %v1879, 0.0
        %v1896 = vadd.f32 %v1827, %v1888
        %v1897 = vadd.f32 %v1828, %v1889
        %v1898 = vadd.f32 %v1829, %v1890
        %v1899 = vadd.f32 %v1830, %v1891
        %v1900 = vadd.f32 %v1831, %v1892
        %v1901 = vadd.f32 %v1832, %v1893
        %v1902 = vadd.f32 %v1833, %v1894
        %v1903 = vadd.f32 %v1834, %v1895
        %1904 = vst [vmem:[%s333] sm:$0xff] %v1896
        %1905 = vst [vmem:[%s333 + $0x8] sm:$0xff] %v1897
        %1906 = vst [vmem:[%s333 + $0x10] sm:$0xff] %v1898
        %1907 = vst [vmem:[%s333 + $0x18] sm:$0xff] %v1899
        %1908 = vst [vmem:[%s333 + $0x20] sm:$0xff] %v1900
        %1909 = vst [vmem:[%s333 + $0x28] sm:$0xff] %v1901
        %1910 = vst [vmem:[%s333 + $0x30] sm:$0xff] %v1902
        %1911 = vst [vmem:[%s333 + $0x38] sm:$0xff] %v1903
        %s1912 = sand.u32 %s165, 1
        %s1913 = scalar_lea.sflag [#allocation6], %s1912
        %s1914 = sand.u32 %s165, 1
        %s1915 = smul.addr %s1914, 64
        %s1916 = scalar_lea.vmem [#allocation13], %s1915
        // Predicated region
        $region65: #{tpu_custom_call.1} parent=39 // pred_check
          %p1917 = pneg %p175
        $region66: #{tpu_custom_call.1} parent=39 // pred_check_branch
          %1919 = sbr.rel (%p1917) target = $region68
        $region67: #{tpu_custom_call.1} parent=39 // pred_region
          %s1920 = smul.u32 8, %s31
          %s1922 = ssub.s32 1024, 1024
          %1923 = vsyncadd %s1913, %s1922
          %s1924 = smul.addr %s30, 32
          %s1925 = sadd.s32 %s1920, %s1924
          %s1926 = smul.addr %s1925, 128
          %s1927 = scalar_lea.hbm %s5, %s1926
          %s1929 = sshll.u32 %s1916, 4
          %s1930 = int_to_ptr.vmem [resolvable:$true] %s1929
          %1932 = dma.vmem_to_hbm [thread:$0]  %s1930, 1024, %s1927, %s1913
        $region68: #{tpu_custom_call.1} parent=39 // pred_fallthru
          _
      $region40: #{tpu_custom_call.1} parent=5 // pred_fallthru
        _
      %p1933 = scmp.le.s32.totalorder 2, %s21
      // Predicated region
      $region69: #{tpu_custom_call.1} parent=5 // pred_check
        %p1934 = pneg %p1933
      $region70: #{tpu_custom_call.1} parent=5 // pred_check_branch
        %1936 = sbr.rel (%p1934) target = $region72
      $region71: #{tpu_custom_call.1} parent=5 // pred_region
        %s1937 = ssub.s32 %s21, 2
        // Predicated region
        $region73: #{tpu_custom_call.1} parent=71 // pred_check
          %p1938 = pneg %p181
        $region74: #{tpu_custom_call.1} parent=71 // pred_check_branch
          %1940 = sbr.rel (%p1938) target = $region76
        $region75: #{tpu_custom_call.1} parent=71 // pred_region
          %s1941 = sand.u32 %s166, 1
          %s1942 = scalar_lea.sflag [#allocation6], %s1941
          %s1943 = sand.u32 %s166, 1
          %s1944 = smul.addr %s1943, 64
          %s1945 = scalar_lea.vmem [#allocation13], %s1944
          %1946 = dma.done %s1942, 1024
        $region76: #{tpu_custom_call.1} parent=71 // pred_fallthru
          _
      $region72: #{tpu_custom_call.1} parent=5 // pred_fallthru
        _
    $region6: #{tpu_custom_call.1} parent=1 // loop_footer
      %s25 = sadd.s32 1, %s21
    $region7: #{tpu_custom_call.1} parent=1 // loop_footer_branch
      %20 = sbr.rel target = $region3
    $region8: #{tpu_custom_call.1} parent=1 // loop_exit
      _
    %1947 = vsyncpa [#allocation5], 1
    %s1948 = scalar_lea.sflag [#allocation5], 1
    %1949 = vsyncpa %s1948, 1
    %1950 = vsyncpa [#allocation8], 1
    %s1951 = scalar_lea.sflag [#allocation8], 1
    %1952 = vsyncpa %s1951, 1
    %1953 = vsyncpa [#allocation11], 1
    %1954 = vsyncpa [#allocation6], 1
    %s1955 = scalar_lea.sflag [#allocation6], 1
    %1956 = vsyncpa %s1955, 1

</llo_original>
